<compile_context>
chip_gen: v7x
topology: tpu7x:2x2x1
jax: 0.10.0
libtpu: 0.0.40
codegen_flags: <defaults>
</compile_context>

<pallas_src>
import math

import jax
import jax.numpy as jnp
from jax.experimental import pallas as pl
from jax.experimental.pallas import tpu as pltpu

# ----------------------------- model config (small, synthetic) -----------------
B = 2          # batch
S = 8          # sequence length
H = 32         # hidden size ("bert_dim")
N_HEADS = 2
D_HEAD = H // N_HEADS
INTER = 64     # FFN intermediate size
N_LAYERS = 2
VOCAB = 128
MAX_POS = 64
LN_EPS = 1e-12
DROPOUT_RATE = 0.1  # TODO(synk): dropout_rate is stored by the torch module but never applied in forward(); omitted.


# ----------------------------- the single fused kernel --------------------------
def bert_fused_kernel(
    ids_ref, word_emb_ref, pos_type_ref, emb_ln_g_ref, emb_ln_b_ref,
    wqkv_ref, bqkv_ref, wo_ref, bo_ref, ln1_g_ref, ln1_b_ref,
    w1_ref, b1_ref, w2_ref, b2_ref, ln2_g_ref, ln2_b_ref,
    pool_w_ref, pool_b_ref, head_w_ref, head_b_ref,
    out_ref, ctx_ref,
):
    M = B * S
    scale = 1.0 / math.sqrt(D_HEAD)

    def layernorm(x, g, b):
        mean = jnp.mean(x, axis=-1, keepdims=True)
        var = jnp.mean((x - mean) ** 2, axis=-1, keepdims=True)
        return (x - mean) * jax.lax.rsqrt(var + LN_EPS) * g + b

    # ---- embeddings: one-hot gather on the MXU, then in-kernel LayerNorm ----
    ids = ids_ref[...]                                              # [M, 1] int32
    vocab_iota = jax.lax.broadcasted_iota(jnp.int32, (M, VOCAB), 1)
    one_hot = (vocab_iota == ids).astype(jnp.float32)               # [M, VOCAB]
    x = jnp.dot(one_hot, word_emb_ref[...], preferred_element_type=jnp.float32)
    x = x + pos_type_ref[...]                                       # + position + token-type
    x = layernorm(x, emb_ln_g_ref[...], emb_ln_b_ref[...])

    # ---- transformer layers: weights VMEM-resident, x stays on-chip ----
    for l in range(N_LAYERS):
        # fused Q|K|V projection: one [M,H] @ [H,3H] matmul
        qkv = jnp.dot(x, wqkv_ref[l], preferred_element_type=jnp.float32) + bqkv_ref[l]
        q = qkv[:, 0 * H:1 * H]
        k = qkv[:, 1 * H:2 * H]
        v = qkv[:, 2 * H:3 * H]

        # multi-head attention over all (batch, head) pairs in-kernel
        for b in range(B):
            r0, r1 = b * S, (b + 1) * S
            for h in range(N_HEADS):
                c0, c1 = h * D_HEAD, (h + 1) * D_HEAD
                qh = q[r0:r1, c0:c1]                                # [S, dh]
                kh = k[r0:r1, c0:c1]
                vh = v[r0:r1, c0:c1]
                scores = jax.lax.dot_general(                       # q @ k^T without explicit transpose
                    qh, kh, (((1,), (1,)), ((), ())),
                    preferred_element_type=jnp.float32) * scale     # [S, S]
                scores = scores - jnp.max(scores, axis=-1, keepdims=True)
                p = jnp.exp(scores)
                p = p * pl.reciprocal(jnp.sum(p, axis=-1, keepdims=True), approx=True)
                ctx_ref[r0:r1, c0:c1] = jnp.dot(
                    p, vh, preferred_element_type=jnp.float32)      # [S, dh]

        # output projection + residual + LayerNorm (fused)
        attn_out = jnp.dot(ctx_ref[...], wo_ref[l],
                           preferred_element_type=jnp.float32) + bo_ref[l]
        x = layernorm(attn_out + x, ln1_g_ref[l], ln1_b_ref[l])

        # feed-forward: GELU + projection + residual + LayerNorm (fused)
        ffn = jax.nn.gelu(
            jnp.dot(x, w1_ref[l], preferred_element_type=jnp.float32) + b1_ref[l],
            approximate=True)  # TODO(synk): BERT uses exact erf-GELU; tanh approx kept for TPU EUP path.
        ffn = jnp.dot(ffn, w2_ref[l], preferred_element_type=jnp.float32) + b2_ref[l]
        x = layernorm(ffn + x, ln2_g_ref[l], ln2_b_ref[l])

    # ---- pooler ([CLS] rows selected via one-hot matmul) + sigmoid head ----
    row_iota = jax.lax.broadcasted_iota(jnp.int32, (B, M), 1)
    cls_rows = jax.lax.broadcasted_iota(jnp.int32, (B, M), 0) * S
    sel = (row_iota == cls_rows).astype(jnp.float32)                # [B, M] one-hot of CLS rows
    cls = jnp.dot(sel, x, preferred_element_type=jnp.float32)       # [B, H]
    pooled = jnp.tanh(
        jnp.dot(cls, pool_w_ref[...], preferred_element_type=jnp.float32) + pool_b_ref[...])
    logit = jnp.dot(pooled, head_w_ref[...],
                    preferred_element_type=jnp.float32) + head_b_ref[...]   # [B, 1]
    out_ref[...] = jax.nn.sigmoid(logit)


# ----------------------------- parameter init -----------------------------------
def init_params(key):
    def nrm(k, shape, scale=0.02):
        return scale * jax.random.normal(k, shape, dtype=jnp.float32)

    keys = iter(jax.random.split(key, 16))
    zeros = lambda s: jnp.zeros(s, jnp.float32)
    ones = lambda s: jnp.ones(s, jnp.float32)
    return {
        "word_emb": nrm(next(keys), (VOCAB, H)),
        "pos_emb": nrm(next(keys), (MAX_POS, H)),
        "type_emb": nrm(next(keys), (2, H)),
        "emb_ln_g": ones((1, H)), "emb_ln_b": zeros((1, H)),
        # per-layer weights stacked along a leading layer axis; QKV fused to [H, 3H]
        "wqkv": nrm(next(keys), (N_LAYERS, H, 3 * H)), "bqkv": zeros((N_LAYERS, 1, 3 * H)),
        "wo": nrm(next(keys), (N_LAYERS, H, H)), "bo": zeros((N_LAYERS, 1, H)),
        "ln1_g": ones((N_LAYERS, 1, H)), "ln1_b": zeros((N_LAYERS, 1, H)),
        "w1": nrm(next(keys), (N_LAYERS, H, INTER)), "b1": zeros((N_LAYERS, 1, INTER)),
        "w2": nrm(next(keys), (N_LAYERS, INTER, H)), "b2": zeros((N_LAYERS, 1, H)),
        "ln2_g": ones((N_LAYERS, 1, H)), "ln2_b": zeros((N_LAYERS, 1, H)),
        "pool_w": nrm(next(keys), (H, H)), "pool_b": zeros((1, H)),
        "head_w": nrm(next(keys), (H, 1)), "head_b": zeros((1, 1)),   # nn.Linear(bert_dim, 1)
    }


# ----------------------------- forward pass (one pallas_call) --------------------
def model_forward(params, bert_ids):
    b, s = bert_ids.shape
    m = b * s
    ids = bert_ids.reshape(m, 1).astype(jnp.int32)
    # position + token-type embeddings are data-independent; precompute once as [M, H]
    pos_type = (params["pos_emb"][:s][None, :, :]
                + params["type_emb"][0][None, None, :])
    pos_type = jnp.broadcast_to(pos_type, (b, s, H)).reshape(m, H)

    out = pl.pallas_call(
        bert_fused_kernel,
        out_shape=jax.ShapeDtypeStruct((b, 1), jnp.float32),
        scratch_shapes=[pltpu.VMEM((m, H), jnp.float32)],   # attention context assembly
    )(ids, params["word_emb"], pos_type, params["emb_ln_g"], params["emb_ln_b"],
      params["wqkv"], params["bqkv"], params["wo"], params["bo"],
      params["ln1_g"], params["ln1_b"], params["w1"], params["b1"],
      params["w2"], params["b2"], params["ln2_g"], params["ln2_b"],
      params["pool_w"], params["pool_b"], params["head_w"], params["head_b"])
    return out[:, 0]  # .squeeze(1) -> [B]


# ----------------------------- main ----------------------------------------------
if __name__ == "__main__":
    key = jax.random.PRNGKey(0)
    pkey, dkey = jax.random.split(key)
    params = init_params(pkey)
    bert_ids = jax.random.randint(dkey, (B, S), 0, VOCAB, dtype=jnp.int32)

    out = jax.jit(model_forward)(params, bert_ids)
    out = jax.block_until_ready(out)

    assert out.shape == (B,), out.shape
    assert out.dtype == jnp.float32
    assert bool(jnp.all((out > 0.0) & (out < 1.0)))
    print("KERNEL_OK")
</pallas_src>

<mosaic_0001>
module attributes {stable_mosaic.version = 11 : i64} {
  func.func @bert_fused_kernel(%arg0: memref<16x1xi32, #tpu.memory_space<vmem>>, %arg1: memref<128x32xf32, #tpu.memory_space<vmem>>, %arg2: memref<16x32xf32, #tpu.memory_space<vmem>>, %arg3: memref<1x32xf32, #tpu.memory_space<vmem>>, %arg4: memref<1x32xf32, #tpu.memory_space<vmem>>, %arg5: memref<2x32x96xf32, #tpu.memory_space<vmem>>, %arg6: memref<2x1x96xf32, #tpu.memory_space<vmem>>, %arg7: memref<2x32x32xf32, #tpu.memory_space<vmem>>, %arg8: memref<2x1x32xf32, #tpu.memory_space<vmem>>, %arg9: memref<2x1x32xf32, #tpu.memory_space<vmem>>, %arg10: memref<2x1x32xf32, #tpu.memory_space<vmem>>, %arg11: memref<2x32x64xf32, #tpu.memory_space<vmem>>, %arg12: memref<2x1x64xf32, #tpu.memory_space<vmem>>, %arg13: memref<2x64x32xf32, #tpu.memory_space<vmem>>, %arg14: memref<2x1x32xf32, #tpu.memory_space<vmem>>, %arg15: memref<2x1x32xf32, #tpu.memory_space<vmem>>, %arg16: memref<2x1x32xf32, #tpu.memory_space<vmem>>, %arg17: memref<32x32xf32, #tpu.memory_space<vmem>>, %arg18: memref<1x32xf32, #tpu.memory_space<vmem>>, %arg19: memref<32x1xf32, #tpu.memory_space<vmem>>, %arg20: memref<1x1xf32, #tpu.memory_space<vmem>>, %arg21: memref<2x1xf32, #tpu.memory_space<vmem>>, %arg22: memref<16x32xf32, #tpu.memory_space<vmem>>) attributes {dimension_semantics = [], scalar_prefetch = 0 : i64, scratch_operands = 1 : i64, tpu.core_type = #tpu.core_type<tc>} {
    %c0 = arith.constant 0 : index
    %c0_0 = arith.constant 0 : index
    %0 = vector.load %arg0[%c0, %c0_0] : memref<16x1xi32, #tpu.memory_space<vmem>>, vector<16x1xi32>
    %1 = tpu.iota {dimensions = array<i32: 1>} : vector<16x128xi32>
    %2 = vector.broadcast %0 : vector<16x1xi32> to vector<16x128xi32>
    %3 = arith.cmpi eq, %1, %2 : vector<16x128xi32>
    %4 = arith.extui %3 : vector<16x128xi1> to vector<16x128xi32>
    %5 = arith.sitofp %4 : vector<16x128xi32> to vector<16x128xf32>
    %c0_1 = arith.constant 0 : index
    %c0_2 = arith.constant 0 : index
    %6 = vector.load %arg1[%c0_1, %c0_2] : memref<128x32xf32, #tpu.memory_space<vmem>>, vector<128x32xf32>
    %cst = arith.constant dense<0.000000e+00> : vector<16x32xf32>
    %7 = tpu.matmul %5, %6, %cst {dimension_numbers = #tpu.dot_dimension_numbers<[1], [0], [0], [1], [0, 0, 1, 1], [], []>} : vector<16x128xf32>, vector<128x32xf32>, vector<16x32xf32> -> vector<16x32xf32>
    %c0_3 = arith.constant 0 : index
    %c0_4 = arith.constant 0 : index
    %8 = vector.load %arg2[%c0_3, %c0_4] : memref<16x32xf32, #tpu.memory_space<vmem>>, vector<16x32xf32>
    %9 = arith.addf %7, %8 : vector<16x32xf32>
    %c0_5 = arith.constant 0 : index
    %c0_6 = arith.constant 0 : index
    %10 = vector.load %arg3[%c0_5, %c0_6] : memref<1x32xf32, #tpu.memory_space<vmem>>, vector<1x32xf32>
    %c0_7 = arith.constant 0 : index
    %c0_8 = arith.constant 0 : index
    %11 = vector.load %arg4[%c0_7, %c0_8] : memref<1x32xf32, #tpu.memory_space<vmem>>, vector<1x32xf32>
    %cst_9 = arith.constant dense<0.000000e+00> : vector<16xf32>
    %12 = vector.multi_reduction <add>, %9, %cst_9 [1] : vector<16x32xf32> to vector<16xf32>
    %13 = vector.shape_cast %12 : vector<16xf32> to vector<16x1xf32>
    %cst_10 = arith.constant 3.200000e+01 : f32
    %14 = vector.broadcast %cst_10 : f32 to vector<16x1xf32>
    %15 = arith.divf %13, %14 : vector<16x1xf32>
    %16 = vector.broadcast %15 : vector<16x1xf32> to vector<16x32xf32>
    %17 = arith.subf %9, %16 : vector<16x32xf32>
    %18 = arith.mulf %17, %17 : vector<16x32xf32>
    %cst_11 = arith.constant dense<0.000000e+00> : vector<16xf32>
    %19 = vector.multi_reduction <add>, %18, %cst_11 [1] : vector<16x32xf32> to vector<16xf32>
    %20 = vector.shape_cast %19 : vector<16xf32> to vector<16x1xf32>
    %cst_12 = arith.constant 3.200000e+01 : f32
    %21 = vector.broadcast %cst_12 : f32 to vector<16x1xf32>
    %22 = arith.divf %20, %21 : vector<16x1xf32>
    %23 = vector.broadcast %15 : vector<16x1xf32> to vector<16x32xf32>
    %24 = arith.subf %9, %23 : vector<16x32xf32>
    %cst_13 = arith.constant 9.99999996E-13 : f32
    %25 = vector.broadcast %cst_13 : f32 to vector<16x1xf32>
    %26 = arith.addf %22, %25 : vector<16x1xf32>
    %27 = math.rsqrt %26 : vector<16x1xf32>
    %28 = vector.broadcast %27 : vector<16x1xf32> to vector<16x32xf32>
    %29 = arith.mulf %24, %28 : vector<16x32xf32>
    %30 = vector.broadcast %10 : vector<1x32xf32> to vector<16x32xf32>
    %31 = arith.mulf %29, %30 : vector<16x32xf32>
    %32 = vector.broadcast %11 : vector<1x32xf32> to vector<16x32xf32>
    %33 = arith.addf %31, %32 : vector<16x32xf32>
    %c0_14 = arith.constant 0 : index
    %c0_15 = arith.constant 0 : index
    %c0_16 = arith.constant 0 : index
    %34 = vector.load %arg5[%c0_14, %c0_15, %c0_16] : memref<2x32x96xf32, #tpu.memory_space<vmem>>, vector<1x32x96xf32>
    %35 = vector.shape_cast %34 : vector<1x32x96xf32> to vector<32x96xf32>
    %cst_17 = arith.constant dense<0.000000e+00> : vector<16x96xf32>
    %36 = tpu.matmul %33, %35, %cst_17 {dimension_numbers = #tpu.dot_dimension_numbers<[1], [0], [0], [1], [0, 0, 1, 1], [], []>} : vector<16x32xf32>, vector<32x96xf32>, vector<16x96xf32> -> vector<16x96xf32>
    %c0_18 = arith.constant 0 : index
    %c0_19 = arith.constant 0 : index
    %c0_20 = arith.constant 0 : index
    %37 = vector.load %arg6[%c0_18, %c0_19, %c0_20] : memref<2x1x96xf32, #tpu.memory_space<vmem>>, vector<1x1x96xf32>
    %38 = vector.shape_cast %37 : vector<1x1x96xf32> to vector<1x96xf32>
    %39 = vector.broadcast %38 : vector<1x96xf32> to vector<16x96xf32>
    %40 = arith.addf %36, %39 : vector<16x96xf32>
    %41 = vector.extract_strided_slice %40 {offsets = [0, 0], sizes = [16, 32], strides = [1, 1]} : vector<16x96xf32> to vector<16x32xf32>
    %42 = vector.extract_strided_slice %40 {offsets = [0, 32], sizes = [16, 32], strides = [1, 1]} : vector<16x96xf32> to vector<16x32xf32>
    %43 = vector.extract_strided_slice %40 {offsets = [0, 64], sizes = [16, 32], strides = [1, 1]} : vector<16x96xf32> to vector<16x32xf32>
    %44 = vector.extract_strided_slice %41 {offsets = [0, 0], sizes = [8, 16], strides = [1, 1]} : vector<16x32xf32> to vector<8x16xf32>
    %45 = vector.extract_strided_slice %42 {offsets = [0, 0], sizes = [8, 16], strides = [1, 1]} : vector<16x32xf32> to vector<8x16xf32>
    %46 = vector.extract_strided_slice %43 {offsets = [0, 0], sizes = [8, 16], strides = [1, 1]} : vector<16x32xf32> to vector<8x16xf32>
    %cst_21 = arith.constant dense<0.000000e+00> : vector<8x8xf32>
    %47 = tpu.matmul %44, %45, %cst_21 {dimension_numbers = #tpu.dot_dimension_numbers<[1], [1], [0], [0], [0, 0, 1, 0], [], []>} : vector<8x16xf32>, vector<8x16xf32>, vector<8x8xf32> -> vector<8x8xf32>
    %cst_22 = arith.constant 2.500000e-01 : f32
    %48 = vector.broadcast %cst_22 : f32 to vector<8x8xf32>
    %49 = arith.mulf %47, %48 : vector<8x8xf32>
    %cst_23 = arith.constant dense<0xFF800000> : vector<8xf32>
    %50 = vector.multi_reduction <maximumf>, %49, %cst_23 [1] : vector<8x8xf32> to vector<8xf32>
    %51 = vector.shape_cast %50 : vector<8xf32> to vector<8x1xf32>
    %52 = vector.broadcast %51 : vector<8x1xf32> to vector<8x8xf32>
    %53 = arith.subf %49, %52 : vector<8x8xf32>
    %54 = math.exp %53 : vector<8x8xf32>
    %cst_24 = arith.constant dense<0.000000e+00> : vector<8xf32>
    %55 = vector.multi_reduction <add>, %54, %cst_24 [1] : vector<8x8xf32> to vector<8xf32>
    %56 = vector.shape_cast %55 : vector<8xf32> to vector<8x1xf32>
    %57 = tpu.reciprocal %56 {approx = true} : vector<8x1xf32> -> vector<8x1xf32>
    %58 = vector.broadcast %57 : vector<8x1xf32> to vector<8x8xf32>
    %59 = arith.mulf %54, %58 : vector<8x8xf32>
    %cst_25 = arith.constant dense<0.000000e+00> : vector<8x16xf32>
    %60 = tpu.matmul %59, %46, %cst_25 {dimension_numbers = #tpu.dot_dimension_numbers<[1], [0], [0], [1], [0, 0, 1, 1], [], []>} : vector<8x8xf32>, vector<8x16xf32>, vector<8x16xf32> -> vector<8x16xf32>
    %c0_26 = arith.constant 0 : index
    %c0_27 = arith.constant 0 : index
    %61 = vector.load %arg22[%c0_26, %c0_27] : memref<16x32xf32, #tpu.memory_space<vmem>>, vector<8x16xf32>
    tpu.vector_store %arg22[%c0_26, %c0_27], %60 {strides = array<i32>} : memref<16x32xf32, #tpu.memory_space<vmem>>, vector<8x16xf32>,
    %62 = vector.extract_strided_slice %41 {offsets = [0, 16], sizes = [8, 16], strides = [1, 1]} : vector<16x32xf32> to vector<8x16xf32>
    %63 = vector.extract_strided_slice %42 {offsets = [0, 16], sizes = [8, 16], strides = [1, 1]} : vector<16x32xf32> to vector<8x16xf32>
    %64 = vector.extract_strided_slice %43 {offsets = [0, 16], sizes = [8, 16], strides = [1, 1]} : vector<16x32xf32> to vector<8x16xf32>
    %cst_28 = arith.constant dense<0.000000e+00> : vector<8x8xf32>
    %65 = tpu.matmul %62, %63, %cst_28 {dimension_numbers = #tpu.dot_dimension_numbers<[1], [1], [0], [0], [0, 0, 1, 0], [], []>} : vector<8x16xf32>, vector<8x16xf32>, vector<8x8xf32> -> vector<8x8xf32>
    %cst_29 = arith.constant 2.500000e-01 : f32
    %66 = vector.broadcast %cst_29 : f32 to vector<8x8xf32>
    %67 = arith.mulf %65, %66 : vector<8x8xf32>
    %cst_30 = arith.constant dense<0xFF800000> : vector<8xf32>
    %68 = vector.multi_reduction <maximumf>, %67, %cst_30 [1] : vector<8x8xf32> to vector<8xf32>
    %69 = vector.shape_cast %68 : vector<8xf32> to vector<8x1xf32>
    %70 = vector.broadcast %69 : vector<8x1xf32> to vector<8x8xf32>
    %71 = arith.subf %67, %70 : vector<8x8xf32>
    %72 = math.exp %71 : vector<8x8xf32>
    %cst_31 = arith.constant dense<0.000000e+00> : vector<8xf32>
    %73 = vector.multi_reduction <add>, %72, %cst_31 [1] : vector<8x8xf32> to vector<8xf32>
    %74 = vector.shape_cast %73 : vector<8xf32> to vector<8x1xf32>
    %75 = tpu.reciprocal %74 {approx = true} : vector<8x1xf32> -> vector<8x1xf32>
    %76 = vector.broadcast %75 : vector<8x1xf32> to vector<8x8xf32>
    %77 = arith.mulf %72, %76 : vector<8x8xf32>
    %cst_32 = arith.constant dense<0.000000e+00> : vector<8x16xf32>
    %78 = tpu.matmul %77, %64, %cst_32 {dimension_numbers = #tpu.dot_dimension_numbers<[1], [0], [0], [1], [0, 0, 1, 1], [], []>} : vector<8x8xf32>, vector<8x16xf32>, vector<8x16xf32> -> vector<8x16xf32>
    %c0_33 = arith.constant 0 : index
    %c16 = arith.constant 16 : index
    %79 = vector.load %arg22[%c0_33, %c16] : memref<16x32xf32, #tpu.memory_space<vmem>>, vector<8x16xf32>
    tpu.vector_store %arg22[%c0_33, %c16], %78 {strides = array<i32>} : memref<16x32xf32, #tpu.memory_space<vmem>>, vector<8x16xf32>,
    %80 = vector.extract_strided_slice %41 {offsets = [8, 0], sizes = [8, 16], strides = [1, 1]} : vector<16x32xf32> to vector<8x16xf32>
    %81 = vector.extract_strided_slice %42 {offsets = [8, 0], sizes = [8, 16], strides = [1, 1]} : vector<16x32xf32> to vector<8x16xf32>
    %82 = vector.extract_strided_slice %43 {offsets = [8, 0], sizes = [8, 16], strides = [1, 1]} : vector<16x32xf32> to vector<8x16xf32>
    %cst_34 = arith.constant dense<0.000000e+00> : vector<8x8xf32>
    %83 = tpu.matmul %80, %81, %cst_34 {dimension_numbers = #tpu.dot_dimension_numbers<[1], [1], [0], [0], [0, 0, 1, 0], [], []>} : vector<8x16xf32>, vector<8x16xf32>, vector<8x8xf32> -> vector<8x8xf32>
    %cst_35 = arith.constant 2.500000e-01 : f32
    %84 = vector.broadcast %cst_35 : f32 to vector<8x8xf32>
    %85 = arith.mulf %83, %84 : vector<8x8xf32>
    %cst_36 = arith.constant dense<0xFF800000> : vector<8xf32>
    %86 = vector.multi_reduction <maximumf>, %85, %cst_36 [1] : vector<8x8xf32> to vector<8xf32>
    %87 = vector.shape_cast %86 : vector<8xf32> to vector<8x1xf32>
    %88 = vector.broadcast %87 : vector<8x1xf32> to vector<8x8xf32>
    %89 = arith.subf %85, %88 : vector<8x8xf32>
    %90 = math.exp %89 : vector<8x8xf32>
    %cst_37 = arith.constant dense<0.000000e+00> : vector<8xf32>
    %91 = vector.multi_reduction <add>, %90, %cst_37 [1] : vector<8x8xf32> to vector<8xf32>
    %92 = vector.shape_cast %91 : vector<8xf32> to vector<8x1xf32>
    %93 = tpu.reciprocal %92 {approx = true} : vector<8x1xf32> -> vector<8x1xf32>
    %94 = vector.broadcast %93 : vector<8x1xf32> to vector<8x8xf32>
    %95 = arith.mulf %90, %94 : vector<8x8xf32>
    %cst_38 = arith.constant dense<0.000000e+00> : vector<8x16xf32>
    %96 = tpu.matmul %95, %82, %cst_38 {dimension_numbers = #tpu.dot_dimension_numbers<[1], [0], [0], [1], [0, 0, 1, 1], [], []>} : vector<8x8xf32>, vector<8x16xf32>, vector<8x16xf32> -> vector<8x16xf32>
    %c8 = arith.constant 8 : index
    %c0_39 = arith.constant 0 : index
    %97 = vector.load %arg22[%c8, %c0_39] : memref<16x32xf32, #tpu.memory_space<vmem>>, vector<8x16xf32>
    tpu.vector_store %arg22[%c8, %c0_39], %96 {strides = array<i32>} : memref<16x32xf32, #tpu.memory_space<vmem>>, vector<8x16xf32>,
    %98 = vector.extract_strided_slice %41 {offsets = [8, 16], sizes = [8, 16], strides = [1, 1]} : vector<16x32xf32> to vector<8x16xf32>
    %99 = vector.extract_strided_slice %42 {offsets = [8, 16], sizes = [8, 16], strides = [1, 1]} : vector<16x32xf32> to vector<8x16xf32>
    %100 = vector.extract_strided_slice %43 {offsets = [8, 16], sizes = [8, 16], strides = [1, 1]} : vector<16x32xf32> to vector<8x16xf32>
    %cst_40 = arith.constant dense<0.000000e+00> : vector<8x8xf32>
    %101 = tpu.matmul %98, %99, %cst_40 {dimension_numbers = #tpu.dot_dimension_numbers<[1], [1], [0], [0], [0, 0, 1, 0], [], []>} : vector<8x16xf32>, vector<8x16xf32>, vector<8x8xf32> -> vector<8x8xf32>
    %cst_41 = arith.constant 2.500000e-01 : f32
    %102 = vector.broadcast %cst_41 : f32 to vector<8x8xf32>
    %103 = arith.mulf %101, %102 : vector<8x8xf32>
    %cst_42 = arith.constant dense<0xFF800000> : vector<8xf32>
    %104 = vector.multi_reduction <maximumf>, %103, %cst_42 [1] : vector<8x8xf32> to vector<8xf32>
    %105 = vector.shape_cast %104 : vector<8xf32> to vector<8x1xf32>
    %106 = vector.broadcast %105 : vector<8x1xf32> to vector<8x8xf32>
    %107 = arith.subf %103, %106 : vector<8x8xf32>
    %108 = math.exp %107 : vector<8x8xf32>
    %cst_43 = arith.constant dense<0.000000e+00> : vector<8xf32>
    %109 = vector.multi_reduction <add>, %108, %cst_43 [1] : vector<8x8xf32> to vector<8xf32>
    %110 = vector.shape_cast %109 : vector<8xf32> to vector<8x1xf32>
    %111 = tpu.reciprocal %110 {approx = true} : vector<8x1xf32> -> vector<8x1xf32>
    %112 = vector.broadcast %111 : vector<8x1xf32> to vector<8x8xf32>
    %113 = arith.mulf %108, %112 : vector<8x8xf32>
    %cst_44 = arith.constant dense<0.000000e+00> : vector<8x16xf32>
    %114 = tpu.matmul %113, %100, %cst_44 {dimension_numbers = #tpu.dot_dimension_numbers<[1], [0], [0], [1], [0, 0, 1, 1], [], []>} : vector<8x8xf32>, vector<8x16xf32>, vector<8x16xf32> -> vector<8x16xf32>
    %c8_45 = arith.constant 8 : index
    %c16_46 = arith.constant 16 : index
    %115 = vector.load %arg22[%c8_45, %c16_46] : memref<16x32xf32, #tpu.memory_space<vmem>>, vector<8x16xf32>
    tpu.vector_store %arg22[%c8_45, %c16_46], %114 {strides = array<i32>} : memref<16x32xf32, #tpu.memory_space<vmem>>, vector<8x16xf32>,
    %c0_47 = arith.constant 0 : index
    %c0_48 = arith.constant 0 : index
    %116 = vector.load %arg22[%c0_47, %c0_48] : memref<16x32xf32, #tpu.memory_space<vmem>>, vector<16x32xf32>
    %c0_49 = arith.constant 0 : index
    %c0_50 = arith.constant 0 : index
    %c0_51 = arith.constant 0 : index
    %117 = vector.load %arg7[%c0_49, %c0_50, %c0_51] : memref<2x32x32xf32, #tpu.memory_space<vmem>>, vector<1x32x32xf32>
    %118 = vector.shape_cast %117 : vector<1x32x32xf32> to vector<32x32xf32>
    %cst_52 = arith.constant dense<0.000000e+00> : vector<16x32xf32>
    %119 = tpu.matmul %116, %118, %cst_52 {dimension_numbers = #tpu.dot_dimension_numbers<[1], [0], [0], [1], [0, 0, 1, 1], [], []>} : vector<16x32xf32>, vector<32x32xf32>, vector<16x32xf32> -> vector<16x32xf32>
    %c0_53 = arith.constant 0 : index
    %c0_54 = arith.constant 0 : index
    %c0_55 = arith.constant 0 : index
    %120 = vector.load %arg8[%c0_53, %c0_54, %c0_55] : memref<2x1x32xf32, #tpu.memory_space<vmem>>, vector<1x1x32xf32>
    %121 = vector.shape_cast %120 : vector<1x1x32xf32> to vector<1x32xf32>
    %122 = vector.broadcast %121 : vector<1x32xf32> to vector<16x32xf32>
    %123 = arith.addf %119, %122 : vector<16x32xf32>
    %124 = arith.addf %123, %33 : vector<16x32xf32>
    %c0_56 = arith.constant 0 : index
    %c0_57 = arith.constant 0 : index
    %c0_58 = arith.constant 0 : index
    %125 = vector.load %arg9[%c0_56, %c0_57, %c0_58] : memref<2x1x32xf32, #tpu.memory_space<vmem>>, vector<1x1x32xf32>
    %126 = vector.shape_cast %125 : vector<1x1x32xf32> to vector<1x32xf32>
    %c0_59 = arith.constant 0 : index
    %c0_60 = arith.constant 0 : index
    %c0_61 = arith.constant 0 : index
    %127 = vector.load %arg10[%c0_59, %c0_60, %c0_61] : memref<2x1x32xf32, #tpu.memory_space<vmem>>, vector<1x1x32xf32>
    %128 = vector.shape_cast %127 : vector<1x1x32xf32> to vector<1x32xf32>
    %cst_62 = arith.constant dense<0.000000e+00> : vector<16xf32>
    %129 = vector.multi_reduction <add>, %124, %cst_62 [1] : vector<16x32xf32> to vector<16xf32>
    %130 = vector.shape_cast %129 : vector<16xf32> to vector<16x1xf32>
    %cst_63 = arith.constant 3.200000e+01 : f32
    %131 = vector.broadcast %cst_63 : f32 to vector<16x1xf32>
    %132 = arith.divf %130, %131 : vector<16x1xf32>
    %133 = vector.broadcast %132 : vector<16x1xf32> to vector<16x32xf32>
    %134 = arith.subf %124, %133 : vector<16x32xf32>
    %135 = arith.mulf %134, %134 : vector<16x32xf32>
    %cst_64 = arith.constant dense<0.000000e+00> : vector<16xf32>
    %136 = vector.multi_reduction <add>, %135, %cst_64 [1] : vector<16x32xf32> to vector<16xf32>
    %137 = vector.shape_cast %136 : vector<16xf32> to vector<16x1xf32>
    %cst_65 = arith.constant 3.200000e+01 : f32
    %138 = vector.broadcast %cst_65 : f32 to vector<16x1xf32>
    %139 = arith.divf %137, %138 : vector<16x1xf32>
    %140 = vector.broadcast %132 : vector<16x1xf32> to vector<16x32xf32>
    %141 = arith.subf %124, %140 : vector<16x32xf32>
    %cst_66 = arith.constant 9.99999996E-13 : f32
    %142 = vector.broadcast %cst_66 : f32 to vector<16x1xf32>
    %143 = arith.addf %139, %142 : vector<16x1xf32>
    %144 = math.rsqrt %143 : vector<16x1xf32>
    %145 = vector.broadcast %144 : vector<16x1xf32> to vector<16x32xf32>
    %146 = arith.mulf %141, %145 : vector<16x32xf32>
    %147 = vector.broadcast %126 : vector<1x32xf32> to vector<16x32xf32>
    %148 = arith.mulf %146, %147 : vector<16x32xf32>
    %149 = vector.broadcast %128 : vector<1x32xf32> to vector<16x32xf32>
    %150 = arith.addf %148, %149 : vector<16x32xf32>
    %c0_67 = arith.constant 0 : index
    %c0_68 = arith.constant 0 : index
    %c0_69 = arith.constant 0 : index
    %151 = vector.load %arg11[%c0_67, %c0_68, %c0_69] : memref<2x32x64xf32, #tpu.memory_space<vmem>>, vector<1x32x64xf32>
    %152 = vector.shape_cast %151 : vector<1x32x64xf32> to vector<32x64xf32>
    %cst_70 = arith.constant dense<0.000000e+00> : vector<16x64xf32>
    %153 = tpu.matmul %150, %152, %cst_70 {dimension_numbers = #tpu.dot_dimension_numbers<[1], [0], [0], [1], [0, 0, 1, 1], [], []>} : vector<16x32xf32>, vector<32x64xf32>, vector<16x64xf32> -> vector<16x64xf32>
    %c0_71 = arith.constant 0 : index
    %c0_72 = arith.constant 0 : index
    %c0_73 = arith.constant 0 : index
    %154 = vector.load %arg12[%c0_71, %c0_72, %c0_73] : memref<2x1x64xf32, #tpu.memory_space<vmem>>, vector<1x1x64xf32>
    %155 = vector.shape_cast %154 : vector<1x1x64xf32> to vector<1x64xf32>
    %156 = vector.broadcast %155 : vector<1x64xf32> to vector<16x64xf32>
    %157 = arith.addf %153, %156 : vector<16x64xf32>
    %158 = arith.mulf %157, %157 : vector<16x64xf32>
    %159 = arith.mulf %157, %158 : vector<16x64xf32>
    %cst_74 = arith.constant 4.471500e-02 : f32
    %160 = vector.broadcast %cst_74 : f32 to vector<16x64xf32>
    %161 = arith.mulf %160, %159 : vector<16x64xf32>
    %162 = arith.addf %157, %161 : vector<16x64xf32>
    %cst_75 = arith.constant 0.797884583 : f32
    %163 = vector.broadcast %cst_75 : f32 to vector<16x64xf32>
    %164 = arith.mulf %163, %162 : vector<16x64xf32>
    %165 = math.tanh %164 : vector<16x64xf32>
    %cst_76 = arith.constant 1.000000e+00 : f32
    %166 = vector.broadcast %cst_76 : f32 to vector<16x64xf32>
    %167 = arith.addf %166, %165 : vector<16x64xf32>
    %cst_77 = arith.constant 5.000000e-01 : f32
    %168 = vector.broadcast %cst_77 : f32 to vector<16x64xf32>
    %169 = arith.mulf %168, %167 : vector<16x64xf32>
    %170 = arith.mulf %157, %169 : vector<16x64xf32>
    %c0_78 = arith.constant 0 : index
    %c0_79 = arith.constant 0 : index
    %c0_80 = arith.constant 0 : index
    %171 = vector.load %arg13[%c0_78, %c0_79, %c0_80] : memref<2x64x32xf32, #tpu.memory_space<vmem>>, vector<1x64x32xf32>
    %172 = vector.shape_cast %171 : vector<1x64x32xf32> to vector<64x32xf32>
    %cst_81 = arith.constant dense<0.000000e+00> : vector<16x32xf32>
    %173 = tpu.matmul %170, %172, %cst_81 {dimension_numbers = #tpu.dot_dimension_numbers<[1], [0], [0], [1], [0, 0, 1, 1], [], []>} : vector<16x64xf32>, vector<64x32xf32>, vector<16x32xf32> -> vector<16x32xf32>
    %c0_82 = arith.constant 0 : index
    %c0_83 = arith.constant 0 : index
    %c0_84 = arith.constant 0 : index
    %174 = vector.load %arg14[%c0_82, %c0_83, %c0_84] : memref<2x1x32xf32, #tpu.memory_space<vmem>>, vector<1x1x32xf32>
    %175 = vector.shape_cast %174 : vector<1x1x32xf32> to vector<1x32xf32>
    %176 = vector.broadcast %175 : vector<1x32xf32> to vector<16x32xf32>
    %177 = arith.addf %173, %176 : vector<16x32xf32>
    %178 = arith.addf %177, %150 : vector<16x32xf32>
    %c0_85 = arith.constant 0 : index
    %c0_86 = arith.constant 0 : index
    %c0_87 = arith.constant 0 : index
    %179 = vector.load %arg15[%c0_85, %c0_86, %c0_87] : memref<2x1x32xf32, #tpu.memory_space<vmem>>, vector<1x1x32xf32>
    %180 = vector.shape_cast %179 : vector<1x1x32xf32> to vector<1x32xf32>
    %c0_88 = arith.constant 0 : index
    %c0_89 = arith.constant 0 : index
    %c0_90 = arith.constant 0 : index
    %181 = vector.load %arg16[%c0_88, %c0_89, %c0_90] : memref<2x1x32xf32, #tpu.memory_space<vmem>>, vector<1x1x32xf32>
    %182 = vector.shape_cast %181 : vector<1x1x32xf32> to vector<1x32xf32>
    %cst_91 = arith.constant dense<0.000000e+00> : vector<16xf32>
    %183 = vector.multi_reduction <add>, %178, %cst_91 [1] : vector<16x32xf32> to vector<16xf32>
    %184 = vector.shape_cast %183 : vector<16xf32> to vector<16x1xf32>
    %cst_92 = arith.constant 3.200000e+01 : f32
    %185 = vector.broadcast %cst_92 : f32 to vector<16x1xf32>
    %186 = arith.divf %184, %185 : vector<16x1xf32>
    %187 = vector.broadcast %186 : vector<16x1xf32> to vector<16x32xf32>
    %188 = arith.subf %178, %187 : vector<16x32xf32>
    %189 = arith.mulf %188, %188 : vector<16x32xf32>
    %cst_93 = arith.constant dense<0.000000e+00> : vector<16xf32>
    %190 = vector.multi_reduction <add>, %189, %cst_93 [1] : vector<16x32xf32> to vector<16xf32>
    %191 = vector.shape_cast %190 : vector<16xf32> to vector<16x1xf32>
    %cst_94 = arith.constant 3.200000e+01 : f32
    %192 = vector.broadcast %cst_94 : f32 to vector<16x1xf32>
    %193 = arith.divf %191, %192 : vector<16x1xf32>
    %194 = vector.broadcast %186 : vector<16x1xf32> to vector<16x32xf32>
    %195 = arith.subf %178, %194 : vector<16x32xf32>
    %cst_95 = arith.constant 9.99999996E-13 : f32
    %196 = vector.broadcast %cst_95 : f32 to vector<16x1xf32>
    %197 = arith.addf %193, %196 : vector<16x1xf32>
    %198 = math.rsqrt %197 : vector<16x1xf32>
    %199 = vector.broadcast %198 : vector<16x1xf32> to vector<16x32xf32>
    %200 = arith.mulf %195, %199 : vector<16x32xf32>
    %201 = vector.broadcast %180 : vector<1x32xf32> to vector<16x32xf32>
    %202 = arith.mulf %200, %201 : vector<16x32xf32>
    %203 = vector.broadcast %182 : vector<1x32xf32> to vector<16x32xf32>
    %204 = arith.addf %202, %203 : vector<16x32xf32>
    %c1 = arith.constant 1 : index
    %c0_96 = arith.constant 0 : index
    %c0_97 = arith.constant 0 : index
    %205 = vector.load %arg5[%c1, %c0_96, %c0_97] : memref<2x32x96xf32, #tpu.memory_space<vmem>>, vector<1x32x96xf32>
    %206 = vector.shape_cast %205 : vector<1x32x96xf32> to vector<32x96xf32>
    %cst_98 = arith.constant dense<0.000000e+00> : vector<16x96xf32>
    %207 = tpu.matmul %204, %206, %cst_98 {dimension_numbers = #tpu.dot_dimension_numbers<[1], [0], [0], [1], [0, 0, 1, 1], [], []>} : vector<16x32xf32>, vector<32x96xf32>, vector<16x96xf32> -> vector<16x96xf32>
    %c1_99 = arith.constant 1 : index
    %c0_100 = arith.constant 0 : index
    %c0_101 = arith.constant 0 : index
    %208 = vector.load %arg6[%c1_99, %c0_100, %c0_101] : memref<2x1x96xf32, #tpu.memory_space<vmem>>, vector<1x1x96xf32>
    %209 = vector.shape_cast %208 : vector<1x1x96xf32> to vector<1x96xf32>
    %210 = vector.broadcast %209 : vector<1x96xf32> to vector<16x96xf32>
    %211 = arith.addf %207, %210 : vector<16x96xf32>
    %212 = vector.extract_strided_slice %211 {offsets = [0, 0], sizes = [16, 32], strides = [1, 1]} : vector<16x96xf32> to vector<16x32xf32>
    %213 = vector.extract_strided_slice %211 {offsets = [0, 32], sizes = [16, 32], strides = [1, 1]} : vector<16x96xf32> to vector<16x32xf32>
    %214 = vector.extract_strided_slice %211 {offsets = [0, 64], sizes = [16, 32], strides = [1, 1]} : vector<16x96xf32> to vector<16x32xf32>
    %215 = vector.extract_strided_slice %212 {offsets = [0, 0], sizes = [8, 16], strides = [1, 1]} : vector<16x32xf32> to vector<8x16xf32>
    %216 = vector.extract_strided_slice %213 {offsets = [0, 0], sizes = [8, 16], strides = [1, 1]} : vector<16x32xf32> to vector<8x16xf32>
    %217 = vector.extract_strided_slice %214 {offsets = [0, 0], sizes = [8, 16], strides = [1, 1]} : vector<16x32xf32> to vector<8x16xf32>
    %cst_102 = arith.constant dense<0.000000e+00> : vector<8x8xf32>
    %218 = tpu.matmul %215, %216, %cst_102 {dimension_numbers = #tpu.dot_dimension_numbers<[1], [1], [0], [0], [0, 0, 1, 0], [], []>} : vector<8x16xf32>, vector<8x16xf32>, vector<8x8xf32> -> vector<8x8xf32>
    %cst_103 = arith.constant 2.500000e-01 : f32
    %219 = vector.broadcast %cst_103 : f32 to vector<8x8xf32>
    %220 = arith.mulf %218, %219 : vector<8x8xf32>
    %cst_104 = arith.constant dense<0xFF800000> : vector<8xf32>
    %221 = vector.multi_reduction <maximumf>, %220, %cst_104 [1] : vector<8x8xf32> to vector<8xf32>
    %222 = vector.shape_cast %221 : vector<8xf32> to vector<8x1xf32>
    %223 = vector.broadcast %222 : vector<8x1xf32> to vector<8x8xf32>
    %224 = arith.subf %220, %223 : vector<8x8xf32>
    %225 = math.exp %224 : vector<8x8xf32>
    %cst_105 = arith.constant dense<0.000000e+00> : vector<8xf32>
    %226 = vector.multi_reduction <add>, %225, %cst_105 [1] : vector<8x8xf32> to vector<8xf32>
    %227 = vector.shape_cast %226 : vector<8xf32> to vector<8x1xf32>
    %228 = tpu.reciprocal %227 {approx = true} : vector<8x1xf32> -> vector<8x1xf32>
    %229 = vector.broadcast %228 : vector<8x1xf32> to vector<8x8xf32>
    %230 = arith.mulf %225, %229 : vector<8x8xf32>
    %cst_106 = arith.constant dense<0.000000e+00> : vector<8x16xf32>
    %231 = tpu.matmul %230, %217, %cst_106 {dimension_numbers = #tpu.dot_dimension_numbers<[1], [0], [0], [1], [0, 0, 1, 1], [], []>} : vector<8x8xf32>, vector<8x16xf32>, vector<8x16xf32> -> vector<8x16xf32>
    %c0_107 = arith.constant 0 : index
    %c0_108 = arith.constant 0 : index
    %232 = vector.load %arg22[%c0_107, %c0_108] : memref<16x32xf32, #tpu.memory_space<vmem>>, vector<8x16xf32>
    tpu.vector_store %arg22[%c0_107, %c0_108], %231 {strides = array<i32>} : memref<16x32xf32, #tpu.memory_space<vmem>>, vector<8x16xf32>,
    %233 = vector.extract_strided_slice %212 {offsets = [0, 16], sizes = [8, 16], strides = [1, 1]} : vector<16x32xf32> to vector<8x16xf32>
    %234 = vector.extract_strided_slice %213 {offsets = [0, 16], sizes = [8, 16], strides = [1, 1]} : vector<16x32xf32> to vector<8x16xf32>
    %235 = vector.extract_strided_slice %214 {offsets = [0, 16], sizes = [8, 16], strides = [1, 1]} : vector<16x32xf32> to vector<8x16xf32>
    %cst_109 = arith.constant dense<0.000000e+00> : vector<8x8xf32>
    %236 = tpu.matmul %233, %234, %cst_109 {dimension_numbers = #tpu.dot_dimension_numbers<[1], [1], [0], [0], [0, 0, 1, 0], [], []>} : vector<8x16xf32>, vector<8x16xf32>, vector<8x8xf32> -> vector<8x8xf32>
    %cst_110 = arith.constant 2.500000e-01 : f32
    %237 = vector.broadcast %cst_110 : f32 to vector<8x8xf32>
    %238 = arith.mulf %236, %237 : vector<8x8xf32>
    %cst_111 = arith.constant dense<0xFF800000> : vector<8xf32>
    %239 = vector.multi_reduction <maximumf>, %238, %cst_111 [1] : vector<8x8xf32> to vector<8xf32>
    %240 = vector.shape_cast %239 : vector<8xf32> to vector<8x1xf32>
    %241 = vector.broadcast %240 : vector<8x1xf32> to vector<8x8xf32>
    %242 = arith.subf %238, %241 : vector<8x8xf32>
    %243 = math.exp %242 : vector<8x8xf32>
    %cst_112 = arith.constant dense<0.000000e+00> : vector<8xf32>
    %244 = vector.multi_reduction <add>, %243, %cst_112 [1] : vector<8x8xf32> to vector<8xf32>
    %245 = vector.shape_cast %244 : vector<8xf32> to vector<8x1xf32>
    %246 = tpu.reciprocal %245 {approx = true} : vector<8x1xf32> -> vector<8x1xf32>
    %247 = vector.broadcast %246 : vector<8x1xf32> to vector<8x8xf32>
    %248 = arith.mulf %243, %247 : vector<8x8xf32>
    %cst_113 = arith.constant dense<0.000000e+00> : vector<8x16xf32>
    %249 = tpu.matmul %248, %235, %cst_113 {dimension_numbers = #tpu.dot_dimension_numbers<[1], [0], [0], [1], [0, 0, 1, 1], [], []>} : vector<8x8xf32>, vector<8x16xf32>, vector<8x16xf32> -> vector<8x16xf32>
    %c0_114 = arith.constant 0 : index
    %c16_115 = arith.constant 16 : index
    %250 = vector.load %arg22[%c0_114, %c16_115] : memref<16x32xf32, #tpu.memory_space<vmem>>, vector<8x16xf32>
    tpu.vector_store %arg22[%c0_114, %c16_115], %249 {strides = array<i32>} : memref<16x32xf32, #tpu.memory_space<vmem>>, vector<8x16xf32>,
    %251 = vector.extract_strided_slice %212 {offsets = [8, 0], sizes = [8, 16], strides = [1, 1]} : vector<16x32xf32> to vector<8x16xf32>
    %252 = vector.extract_strided_slice %213 {offsets = [8, 0], sizes = [8, 16], strides = [1, 1]} : vector<16x32xf32> to vector<8x16xf32>
    %253 = vector.extract_strided_slice %214 {offsets = [8, 0], sizes = [8, 16], strides = [1, 1]} : vector<16x32xf32> to vector<8x16xf32>
    %cst_116 = arith.constant dense<0.000000e+00> : vector<8x8xf32>
    %254 = tpu.matmul %251, %252, %cst_116 {dimension_numbers = #tpu.dot_dimension_numbers<[1], [1], [0], [0], [0, 0, 1, 0], [], []>} : vector<8x16xf32>, vector<8x16xf32>, vector<8x8xf32> -> vector<8x8xf32>
    %cst_117 = arith.constant 2.500000e-01 : f32
    %255 = vector.broadcast %cst_117 : f32 to vector<8x8xf32>
    %256 = arith.mulf %254, %255 : vector<8x8xf32>
    %cst_118 = arith.constant dense<0xFF800000> : vector<8xf32>
    %257 = vector.multi_reduction <maximumf>, %256, %cst_118 [1] : vector<8x8xf32> to vector<8xf32>
    %258 = vector.shape_cast %257 : vector<8xf32> to vector<8x1xf32>
    %259 = vector.broadcast %258 : vector<8x1xf32> to vector<8x8xf32>
    %260 = arith.subf %256, %259 : vector<8x8xf32>
    %261 = math.exp %260 : vector<8x8xf32>
    %cst_119 = arith.constant dense<0.000000e+00> : vector<8xf32>
    %262 = vector.multi_reduction <add>, %261, %cst_119 [1] : vector<8x8xf32> to vector<8xf32>
    %263 = vector.shape_cast %262 : vector<8xf32> to vector<8x1xf32>
    %264 = tpu.reciprocal %263 {approx = true} : vector<8x1xf32> -> vector<8x1xf32>
    %265 = vector.broadcast %264 : vector<8x1xf32> to vector<8x8xf32>
    %266 = arith.mulf %261, %265 : vector<8x8xf32>
    %cst_120 = arith.constant dense<0.000000e+00> : vector<8x16xf32>
    %267 = tpu.matmul %266, %253, %cst_120 {dimension_numbers = #tpu.dot_dimension_numbers<[1], [0], [0], [1], [0, 0, 1, 1], [], []>} : vector<8x8xf32>, vector<8x16xf32>, vector<8x16xf32> -> vector<8x16xf32>
    %c8_121 = arith.constant 8 : index
    %c0_122 = arith.constant 0 : index
    %268 = vector.load %arg22[%c8_121, %c0_122] : memref<16x32xf32, #tpu.memory_space<vmem>>, vector<8x16xf32>
    tpu.vector_store %arg22[%c8_121, %c0_122], %267 {strides = array<i32>} : memref<16x32xf32, #tpu.memory_space<vmem>>, vector<8x16xf32>,
    %269 = vector.extract_strided_slice %212 {offsets = [8, 16], sizes = [8, 16], strides = [1, 1]} : vector<16x32xf32> to vector<8x16xf32>
    %270 = vector.extract_strided_slice %213 {offsets = [8, 16], sizes = [8, 16], strides = [1, 1]} : vector<16x32xf32> to vector<8x16xf32>
    %271 = vector.extract_strided_slice %214 {offsets = [8, 16], sizes = [8, 16], strides = [1, 1]} : vector<16x32xf32> to vector<8x16xf32>
    %cst_123 = arith.constant dense<0.000000e+00> : vector<8x8xf32>
    %272 = tpu.matmul %269, %270, %cst_123 {dimension_numbers = #tpu.dot_dimension_numbers<[1], [1], [0], [0], [0, 0, 1, 0], [], []>} : vector<8x16xf32>, vector<8x16xf32>, vector<8x8xf32> -> vector<8x8xf32>
    %cst_124 = arith.constant 2.500000e-01 : f32
    %273 = vector.broadcast %cst_124 : f32 to vector<8x8xf32>
    %274 = arith.mulf %272, %273 : vector<8x8xf32>
    %cst_125 = arith.constant dense<0xFF800000> : vector<8xf32>
    %275 = vector.multi_reduction <maximumf>, %274, %cst_125 [1] : vector<8x8xf32> to vector<8xf32>
    %276 = vector.shape_cast %275 : vector<8xf32> to vector<8x1xf32>
    %277 = vector.broadcast %276 : vector<8x1xf32> to vector<8x8xf32>
    %278 = arith.subf %274, %277 : vector<8x8xf32>
    %279 = math.exp %278 : vector<8x8xf32>
    %cst_126 = arith.constant dense<0.000000e+00> : vector<8xf32>
    %280 = vector.multi_reduction <add>, %279, %cst_126 [1] : vector<8x8xf32> to vector<8xf32>
    %281 = vector.shape_cast %280 : vector<8xf32> to vector<8x1xf32>
    %282 = tpu.reciprocal %281 {approx = true} : vector<8x1xf32> -> vector<8x1xf32>
    %283 = vector.broadcast %282 : vector<8x1xf32> to vector<8x8xf32>
    %284 = arith.mulf %279, %283 : vector<8x8xf32>
    %cst_127 = arith.constant dense<0.000000e+00> : vector<8x16xf32>
    %285 = tpu.matmul %284, %271, %cst_127 {dimension_numbers = #tpu.dot_dimension_numbers<[1], [0], [0], [1], [0, 0, 1, 1], [], []>} : vector<8x8xf32>, vector<8x16xf32>, vector<8x16xf32> -> vector<8x16xf32>
    %c8_128 = arith.constant 8 : index
    %c16_129 = arith.constant 16 : index
    %286 = vector.load %arg22[%c8_128, %c16_129] : memref<16x32xf32, #tpu.memory_space<vmem>>, vector<8x16xf32>
    tpu.vector_store %arg22[%c8_128, %c16_129], %285 {strides = array<i32>} : memref<16x32xf32, #tpu.memory_space<vmem>>, vector<8x16xf32>,
    %c0_130 = arith.constant 0 : index
    %c0_131 = arith.constant 0 : index
    %287 = vector.load %arg22[%c0_130, %c0_131] : memref<16x32xf32, #tpu.memory_space<vmem>>, vector<16x32xf32>
    %c1_132 = arith.constant 1 : index
    %c0_133 = arith.constant 0 : index
    %c0_134 = arith.constant 0 : index
    %288 = vector.load %arg7[%c1_132, %c0_133, %c0_134] : memref<2x32x32xf32, #tpu.memory_space<vmem>>, vector<1x32x32xf32>
    %289 = vector.shape_cast %288 : vector<1x32x32xf32> to vector<32x32xf32>
    %cst_135 = arith.constant dense<0.000000e+00> : vector<16x32xf32>
    %290 = tpu.matmul %287, %289, %cst_135 {dimension_numbers = #tpu.dot_dimension_numbers<[1], [0], [0], [1], [0, 0, 1, 1], [], []>} : vector<16x32xf32>, vector<32x32xf32>, vector<16x32xf32> -> vector<16x32xf32>
    %c1_136 = arith.constant 1 : index
    %c0_137 = arith.constant 0 : index
    %c0_138 = arith.constant 0 : index
    %291 = vector.load %arg8[%c1_136, %c0_137, %c0_138] : memref<2x1x32xf32, #tpu.memory_space<vmem>>, vector<1x1x32xf32>
    %292 = vector.shape_cast %291 : vector<1x1x32xf32> to vector<1x32xf32>
    %293 = vector.broadcast %292 : vector<1x32xf32> to vector<16x32xf32>
    %294 = arith.addf %290, %293 : vector<16x32xf32>
    %295 = arith.addf %294, %204 : vector<16x32xf32>
    %c1_139 = arith.constant 1 : index
    %c0_140 = arith.constant 0 : index
    %c0_141 = arith.constant 0 : index
    %296 = vector.load %arg9[%c1_139, %c0_140, %c0_141] : memref<2x1x32xf32, #tpu.memory_space<vmem>>, vector<1x1x32xf32>
    %297 = vector.shape_cast %296 : vector<1x1x32xf32> to vector<1x32xf32>
    %c1_142 = arith.constant 1 : index
    %c0_143 = arith.constant 0 : index
    %c0_144 = arith.constant 0 : index
    %298 = vector.load %arg10[%c1_142, %c0_143, %c0_144] : memref<2x1x32xf32, #tpu.memory_space<vmem>>, vector<1x1x32xf32>
    %299 = vector.shape_cast %298 : vector<1x1x32xf32> to vector<1x32xf32>
    %cst_145 = arith.constant dense<0.000000e+00> : vector<16xf32>
    %300 = vector.multi_reduction <add>, %295, %cst_145 [1] : vector<16x32xf32> to vector<16xf32>
    %301 = vector.shape_cast %300 : vector<16xf32> to vector<16x1xf32>
    %cst_146 = arith.constant 3.200000e+01 : f32
    %302 = vector.broadcast %cst_146 : f32 to vector<16x1xf32>
    %303 = arith.divf %301, %302 : vector<16x1xf32>
    %304 = vector.broadcast %303 : vector<16x1xf32> to vector<16x32xf32>
    %305 = arith.subf %295, %304 : vector<16x32xf32>
    %306 = arith.mulf %305, %305 : vector<16x32xf32>
    %cst_147 = arith.constant dense<0.000000e+00> : vector<16xf32>
    %307 = vector.multi_reduction <add>, %306, %cst_147 [1] : vector<16x32xf32> to vector<16xf32>
    %308 = vector.shape_cast %307 : vector<16xf32> to vector<16x1xf32>
    %cst_148 = arith.constant 3.200000e+01 : f32
    %309 = vector.broadcast %cst_148 : f32 to vector<16x1xf32>
    %310 = arith.divf %308, %309 : vector<16x1xf32>
    %311 = vector.broadcast %303 : vector<16x1xf32> to vector<16x32xf32>
    %312 = arith.subf %295, %311 : vector<16x32xf32>
    %cst_149 = arith.constant 9.99999996E-13 : f32
    %313 = vector.broadcast %cst_149 : f32 to vector<16x1xf32>
    %314 = arith.addf %310, %313 : vector<16x1xf32>
    %315 = math.rsqrt %314 : vector<16x1xf32>
    %316 = vector.broadcast %315 : vector<16x1xf32> to vector<16x32xf32>
    %317 = arith.mulf %312, %316 : vector<16x32xf32>
    %318 = vector.broadcast %297 : vector<1x32xf32> to vector<16x32xf32>
    %319 = arith.mulf %317, %318 : vector<16x32xf32>
    %320 = vector.broadcast %299 : vector<1x32xf32> to vector<16x32xf32>
    %321 = arith.addf %319, %320 : vector<16x32xf32>
    %c1_150 = arith.constant 1 : index
    %c0_151 = arith.constant 0 : index
    %c0_152 = arith.constant 0 : index
    %322 = vector.load %arg11[%c1_150, %c0_151, %c0_152] : memref<2x32x64xf32, #tpu.memory_space<vmem>>, vector<1x32x64xf32>
    %323 = vector.shape_cast %322 : vector<1x32x64xf32> to vector<32x64xf32>
    %cst_153 = arith.constant dense<0.000000e+00> : vector<16x64xf32>
    %324 = tpu.matmul %321, %323, %cst_153 {dimension_numbers = #tpu.dot_dimension_numbers<[1], [0], [0], [1], [0, 0, 1, 1], [], []>} : vector<16x32xf32>, vector<32x64xf32>, vector<16x64xf32> -> vector<16x64xf32>
    %c1_154 = arith.constant 1 : index
    %c0_155 = arith.constant 0 : index
    %c0_156 = arith.constant 0 : index
    %325 = vector.load %arg12[%c1_154, %c0_155, %c0_156] : memref<2x1x64xf32, #tpu.memory_space<vmem>>, vector<1x1x64xf32>
    %326 = vector.shape_cast %325 : vector<1x1x64xf32> to vector<1x64xf32>
    %327 = vector.broadcast %326 : vector<1x64xf32> to vector<16x64xf32>
    %328 = arith.addf %324, %327 : vector<16x64xf32>
    %329 = arith.mulf %328, %328 : vector<16x64xf32>
    %330 = arith.mulf %328, %329 : vector<16x64xf32>
    %cst_157 = arith.constant 4.471500e-02 : f32
    %331 = vector.broadcast %cst_157 : f32 to vector<16x64xf32>
    %332 = arith.mulf %331, %330 : vector<16x64xf32>
    %333 = arith.addf %328, %332 : vector<16x64xf32>
    %cst_158 = arith.constant 0.797884583 : f32
    %334 = vector.broadcast %cst_158 : f32 to vector<16x64xf32>
    %335 = arith.mulf %334, %333 : vector<16x64xf32>
    %336 = math.tanh %335 : vector<16x64xf32>
    %cst_159 = arith.constant 1.000000e+00 : f32
    %337 = vector.broadcast %cst_159 : f32 to vector<16x64xf32>
    %338 = arith.addf %337, %336 : vector<16x64xf32>
    %cst_160 = arith.constant 5.000000e-01 : f32
    %339 = vector.broadcast %cst_160 : f32 to vector<16x64xf32>
    %340 = arith.mulf %339, %338 : vector<16x64xf32>
    %341 = arith.mulf %328, %340 : vector<16x64xf32>
    %c1_161 = arith.constant 1 : index
    %c0_162 = arith.constant 0 : index
    %c0_163 = arith.constant 0 : index
    %342 = vector.load %arg13[%c1_161, %c0_162, %c0_163] : memref<2x64x32xf32, #tpu.memory_space<vmem>>, vector<1x64x32xf32>
    %343 = vector.shape_cast %342 : vector<1x64x32xf32> to vector<64x32xf32>
    %cst_164 = arith.constant dense<0.000000e+00> : vector<16x32xf32>
    %344 = tpu.matmul %341, %343, %cst_164 {dimension_numbers = #tpu.dot_dimension_numbers<[1], [0], [0], [1], [0, 0, 1, 1], [], []>} : vector<16x64xf32>, vector<64x32xf32>, vector<16x32xf32> -> vector<16x32xf32>
    %c1_165 = arith.constant 1 : index
    %c0_166 = arith.constant 0 : index
    %c0_167 = arith.constant 0 : index
    %345 = vector.load %arg14[%c1_165, %c0_166, %c0_167] : memref<2x1x32xf32, #tpu.memory_space<vmem>>, vector<1x1x32xf32>
    %346 = vector.shape_cast %345 : vector<1x1x32xf32> to vector<1x32xf32>
    %347 = vector.broadcast %346 : vector<1x32xf32> to vector<16x32xf32>
    %348 = arith.addf %344, %347 : vector<16x32xf32>
    %349 = arith.addf %348, %321 : vector<16x32xf32>
    %c1_168 = arith.constant 1 : index
    %c0_169 = arith.constant 0 : index
    %c0_170 = arith.constant 0 : index
    %350 = vector.load %arg15[%c1_168, %c0_169, %c0_170] : memref<2x1x32xf32, #tpu.memory_space<vmem>>, vector<1x1x32xf32>
    %351 = vector.shape_cast %350 : vector<1x1x32xf32> to vector<1x32xf32>
    %c1_171 = arith.constant 1 : index
    %c0_172 = arith.constant 0 : index
    %c0_173 = arith.constant 0 : index
    %352 = vector.load %arg16[%c1_171, %c0_172, %c0_173] : memref<2x1x32xf32, #tpu.memory_space<vmem>>, vector<1x1x32xf32>
    %353 = vector.shape_cast %352 : vector<1x1x32xf32> to vector<1x32xf32>
    %cst_174 = arith.constant dense<0.000000e+00> : vector<16xf32>
    %354 = vector.multi_reduction <add>, %349, %cst_174 [1] : vector<16x32xf32> to vector<16xf32>
    %355 = vector.shape_cast %354 : vector<16xf32> to vector<16x1xf32>
    %cst_175 = arith.constant 3.200000e+01 : f32
    %356 = vector.broadcast %cst_175 : f32 to vector<16x1xf32>
    %357 = arith.divf %355, %356 : vector<16x1xf32>
    %358 = vector.broadcast %357 : vector<16x1xf32> to vector<16x32xf32>
    %359 = arith.subf %349, %358 : vector<16x32xf32>
    %360 = arith.mulf %359, %359 : vector<16x32xf32>
    %cst_176 = arith.constant dense<0.000000e+00> : vector<16xf32>
    %361 = vector.multi_reduction <add>, %360, %cst_176 [1] : vector<16x32xf32> to vector<16xf32>
    %362 = vector.shape_cast %361 : vector<16xf32> to vector<16x1xf32>
    %cst_177 = arith.constant 3.200000e+01 : f32
    %363 = vector.broadcast %cst_177 : f32 to vector<16x1xf32>
    %364 = arith.divf %362, %363 : vector<16x1xf32>
    %365 = vector.broadcast %357 : vector<16x1xf32> to vector<16x32xf32>
    %366 = arith.subf %349, %365 : vector<16x32xf32>
    %cst_178 = arith.constant 9.99999996E-13 : f32
    %367 = vector.broadcast %cst_178 : f32 to vector<16x1xf32>
    %368 = arith.addf %364, %367 : vector<16x1xf32>
    %369 = math.rsqrt %368 : vector<16x1xf32>
    %370 = vector.broadcast %369 : vector<16x1xf32> to vector<16x32xf32>
    %371 = arith.mulf %366, %370 : vector<16x32xf32>
    %372 = vector.broadcast %351 : vector<1x32xf32> to vector<16x32xf32>
    %373 = arith.mulf %371, %372 : vector<16x32xf32>
    %374 = vector.broadcast %353 : vector<1x32xf32> to vector<16x32xf32>
    %375 = arith.addf %373, %374 : vector<16x32xf32>
    %376 = tpu.iota {dimensions = array<i32: 1>} : vector<2x16xi32>
    %377 = tpu.iota {dimensions = array<i32: 0>} : vector<2x16xi32>
    %c8_i32 = arith.constant 8 : i32
    %378 = vector.broadcast %c8_i32 : i32 to vector<2x16xi32>
    %379 = arith.muli %377, %378 : vector<2x16xi32>
    %380 = arith.cmpi eq, %376, %379 : vector<2x16xi32>
    %381 = arith.extui %380 : vector<2x16xi1> to vector<2x16xi32>
    %382 = arith.sitofp %381 : vector<2x16xi32> to vector<2x16xf32>
    %cst_179 = arith.constant dense<0.000000e+00> : vector<2x32xf32>
    %383 = tpu.matmul %382, %375, %cst_179 {dimension_numbers = #tpu.dot_dimension_numbers<[1], [0], [0], [1], [0, 0, 1, 1], [], []>} : vector<2x16xf32>, vector<16x32xf32>, vector<2x32xf32> -> vector<2x32xf32>
    %c0_180 = arith.constant 0 : index
    %c0_181 = arith.constant 0 : index
    %384 = vector.load %arg17[%c0_180, %c0_181] : memref<32x32xf32, #tpu.memory_space<vmem>>, vector<32x32xf32>
    %cst_182 = arith.constant dense<0.000000e+00> : vector<2x32xf32>
    %385 = tpu.matmul %383, %384, %cst_182 {dimension_numbers = #tpu.dot_dimension_numbers<[1], [0], [0], [1], [0, 0, 1, 1], [], []>} : vector<2x32xf32>, vector<32x32xf32>, vector<2x32xf32> -> vector<2x32xf32>
    %c0_183 = arith.constant 0 : index
    %c0_184 = arith.constant 0 : index
    %386 = vector.load %arg18[%c0_183, %c0_184] : memref<1x32xf32, #tpu.memory_space<vmem>>, vector<1x32xf32>
    %387 = vector.broadcast %386 : vector<1x32xf32> to vector<2x32xf32>
    %388 = arith.addf %385, %387 : vector<2x32xf32>
    %389 = math.tanh %388 : vector<2x32xf32>
    %c0_185 = arith.constant 0 : index
    %c0_186 = arith.constant 0 : index
    %390 = vector.load %arg19[%c0_185, %c0_186] : memref<32x1xf32, #tpu.memory_space<vmem>>, vector<32x1xf32>
    %cst_187 = arith.constant dense<0.000000e+00> : vector<2x1xf32>
    %391 = tpu.matmul %389, %390, %cst_187 {dimension_numbers = #tpu.dot_dimension_numbers<[1], [0], [0], [1], [0, 0, 1, 1], [], []>} : vector<2x32xf32>, vector<32x1xf32>, vector<2x1xf32> -> vector<2x1xf32>
    %c0_188 = arith.constant 0 : index
    %c0_189 = arith.constant 0 : index
    %392 = vector.load %arg20[%c0_188, %c0_189] : memref<1x1xf32, #tpu.memory_space<vmem>>, vector<1x1xf32>
    %393 = vector.broadcast %392 : vector<1x1xf32> to vector<2x1xf32>
    %394 = arith.addf %391, %393 : vector<2x1xf32>
    %395 = arith.negf %394 : vector<2x1xf32>
    %396 = math.exp %395 : vector<2x1xf32>
    %cst_190 = arith.constant 1.000000e+00 : f32
    %397 = vector.broadcast %cst_190 : f32 to vector<2x1xf32>
    %398 = arith.addf %397, %396 : vector<2x1xf32>
    %399 = arith.divf %397, %398 : vector<2x1xf32>
    %c0_191 = arith.constant 0 : index
    %c0_192 = arith.constant 0 : index
    %400 = vector.load %arg21[%c0_191, %c0_192] : memref<2x1xf32, #tpu.memory_space<vmem>>, vector<2x1xf32>
    tpu.vector_store %arg21[%c0_191, %c0_192], %399 {strides = array<i32>} : memref<2x1xf32, #tpu.memory_space<vmem>>, vector<2x1xf32>,
    return
  }
}

</mosaic_0001>

<llo_original>
// kernel: model_forward.1
$region0: #{model_forward.1}
  #allocation0 [shape = 'u32[]', space=smem, size = 0x4, offset = 0x4, fixed_abs, tag = 'smem constant byte address 0x4 - core index']
  #allocation1 [shape = 'u32[144,128]{1,0:T(1,128)}', space=vmem, size = 0x12000, scoped, tag = 'internal scratch']
  #allocation2 [shape = 'f32[16,32]{1,0:T(8,128)}', space=vmem, size = 0x2000, scoped, tag = 'scratch operand']
  #allocation3 [shape = 'f32[1,1]{1,0:T(1,128)S(1)}', space=vmem, size = 0x200, scoped, tag = 'scoped memory for model_forward.1']
  %s0 = inlined_call_operand.vmem [shape: s32[16,1], index: 0, kind: input, shape index: {}]
  %s1 = inlined_call_operand.vmem [shape: f32[128,32], index: 1, kind: input, shape index: {}]
  %s2 = inlined_call_operand.vmem [shape: f32[16,32], index: 2, kind: input, shape index: {}]
  %s3 = inlined_call_operand.vmem [shape: f32[1,32], index: 3, kind: input, shape index: {}]
  %s4 = inlined_call_operand.vmem [shape: f32[1,32], index: 4, kind: input, shape index: {}]
  %s5 = inlined_call_operand.vmem [shape: f32[2,32,96], index: 5, kind: input, shape index: {}]
  %s6 = inlined_call_operand.vmem [shape: f32[2,1,96], index: 6, kind: input, shape index: {}]
  %s7 = inlined_call_operand.vmem [shape: f32[2,32,32], index: 7, kind: input, shape index: {}]
  %s8 = inlined_call_operand.vmem [shape: f32[2,1,32], index: 8, kind: input, shape index: {}]
  %s9 = inlined_call_operand.vmem [shape: f32[2,1,32], index: 9, kind: input, shape index: {}]
  %s10 = inlined_call_operand.vmem [shape: f32[2,1,32], index: 10, kind: input, shape index: {}]
  %s11 = inlined_call_operand.vmem [shape: f32[2,32,64], index: 11, kind: input, shape index: {}]
  %s12 = inlined_call_operand.vmem [shape: f32[2,1,64], index: 12, kind: input, shape index: {}]
  %s13 = inlined_call_operand.vmem [shape: f32[2,64,32], index: 13, kind: input, shape index: {}]
  %s14 = inlined_call_operand.vmem [shape: f32[2,1,32], index: 14, kind: input, shape index: {}]
  %s15 = inlined_call_operand.vmem [shape: f32[2,1,32], index: 15, kind: input, shape index: {}]
  %s16 = inlined_call_operand.vmem [shape: f32[2,1,32], index: 16, kind: input, shape index: {}]
  %s17 = inlined_call_operand.vmem [shape: f32[32,32], index: 17, kind: input, shape index: {}]
  %s18 = inlined_call_operand.vmem [shape: f32[1,32], index: 18, kind: input, shape index: {}]
  %s19 = inlined_call_operand.vmem [shape: f32[32,1], index: 19, kind: input, shape index: {}]
  %s20 = inlined_call_operand.<no memory space> [shape: f32[1,1], index: 20, kind: input, shape index: {}]
  %s21 = inlined_call_operand.vmem [shape: f32[2,1], index: 21, kind: output, shape index: {}]
  %s22 = sld [smem:[#allocation0]]
  $region94: #{model_forward.1} parent=0
    _
  %s24 = ssub.s32 1, %s22
  %s25 = scalar_select 0, %s24, %s22
  %v26 = vstv %s20
  %27 = vst [vmem:[#allocation3] sm:$0x1] %v26
  // Predicated region
  $region2: #{model_forward.1} parent=0 // pred_check
    _
  $region3: #{model_forward.1} parent=0 // pred_check_branch
    %29 = sbr.rel (0) target = $region5
  $region4: #{model_forward.1} parent=0 // pred_region
    _
  $region5: #{model_forward.1} parent=0 // pred_fallthru
    _
  // Predicated region
  $region6: #{model_forward.1} parent=0 // pred_check
    _
  $region7: #{model_forward.1} parent=0 // pred_check_branch
    %31 = sbr.rel (0) target = $region9
  $region8: #{model_forward.1} parent=0 // pred_region
    _
  $region9: #{model_forward.1} parent=0 // pred_fallthru
    _
  // Predicated region
  $region10: #{model_forward.1} parent=0 // pred_check
    _
  $region11: #{model_forward.1} parent=0 // pred_check_branch
    %33 = sbr.rel (0) target = $region13
  $region12: #{model_forward.1} parent=0 // pred_region
    _
  $region13: #{model_forward.1} parent=0 // pred_fallthru
    _
  // Predicated region
  $region14: #{model_forward.1} parent=0 // pred_check
    _
  $region15: #{model_forward.1} parent=0 // pred_check_branch
    %35 = sbr.rel (0) target = $region17
  $region16: #{model_forward.1} parent=0 // pred_region
    _
  $region17: #{model_forward.1} parent=0 // pred_fallthru
    _
  // Predicated region
  $region18: #{model_forward.1} parent=0 // pred_check
    _
  $region19: #{model_forward.1} parent=0 // pred_check_branch
    %37 = sbr.rel (0) target = $region21
  $region20: #{model_forward.1} parent=0 // pred_region
    _
  $region21: #{model_forward.1} parent=0 // pred_fallthru
    _
  // Predicated region
  $region22: #{model_forward.1} parent=0 // pred_check
    _
  $region23: #{model_forward.1} parent=0 // pred_check_branch
    %39 = sbr.rel (0) target = $region25
  $region24: #{model_forward.1} parent=0 // pred_region
    _
  $region25: #{model_forward.1} parent=0 // pred_fallthru
    _
  // Predicated region
  $region26: #{model_forward.1} parent=0 // pred_check
    _
  $region27: #{model_forward.1} parent=0 // pred_check_branch
    %41 = sbr.rel (0) target = $region29
  $region28: #{model_forward.1} parent=0 // pred_region
    _
  $region29: #{model_forward.1} parent=0 // pred_fallthru
    _
  // Predicated region
  $region30: #{model_forward.1} parent=0 // pred_check
    _
  $region31: #{model_forward.1} parent=0 // pred_check_branch
    %43 = sbr.rel (0) target = $region33
  $region32: #{model_forward.1} parent=0 // pred_region
    _
  $region33: #{model_forward.1} parent=0 // pred_fallthru
    _
  // Predicated region
  $region34: #{model_forward.1} parent=0 // pred_check
    _
  $region35: #{model_forward.1} parent=0 // pred_check_branch
    %45 = sbr.rel (0) target = $region37
  $region36: #{model_forward.1} parent=0 // pred_region
    _
  $region37: #{model_forward.1} parent=0 // pred_fallthru
    _
  // Predicated region
  $region38: #{model_forward.1} parent=0 // pred_check
    _
  $region39: #{model_forward.1} parent=0 // pred_check_branch
    %47 = sbr.rel (0) target = $region41
  $region40: #{model_forward.1} parent=0 // pred_region
    _
  $region41: #{model_forward.1} parent=0 // pred_fallthru
    _
  // Predicated region
  $region42: #{model_forward.1} parent=0 // pred_check
    _
  $region43: #{model_forward.1} parent=0 // pred_check_branch
    %49 = sbr.rel (0) target = $region45
  $region44: #{model_forward.1} parent=0 // pred_region
    _
  $region45: #{model_forward.1} parent=0 // pred_fallthru
    _
  // Predicated region
  $region46: #{model_forward.1} parent=0 // pred_check
    _
  $region47: #{model_forward.1} parent=0 // pred_check_branch
    %51 = sbr.rel (0) target = $region49
  $region48: #{model_forward.1} parent=0 // pred_region
    _
  $region49: #{model_forward.1} parent=0 // pred_fallthru
    _
  // Predicated region
  $region50: #{model_forward.1} parent=0 // pred_check
    _
  $region51: #{model_forward.1} parent=0 // pred_check_branch
    %53 = sbr.rel (0) target = $region53
  $region52: #{model_forward.1} parent=0 // pred_region
    _
  $region53: #{model_forward.1} parent=0 // pred_fallthru
    _
  // Predicated region
  $region54: #{model_forward.1} parent=0 // pred_check
    _
  $region55: #{model_forward.1} parent=0 // pred_check_branch
    %55 = sbr.rel (0) target = $region57
  $region56: #{model_forward.1} parent=0 // pred_region
    _
  $region57: #{model_forward.1} parent=0 // pred_fallthru
    _
  // Predicated region
  $region58: #{model_forward.1} parent=0 // pred_check
    _
  $region59: #{model_forward.1} parent=0 // pred_check_branch
    %57 = sbr.rel (0) target = $region61
  $region60: #{model_forward.1} parent=0 // pred_region
    _
  $region61: #{model_forward.1} parent=0 // pred_fallthru
    _
  // Predicated region
  $region62: #{model_forward.1} parent=0 // pred_check
    _
  $region63: #{model_forward.1} parent=0 // pred_check_branch
    %59 = sbr.rel (0) target = $region65
  $region64: #{model_forward.1} parent=0 // pred_region
    _
  $region65: #{model_forward.1} parent=0 // pred_fallthru
    _
  // Predicated region
  $region66: #{model_forward.1} parent=0 // pred_check
    _
  $region67: #{model_forward.1} parent=0 // pred_check_branch
    %61 = sbr.rel (0) target = $region69
  $region68: #{model_forward.1} parent=0 // pred_region
    _
  $region69: #{model_forward.1} parent=0 // pred_fallthru
    _
  // Predicated region
  $region70: #{model_forward.1} parent=0 // pred_check
    _
  $region71: #{model_forward.1} parent=0 // pred_check_branch
    %63 = sbr.rel (0) target = $region73
  $region72: #{model_forward.1} parent=0 // pred_region
    _
  $region73: #{model_forward.1} parent=0 // pred_fallthru
    _
  // Predicated region
  $region74: #{model_forward.1} parent=0 // pred_check
    _
  $region75: #{model_forward.1} parent=0 // pred_check_branch
    %65 = sbr.rel (0) target = $region77
  $region76: #{model_forward.1} parent=0 // pred_region
    _
  $region77: #{model_forward.1} parent=0 // pred_fallthru
    _
  // Predicated region
  $region78: #{model_forward.1} parent=0 // pred_check
    _
  $region79: #{model_forward.1} parent=0 // pred_check_branch
    %67 = sbr.rel (0) target = $region81
  $region80: #{model_forward.1} parent=0 // pred_region
    _
  $region81: #{model_forward.1} parent=0 // pred_fallthru
    _
  // Predicated region
  $region82: #{model_forward.1} parent=0 // pred_check
    _
  $region83: #{model_forward.1} parent=0 // pred_check_branch
    %69 = sbr.rel (0) target = $region85
  $region84: #{model_forward.1} parent=0 // pred_region
    _
  $region85: #{model_forward.1} parent=0 // pred_fallthru
    _
  %v70 = vld [vmem:[%s0] sm:$0xff]
  %v71 = vld [vmem:[%s0 + $0x8] sm:$0xff]
  %v72 = vlaneseq
  %v73 = vand.u32 %v72, 127
  %74 = vset.pattern.permute.xlu0 0
  %75 = vperm.xlu0 %74, %v70
  %v76 = vpop.permute.xlu0 %75
  %77 = vset.pattern.permute.xlu0 0
  %78 = vperm.xlu0 %77, %v71
  %v79 = vpop.permute.xlu0 %78
  %vm80 = vcmp.eq.s32.totalorder %v73, %v76
  %vm81 = vcmp.eq.s32.totalorder %v73, %v79
  %v82 = vsel %vm80, 1, 0
  %v83 = vsel %vm81, 1, 0
  %v84 = vcvt.s32.f32 %v82
  %v85 = vcvt.s32.f32 %v83
  %v86 = vld [vmem:[%s1] sm:$0xff]
  %v87 = vld [vmem:[%s1 + $0x8] sm:$0xff]
  %v88 = vld [vmem:[%s1 + $0x10] sm:$0xff]
  %v89 = vld [vmem:[%s1 + $0x18] sm:$0xff]
  %v90 = vld [vmem:[%s1 + $0x20] sm:$0xff]
  %v91 = vld [vmem:[%s1 + $0x28] sm:$0xff]
  %v92 = vld [vmem:[%s1 + $0x30] sm:$0xff]
  %v93 = vld [vmem:[%s1 + $0x38] sm:$0xff]
  %v94 = vld [vmem:[%s1 + $0x40] sm:$0xff]
  %v95 = vld [vmem:[%s1 + $0x48] sm:$0xff]
  %v96 = vld [vmem:[%s1 + $0x50] sm:$0xff]
  %v97 = vld [vmem:[%s1 + $0x58] sm:$0xff]
  %v98 = vld [vmem:[%s1 + $0x60] sm:$0xff]
  %v99 = vld [vmem:[%s1 + $0x68] sm:$0xff]
  %v100 = vld [vmem:[%s1 + $0x70] sm:$0xff]
  %v101 = vld [vmem:[%s1 + $0x78] sm:$0xff]
  %v102 = vld [vmem:[%s2] sm:$0xff]
  %v103 = vld [vmem:[%s2 + $0x8] sm:$0xff]
  %104 = vmatprep.subr.mxu0 0.0
  %105 = vmatpush1.msra.mxu0 %v86
  %106 = vmatprep.subr.mxu0 0.0
  %107 = vmatpush1.msra.mxu0 %v87
  %108 = vmatprep.subr.mxu0 0.0
  %109 = vmatpush1.msra.mxu0 %v88
  %110 = vmatprep.subr.mxu0 0.0
  %111 = vmatpush1.msra.mxu0 %v89
  %112 = vmatprep.subr.mxu0 0.0
  %113 = vmatpush1.msra.mxu0 %v90
  %114 = vmatprep.subr.mxu0 0.0
  %115 = vmatpush1.msra.mxu0 %v91
  %116 = vmatprep.subr.mxu0 0.0
  %117 = vmatpush1.msra.mxu0 %v92
  %118 = vmatprep.subr.mxu0 0.0
  %119 = vmatpush1.msra.mxu0 %v93
  %120 = vmatprep.subr.mxu0 0.0
  %121 = vmatpush1.msra.mxu0 %v94
  %122 = vmatprep.subr.mxu0 0.0
  %123 = vmatpush1.msra.mxu0 %v95
  %124 = vmatprep.subr.mxu0 0.0
  %125 = vmatpush1.msra.mxu0 %v96
  %126 = vmatprep.subr.mxu0 0.0
  %127 = vmatpush1.msra.mxu0 %v97
  %128 = vmatprep.subr.mxu0 0.0
  %129 = vmatpush1.msra.mxu0 %v98
  %130 = vmatprep.subr.mxu0 0.0
  %131 = vmatpush1.msra.mxu0 %v99
  %132 = vmatprep.subr.mxu0 0.0
  %133 = vmatpush1.msra.mxu0 %v100
  %134 = vmatprep.subr.mxu0 0.0
  %135 = vmatpush1.msra.mxu0 %v101
  %136 = vmatprep.subr.mxu0 0.0
  %137 = vmatpush1.msra.mxu0 0.0
  %138 = vmatprep.subr.mxu0 0.0
  %139 = vmatpush1.msra.mxu0 0.0
  %140 = vmatprep.subr.mxu0 0.0
  %141 = vmatpush1.msra.mxu0 0.0
  %142 = vmatprep.subr.mxu0 0.0
  %143 = vmatpush1.msra.mxu0 0.0
  %144 = vmatprep.subr.mxu0 0.0
  %145 = vmatpush1.msra.mxu0 0.0
  %146 = vmatprep.subr.mxu0 0.0
  %147 = vmatpush1.msra.mxu0 0.0
  %148 = vmatprep.subr.mxu0 0.0
  %149 = vmatpush1.msra.mxu0 0.0
  %150 = vmatprep.subr.mxu0 0.0
  %151 = vmatpush1.msra.mxu0 0.0
  %152 = vmatprep.subr.mxu0 0.0
  %153 = vmatpush1.msra.mxu0 0.0
  %154 = vmatprep.subr.mxu0 0.0
  %155 = vmatpush1.msra.mxu0 0.0
  %156 = vmatprep.subr.mxu0 0.0
  %157 = vmatpush1.msra.mxu0 0.0
  %158 = vmatprep.subr.mxu0 0.0
  %159 = vmatpush1.msra.mxu0 0.0
  %160 = vmatprep.subr.mxu0 0.0
  %161 = vmatpush1.msra.mxu0 0.0
  %162 = vmatprep.subr.mxu0 0.0
  %163 = vmatpush1.msra.mxu0 0.0
  %164 = vmatprep.subr.mxu0 0.0
  %165 = vmatpush1.msra.mxu0 0.0
  %166 = vmatprep.subr.mxu0 0.0
  %167 = vmatpush1.msra.mxu0 0.0
  %168 = vmatprep.mubr.f32.mxu0 0.0
  %169 = vmatmul.mubr.f32.gmra.mrb[0].mxu0 %v84
  %v170 = vpop.f32.mrb[0].mxu0
  %v171 = vadd.f32 %v102, %v170
  %v172 = vpop.f32.mrb[0].mxu0
  %173 = vmatprep.mubr.f32.mxu0 0.0
  %174 = vmatmul.mubr.f32.gmra.mrb[0].mxu0 %v85
  %v175 = vpop.f32.mrb[0].mxu0
  %v176 = vadd.f32 %v103, %v175
  %v177 = vpop.f32.mrb[0].mxu0
  %178 = vdwg.mxu0
  %v179 = vld [vmem:[%s3] sm:$0x1]
  %v180 = vld [vmem:[%s4] sm:$0x1]
  %vm181 = vcmask 261120
  %v182 = vsel %vm181, %v171, 0.0
  %183 = vadd.xlane.f32.xlu0 %v182
  %v184 = vpop.xlane.xlu0 %183
  %v185 = vsel %vm181, %v176, 0.0
  %186 = vadd.xlane.f32.xlu0 %v185
  %v187 = vpop.xlane.xlu0 %186
  %v188 = vrcp.pop 32.0
  %v189 = vmul.f32 %v184, %v188
  %v190 = vmul.f32 %v187, %v188
  %v191 = vsub.f32 %v171, %v189
  %v192 = vsub.f32 %v176, %v190
  %v193 = vmul.f32 %v191, %v191
  %v194 = vmul.f32 %v192, %v192
  %v195 = vsel %vm181, %v193, 0.0
  %196 = vadd.xlane.f32.xlu0 %v195
  %v197 = vpop.xlane.xlu0 %196
  %v198 = vsel %vm181, %v194, 0.0
  %199 = vadd.xlane.f32.xlu0 %v198
  %v200 = vpop.xlane.xlu0 %199
  %v201 = vmul.f32 %v197, %v188
  %v202 = vmul.f32 %v200, %v188
  %v203 = vadd.f32 %v201, 1e-12
  %v204 = vadd.f32 %v202, 1e-12
  %v205 = vrsqrt.pop %v203
  %v206 = vrsqrt.pop %v204
  %v207 = vmul.f32 %v191, %v205
  %v208 = vmul.f32 %v192, %v206
  %v210 = vlaneseq
  %v211 = vshrl.u32 %v210, 7
  %v212 = vsub.s32 0, %v211
  %v213 = vrot.slane %v179, %v212
  %v215 = vmul.f32 %v207, %v213
  %v216 = vmul.f32 %v208, %v213
  %v218 = vlaneseq
  %v219 = vshrl.u32 %v218, 7
  %v220 = vsub.s32 0, %v219
  %v221 = vrot.slane %v180, %v220
  %v223 = vadd.f32 %v215, %v221
  %v224 = vadd.f32 %v216, %v221
  %v225 = vld [vmem:[%s5] sm:$0xff]
  %v226 = vld [vmem:[%s5 + $0x8] sm:$0xff]
  %v227 = vld [vmem:[%s5 + $0x10] sm:$0xff]
  %v228 = vld [vmem:[%s5 + $0x18] sm:$0xff]
  %v229 = vld [vmem:[%s6] sm:$0x1]
  %v231 = vlaneseq
  %v232 = vshrl.u32 %v231, 7
  %v233 = vsub.s32 0, %v232
  %v234 = vrot.slane %v229, %v233
  %v237 = vsel %vm181, %v223, 0
  %v240 = vsel %vm181, %v224, 0
  %242 = vmatprep.subr.mxu0 0.0
  %243 = vmatpush1.msra.mxu0 %v225
  %244 = vmatprep.subr.mxu0 0.0
  %245 = vmatpush1.msra.mxu0 %v226
  %246 = vmatprep.subr.mxu0 0.0
  %247 = vmatpush1.msra.mxu0 %v227
  %248 = vmatprep.subr.mxu0 0.0
  %249 = vmatpush1.msra.mxu0 %v228
  %250 = vmatprep.subr.mxu0 0.0
  %251 = vmatpush1.msra.mxu0 0.0
  %252 = vmatprep.subr.mxu0 0.0
  %253 = vmatpush1.msra.mxu0 0.0
  %254 = vmatprep.subr.mxu0 0.0
  %255 = vmatpush1.msra.mxu0 0.0
  %256 = vmatprep.subr.mxu0 0.0
  %257 = vmatpush1.msra.mxu0 0.0
  %258 = vmatprep.subr.mxu0 0.0
  %259 = vmatpush1.msra.mxu0 0.0
  %260 = vmatprep.subr.mxu0 0.0
  %261 = vmatpush1.msra.mxu0 0.0
  %262 = vmatprep.subr.mxu0 0.0
  %263 = vmatpush1.msra.mxu0 0.0
  %264 = vmatprep.subr.mxu0 0.0
  %265 = vmatpush1.msra.mxu0 0.0
  %266 = vmatprep.subr.mxu0 0.0
  %267 = vmatpush1.msra.mxu0 0.0
  %268 = vmatprep.subr.mxu0 0.0
  %269 = vmatpush1.msra.mxu0 0.0
  %270 = vmatprep.subr.mxu0 0.0
  %271 = vmatpush1.msra.mxu0 0.0
  %272 = vmatprep.subr.mxu0 0.0
  %273 = vmatpush1.msra.mxu0 0.0
  %274 = vmatprep.subr.mxu0 0.0
  %275 = vmatpush1.msra.mxu0 0.0
  %276 = vmatprep.subr.mxu0 0.0
  %277 = vmatpush1.msra.mxu0 0.0
  %278 = vmatprep.subr.mxu0 0.0
  %279 = vmatpush1.msra.mxu0 0.0
  %280 = vmatprep.subr.mxu0 0.0
  %281 = vmatpush1.msra.mxu0 0.0
  %282 = vmatprep.subr.mxu0 0.0
  %283 = vmatpush1.msra.mxu0 0.0
  %284 = vmatprep.subr.mxu0 0.0
  %285 = vmatpush1.msra.mxu0 0.0
  %286 = vmatprep.subr.mxu0 0.0
  %287 = vmatpush1.msra.mxu0 0.0
  %288 = vmatprep.subr.mxu0 0.0
  %289 = vmatpush1.msra.mxu0 0.0
  %290 = vmatprep.subr.mxu0 0.0
  %291 = vmatpush1.msra.mxu0 0.0
  %292 = vmatprep.subr.mxu0 0.0
  %293 = vmatpush1.msra.mxu0 0.0
  %294 = vmatprep.subr.mxu0 0.0
  %295 = vmatpush1.msra.mxu0 0.0
  %296 = vmatprep.subr.mxu0 0.0
  %297 = vmatpush1.msra.mxu0 0.0
  %298 = vmatprep.subr.mxu0 0.0
  %299 = vmatpush1.msra.mxu0 0.0
  %300 = vmatprep.subr.mxu0 0.0
  %301 = vmatpush1.msra.mxu0 0.0
  %302 = vmatprep.subr.mxu0 0.0
  %303 = vmatpush1.msra.mxu0 0.0
  %304 = vmatprep.subr.mxu0 0.0
  %305 = vmatpush1.msra.mxu0 0.0
  %306 = vmatprep.mubr.f32.mxu0 0.0
  %307 = vmatmul.mubr.f32.gmra.mrb[0].mxu0 %v237
  %v308 = vpop.f32.mrb[0].mxu0
  %v309 = vadd.f32 %v234, %v308
  %v310 = vpop.f32.mrb[0].mxu0
  %311 = vmatprep.mubr.f32.mxu0 0.0
  %312 = vmatmul.mubr.f32.gmra.mrb[0].mxu0 %v240
  %v313 = vpop.f32.mrb[0].mxu0
  %v314 = vadd.f32 %v234, %v313
  %v315 = vpop.f32.mrb[0].mxu0
  %316 = vdwg.mxu0
  %318 = vrot.lane.b32.xlu0 %v309, 96
  %v319 = vpop.permute.xlu0 %318
  %vm320 = vcmask 130048
  %v321 = vsel %vm320, %v309, 0
  %v323 = vsel %vm320, %v319, 0
  %325 = vmatprep.subr.mxu0 0.0
  %326 = vmatpush1.xpose.msra.mxu0 %v323
  %327 = vmatprep.subr.mxu0 0.0
  %328 = vmatpush1.xpose.msra.mxu0 0.0
  %329 = vmatprep.subr.mxu0 0.0
  %330 = vmatpush1.xpose.msra.mxu0 0.0
  %331 = vmatprep.subr.mxu0 0.0
  %332 = vmatpush1.xpose.msra.mxu0 0.0
  %333 = vmatprep.subr.mxu0 0.0
  %334 = vmatpush1.xpose.msra.mxu0 0.0
  %335 = vmatprep.subr.mxu0 0.0
  %336 = vmatpush1.xpose.msra.mxu0 0.0
  %337 = vmatprep.subr.mxu0 0.0
  %338 = vmatpush1.xpose.msra.mxu0 0.0
  %339 = vmatprep.subr.mxu0 0.0
  %340 = vmatpush1.xpose.msra.mxu0 0.0
  %341 = vmatprep.subr.mxu0 0.0
  %342 = vmatpush1.xpose.msra.mxu0 0.0
  %343 = vmatprep.subr.mxu0 0.0
  %344 = vmatpush1.xpose.msra.mxu0 0.0
  %345 = vmatprep.subr.mxu0 0.0
  %346 = vmatpush1.xpose.msra.mxu0 0.0
  %347 = vmatprep.subr.mxu0 0.0
  %348 = vmatpush1.xpose.msra.mxu0 0.0
  %349 = vmatprep.subr.mxu0 0.0
  %350 = vmatpush1.xpose.msra.mxu0 0.0
  %351 = vmatprep.subr.mxu0 0.0
  %352 = vmatpush1.xpose.msra.mxu0 0.0
  %353 = vmatprep.subr.mxu0 0.0
  %354 = vmatpush1.xpose.msra.mxu0 0.0
  %355 = vmatprep.subr.mxu0 0.0
  %356 = vmatpush1.xpose.msra.mxu0 0.0
  %357 = vmatprep.subr.mxu0 0.0
  %358 = vmatpush1.xpose.msra.mxu0 0.0
  %359 = vmatprep.subr.mxu0 0.0
  %360 = vmatpush1.xpose.msra.mxu0 0.0
  %361 = vmatprep.subr.mxu0 0.0
  %362 = vmatpush1.xpose.msra.mxu0 0.0
  %363 = vmatprep.subr.mxu0 0.0
  %364 = vmatpush1.xpose.msra.mxu0 0.0
  %365 = vmatprep.subr.mxu0 0.0
  %366 = vmatpush1.xpose.msra.mxu0 0.0
  %367 = vmatprep.subr.mxu0 0.0
  %368 = vmatpush1.xpose.msra.mxu0 0.0
  %369 = vmatprep.subr.mxu0 0.0
  %370 = vmatpush1.xpose.msra.mxu0 0.0
  %371 = vmatprep.subr.mxu0 0.0
  %372 = vmatpush1.xpose.msra.mxu0 0.0
  %373 = vmatprep.subr.mxu0 0.0
  %374 = vmatpush1.xpose.msra.mxu0 0.0
  %375 = vmatprep.subr.mxu0 0.0
  %376 = vmatpush1.xpose.msra.mxu0 0.0
  %377 = vmatprep.subr.mxu0 0.0
  %378 = vmatpush1.xpose.msra.mxu0 0.0
  %379 = vmatprep.subr.mxu0 0.0
  %380 = vmatpush1.xpose.msra.mxu0 0.0
  %381 = vmatprep.subr.mxu0 0.0
  %382 = vmatpush1.xpose.msra.mxu0 0.0
  %383 = vmatprep.subr.mxu0 0.0
  %384 = vmatpush1.xpose.msra.mxu0 0.0
  %385 = vmatprep.subr.mxu0 0.0
  %386 = vmatpush1.xpose.msra.mxu0 0.0
  %387 = vmatprep.subr.mxu0 0.0
  %388 = vmatpush1.xpose.msra.mxu0 0.0
  %389 = vmatprep.mubr.f32.mxu0 0.0
  %390 = vmatmul.mubr.f32.gmra.mrb[0].mxu0 %v321
  %v391 = vpop.f32.mrb[0].mxu0
  %v392 = vadd.f32 0.0, %v391
  %v393 = vpop.f32.mrb[0].mxu0
  %394 = vdwg.mxu0
  %v395 = vmul.f32 %v392, 0.25
  %vm396 = vcmask 64512
  %v397 = vsel %vm396, %v395, -inf
  %398 = vmax.xlane.f32.xlu0 %v397
  %v399 = vpop.xlane.xlu0 %398
  %v400 = vsub.f32 %v395, %v399
  %v401 = vmul.f32 %v400, 1.442695
  %v402 = vpow.pop %v401
  %v403 = vsel %vm396, %v402, 0.0
  %404 = vadd.xlane.f32.xlu0 %v403
  %v405 = vpop.xlane.xlu0 %404
  %v406 = vrcp.pop %v405
  %v407 = vmul.f32 %v402, %v406
  %408 = vrot.lane.b32.xlu0 %v309, 64
  %v409 = vpop.permute.xlu0 %408
  %v412 = vsel %vm396, %v407, 0
  %414 = vmatprep.subr.mxu0 0.0
  %415 = vmatpush1.msra.mxu0 %v409
  %416 = vmatprep.subr.mxu0 0.0
  %417 = vmatpush1.msra.mxu0 0.0
  %418 = vmatprep.subr.mxu0 0.0
  %419 = vmatpush1.msra.mxu0 0.0
  %420 = vmatprep.subr.mxu0 0.0
  %421 = vmatpush1.msra.mxu0 0.0
  %422 = vmatprep.subr.mxu0 0.0
  %423 = vmatpush1.msra.mxu0 0.0
  %424 = vmatprep.subr.mxu0 0.0
  %425 = vmatpush1.msra.mxu0 0.0
  %426 = vmatprep.subr.mxu0 0.0
  %427 = vmatpush1.msra.mxu0 0.0
  %428 = vmatprep.subr.mxu0 0.0
  %429 = vmatpush1.msra.mxu0 0.0
  %430 = vmatprep.subr.mxu0 0.0
  %431 = vmatpush1.msra.mxu0 0.0
  %432 = vmatprep.subr.mxu0 0.0
  %433 = vmatpush1.msra.mxu0 0.0
  %434 = vmatprep.subr.mxu0 0.0
  %435 = vmatpush1.msra.mxu0 0.0
  %436 = vmatprep.subr.mxu0 0.0
  %437 = vmatpush1.msra.mxu0 0.0
  %438 = vmatprep.subr.mxu0 0.0
  %439 = vmatpush1.msra.mxu0 0.0
  %440 = vmatprep.subr.mxu0 0.0
  %441 = vmatpush1.msra.mxu0 0.0
  %442 = vmatprep.subr.mxu0 0.0
  %443 = vmatpush1.msra.mxu0 0.0
  %444 = vmatprep.subr.mxu0 0.0
  %445 = vmatpush1.msra.mxu0 0.0
  %446 = vmatprep.subr.mxu0 0.0
  %447 = vmatpush1.msra.mxu0 0.0
  %448 = vmatprep.subr.mxu0 0.0
  %449 = vmatpush1.msra.mxu0 0.0
  %450 = vmatprep.subr.mxu0 0.0
  %451 = vmatpush1.msra.mxu0 0.0
  %452 = vmatprep.subr.mxu0 0.0
  %453 = vmatpush1.msra.mxu0 0.0
  %454 = vmatprep.subr.mxu0 0.0
  %455 = vmatpush1.msra.mxu0 0.0
  %456 = vmatprep.subr.mxu0 0.0
  %457 = vmatpush1.msra.mxu0 0.0
  %458 = vmatprep.subr.mxu0 0.0
  %459 = vmatpush1.msra.mxu0 0.0
  %460 = vmatprep.subr.mxu0 0.0
  %461 = vmatpush1.msra.mxu0 0.0
  %462 = vmatprep.subr.mxu0 0.0
  %463 = vmatpush1.msra.mxu0 0.0
  %464 = vmatprep.subr.mxu0 0.0
  %465 = vmatpush1.msra.mxu0 0.0
  %466 = vmatprep.subr.mxu0 0.0
  %467 = vmatpush1.msra.mxu0 0.0
  %468 = vmatprep.subr.mxu0 0.0
  %469 = vmatpush1.msra.mxu0 0.0
  %470 = vmatprep.subr.mxu0 0.0
  %471 = vmatpush1.msra.mxu0 0.0
  %472 = vmatprep.subr.mxu0 0.0
  %473 = vmatpush1.msra.mxu0 0.0
  %474 = vmatprep.subr.mxu0 0.0
  %475 = vmatpush1.msra.mxu0 0.0
  %476 = vmatprep.subr.mxu0 0.0
  %477 = vmatpush1.msra.mxu0 0.0
  %478 = vmatprep.mubr.f32.mxu0 0.0
  %479 = vmatmul.mubr.f32.gmra.mrb[0].mxu0 %v412
  %v480 = vpop.f32.mrb[0].mxu0
  %v481 = vadd.f32 0.0, %v480
  %v482 = vpop.f32.mrb[0].mxu0
  %483 = vdwg.mxu0
  %484 = vst.msk [vmem:[#allocation2] sm:$0xff] %vm320, %v481
  %485 = vrot.lane.b32.xlu0 %v309, 112
  %v486 = vpop.permute.xlu0 %485
  %487 = vrot.lane.b32.xlu0 %v309, 80
  %v488 = vpop.permute.xlu0 %487
  %v489 = vsel %vm320, %v486, 0
  %v491 = vsel %vm320, %v488, 0
  %493 = vmatprep.subr.mxu0 0.0
  %494 = vmatpush1.xpose.msra.mxu0 %v491
  %495 = vmatprep.subr.mxu0 0.0
  %496 = vmatpush1.xpose.msra.mxu0 0.0
  %497 = vmatprep.subr.mxu0 0.0
  %498 = vmatpush1.xpose.msra.mxu0 0.0
  %499 = vmatprep.subr.mxu0 0.0
  %500 = vmatpush1.xpose.msra.mxu0 0.0
  %501 = vmatprep.subr.mxu0 0.0
  %502 = vmatpush1.xpose.msra.mxu0 0.0
  %503 = vmatprep.subr.mxu0 0.0
  %504 = vmatpush1.xpose.msra.mxu0 0.0
  %505 = vmatprep.subr.mxu0 0.0
  %506 = vmatpush1.xpose.msra.mxu0 0.0
  %507 = vmatprep.subr.mxu0 0.0
  %508 = vmatpush1.xpose.msra.mxu0 0.0
  %509 = vmatprep.subr.mxu0 0.0
  %510 = vmatpush1.xpose.msra.mxu0 0.0
  %511 = vmatprep.subr.mxu0 0.0
  %512 = vmatpush1.xpose.msra.mxu0 0.0
  %513 = vmatprep.subr.mxu0 0.0
  %514 = vmatpush1.xpose.msra.mxu0 0.0
  %515 = vmatprep.subr.mxu0 0.0
  %516 = vmatpush1.xpose.msra.mxu0 0.0
  %517 = vmatprep.subr.mxu0 0.0
  %518 = vmatpush1.xpose.msra.mxu0 0.0
  %519 = vmatprep.subr.mxu0 0.0
  %520 = vmatpush1.xpose.msra.mxu0 0.0
  %521 = vmatprep.subr.mxu0 0.0
  %522 = vmatpush1.xpose.msra.mxu0 0.0
  %523 = vmatprep.subr.mxu0 0.0
  %524 = vmatpush1.xpose.msra.mxu0 0.0
  %525 = vmatprep.subr.mxu0 0.0
  %526 = vmatpush1.xpose.msra.mxu0 0.0
  %527 = vmatprep.subr.mxu0 0.0
  %528 = vmatpush1.xpose.msra.mxu0 0.0
  %529 = vmatprep.subr.mxu0 0.0
  %530 = vmatpush1.xpose.msra.mxu0 0.0
  %531 = vmatprep.subr.mxu0 0.0
  %532 = vmatpush1.xpose.msra.mxu0 0.0
  %533 = vmatprep.subr.mxu0 0.0
  %534 = vmatpush1.xpose.msra.mxu0 0.0
  %535 = vmatprep.subr.mxu0 0.0
  %536 = vmatpush1.xpose.msra.mxu0 0.0
  %537 = vmatprep.subr.mxu0 0.0
  %538 = vmatpush1.xpose.msra.mxu0 0.0
  %539 = vmatprep.subr.mxu0 0.0
  %540 = vmatpush1.xpose.msra.mxu0 0.0
  %541 = vmatprep.subr.mxu0 0.0
  %542 = vmatpush1.xpose.msra.mxu0 0.0
  %543 = vmatprep.subr.mxu0 0.0
  %544 = vmatpush1.xpose.msra.mxu0 0.0
  %545 = vmatprep.subr.mxu0 0.0
  %546 = vmatpush1.xpose.msra.mxu0 0.0
  %547 = vmatprep.subr.mxu0 0.0
  %548 = vmatpush1.xpose.msra.mxu0 0.0
  %549 = vmatprep.subr.mxu0 0.0
  %550 = vmatpush1.xpose.msra.mxu0 0.0
  %551 = vmatprep.subr.mxu0 0.0
  %552 = vmatpush1.xpose.msra.mxu0 0.0
  %553 = vmatprep.subr.mxu0 0.0
  %554 = vmatpush1.xpose.msra.mxu0 0.0
  %555 = vmatprep.subr.mxu0 0.0
  %556 = vmatpush1.xpose.msra.mxu0 0.0
  %557 = vmatprep.mubr.f32.mxu0 0.0
  %558 = vmatmul.mubr.f32.gmra.mrb[0].mxu0 %v489
  %v559 = vpop.f32.mrb[0].mxu0
  %v560 = vadd.f32 0.0, %v559
  %v561 = vpop.f32.mrb[0].mxu0
  %562 = vdwg.mxu0
  %v563 = vmul.f32 %v560, 0.25
  %v564 = vsel %vm396, %v563, -inf
  %565 = vmax.xlane.f32.xlu0 %v564
  %v566 = vpop.xlane.xlu0 %565
  %v567 = vsub.f32 %v563, %v566
  %v568 = vmul.f32 %v567, 1.442695
  %v569 = vpow.pop %v568
  %v570 = vsel %vm396, %v569, 0.0
  %571 = vadd.xlane.f32.xlu0 %v570
  %v572 = vpop.xlane.xlu0 %571
  %v573 = vrcp.pop %v572
  %v574 = vmul.f32 %v569, %v573
  %575 = vrot.lane.b32.xlu0 %v309, 48
  %v576 = vpop.permute.xlu0 %575
  %v579 = vsel %vm396, %v574, 0
  %581 = vmatprep.subr.mxu0 0.0
  %582 = vmatpush1.msra.mxu0 %v576
  %583 = vmatprep.subr.mxu0 0.0
  %584 = vmatpush1.msra.mxu0 0.0
  %585 = vmatprep.subr.mxu0 0.0
  %586 = vmatpush1.msra.mxu0 0.0
  %587 = vmatprep.subr.mxu0 0.0
  %588 = vmatpush1.msra.mxu0 0.0
  %589 = vmatprep.subr.mxu0 0.0
  %590 = vmatpush1.msra.mxu0 0.0
  %591 = vmatprep.subr.mxu0 0.0
  %592 = vmatpush1.msra.mxu0 0.0
  %593 = vmatprep.subr.mxu0 0.0
  %594 = vmatpush1.msra.mxu0 0.0
  %595 = vmatprep.subr.mxu0 0.0
  %596 = vmatpush1.msra.mxu0 0.0
  %597 = vmatprep.subr.mxu0 0.0
  %598 = vmatpush1.msra.mxu0 0.0
  %599 = vmatprep.subr.mxu0 0.0
  %600 = vmatpush1.msra.mxu0 0.0
  %601 = vmatprep.subr.mxu0 0.0
  %602 = vmatpush1.msra.mxu0 0.0
  %603 = vmatprep.subr.mxu0 0.0
  %604 = vmatpush1.msra.mxu0 0.0
  %605 = vmatprep.subr.mxu0 0.0
  %606 = vmatpush1.msra.mxu0 0.0
  %607 = vmatprep.subr.mxu0 0.0
  %608 = vmatpush1.msra.mxu0 0.0
  %609 = vmatprep.subr.mxu0 0.0
  %610 = vmatpush1.msra.mxu0 0.0
  %611 = vmatprep.subr.mxu0 0.0
  %612 = vmatpush1.msra.mxu0 0.0
  %613 = vmatprep.subr.mxu0 0.0
  %614 = vmatpush1.msra.mxu0 0.0
  %615 = vmatprep.subr.mxu0 0.0
  %616 = vmatpush1.msra.mxu0 0.0
  %617 = vmatprep.subr.mxu0 0.0
  %618 = vmatpush1.msra.mxu0 0.0
  %619 = vmatprep.subr.mxu0 0.0
  %620 = vmatpush1.msra.mxu0 0.0
  %621 = vmatprep.subr.mxu0 0.0
  %622 = vmatpush1.msra.mxu0 0.0
  %623 = vmatprep.subr.mxu0 0.0
  %624 = vmatpush1.msra.mxu0 0.0
  %625 = vmatprep.subr.mxu0 0.0
  %626 = vmatpush1.msra.mxu0 0.0
  %627 = vmatprep.subr.mxu0 0.0
  %628 = vmatpush1.msra.mxu0 0.0
  %629 = vmatprep.subr.mxu0 0.0
  %630 = vmatpush1.msra.mxu0 0.0
  %631 = vmatprep.subr.mxu0 0.0
  %632 = vmatpush1.msra.mxu0 0.0
  %633 = vmatprep.subr.mxu0 0.0
  %634 = vmatpush1.msra.mxu0 0.0
  %635 = vmatprep.subr.mxu0 0.0
  %636 = vmatpush1.msra.mxu0 0.0
  %637 = vmatprep.subr.mxu0 0.0
  %638 = vmatpush1.msra.mxu0 0.0
  %639 = vmatprep.subr.mxu0 0.0
  %640 = vmatpush1.msra.mxu0 0.0
  %641 = vmatprep.subr.mxu0 0.0
  %642 = vmatpush1.msra.mxu0 0.0
  %643 = vmatprep.subr.mxu0 0.0
  %644 = vmatpush1.msra.mxu0 0.0
  %645 = vmatprep.mubr.f32.mxu0 0.0
  %646 = vmatmul.mubr.f32.gmra.mrb[0].mxu0 %v579
  %v647 = vpop.f32.mrb[0].mxu0
  %v648 = vadd.f32 0.0, %v647
  %v649 = vpop.f32.mrb[0].mxu0
  %650 = vdwg.mxu0
  %652 = vrot.lane.b32.xlu0 %v648, 16
  %v653 = vpop.permute.xlu0 %652
  %vm655 = vcmask 261248
  %656 = vst.msk [vmem:[#allocation2] sm:$0xff] %vm655, %v653
  %658 = vrot.lane.b32.xlu0 %v314, 96
  %v659 = vpop.permute.xlu0 %658
  %v660 = vsel %vm320, %v314, 0
  %v662 = vsel %vm320, %v659, 0
  %664 = vmatprep.subr.mxu0 0.0
  %665 = vmatpush1.xpose.msra.mxu0 %v662
  %666 = vmatprep.subr.mxu0 0.0
  %667 = vmatpush1.xpose.msra.mxu0 0.0
  %668 = vmatprep.subr.mxu0 0.0
  %669 = vmatpush1.xpose.msra.mxu0 0.0
  %670 = vmatprep.subr.mxu0 0.0
  %671 = vmatpush1.xpose.msra.mxu0 0.0
  %672 = vmatprep.subr.mxu0 0.0
  %673 = vmatpush1.xpose.msra.mxu0 0.0
  %674 = vmatprep.subr.mxu0 0.0
  %675 = vmatpush1.xpose.msra.mxu0 0.0
  %676 = vmatprep.subr.mxu0 0.0
  %677 = vmatpush1.xpose.msra.mxu0 0.0
  %678 = vmatprep.subr.mxu0 0.0
  %679 = vmatpush1.xpose.msra.mxu0 0.0
  %680 = vmatprep.subr.mxu0 0.0
  %681 = vmatpush1.xpose.msra.mxu0 0.0
  %682 = vmatprep.subr.mxu0 0.0
  %683 = vmatpush1.xpose.msra.mxu0 0.0
  %684 = vmatprep.subr.mxu0 0.0
  %685 = vmatpush1.xpose.msra.mxu0 0.0
  %686 = vmatprep.subr.mxu0 0.0
  %687 = vmatpush1.xpose.msra.mxu0 0.0
  %688 = vmatprep.subr.mxu0 0.0
  %689 = vmatpush1.xpose.msra.mxu0 0.0
  %690 = vmatprep.subr.mxu0 0.0
  %691 = vmatpush1.xpose.msra.mxu0 0.0
  %692 = vmatprep.subr.mxu0 0.0
  %693 = vmatpush1.xpose.msra.mxu0 0.0
  %694 = vmatprep.subr.mxu0 0.0
  %695 = vmatpush1.xpose.msra.mxu0 0.0
  %696 = vmatprep.subr.mxu0 0.0
  %697 = vmatpush1.xpose.msra.mxu0 0.0
  %698 = vmatprep.subr.mxu0 0.0
  %699 = vmatpush1.xpose.msra.mxu0 0.0
  %700 = vmatprep.subr.mxu0 0.0
  %701 = vmatpush1.xpose.msra.mxu0 0.0
  %702 = vmatprep.subr.mxu0 0.0
  %703 = vmatpush1.xpose.msra.mxu0 0.0
  %704 = vmatprep.subr.mxu0 0.0
  %705 = vmatpush1.xpose.msra.mxu0 0.0
  %706 = vmatprep.subr.mxu0 0.0
  %707 = vmatpush1.xpose.msra.mxu0 0.0
  %708 = vmatprep.subr.mxu0 0.0
  %709 = vmatpush1.xpose.msra.mxu0 0.0
  %710 = vmatprep.subr.mxu0 0.0
  %711 = vmatpush1.xpose.msra.mxu0 0.0
  %712 = vmatprep.subr.mxu0 0.0
  %713 = vmatpush1.xpose.msra.mxu0 0.0
  %714 = vmatprep.subr.mxu0 0.0
  %715 = vmatpush1.xpose.msra.mxu0 0.0
  %716 = vmatprep.subr.mxu0 0.0
  %717 = vmatpush1.xpose.msra.mxu0 0.0
  %718 = vmatprep.subr.mxu0 0.0
  %719 = vmatpush1.xpose.msra.mxu0 0.0
  %720 = vmatprep.subr.mxu0 0.0
  %721 = vmatpush1.xpose.msra.mxu0 0.0
  %722 = vmatprep.subr.mxu0 0.0
  %723 = vmatpush1.xpose.msra.mxu0 0.0
  %724 = vmatprep.subr.mxu0 0.0
  %725 = vmatpush1.xpose.msra.mxu0 0.0
  %726 = vmatprep.subr.mxu0 0.0
  %727 = vmatpush1.xpose.msra.mxu0 0.0
  %728 = vmatprep.mubr.f32.mxu0 0.0
  %729 = vmatmul.mubr.f32.gmra.mrb[0].mxu0 %v660
  %v730 = vpop.f32.mrb[0].mxu0
  %v731 = vadd.f32 0.0, %v730
  %v732 = vpop.f32.mrb[0].mxu0
  %733 = vdwg.mxu0
  %v734 = vmul.f32 %v731, 0.25
  %v735 = vsel %vm396, %v734, -inf
  %736 = vmax.xlane.f32.xlu0 %v735
  %v737 = vpop.xlane.xlu0 %736
  %v738 = vsub.f32 %v734, %v737
  %v739 = vmul.f32 %v738, 1.442695
  %v740 = vpow.pop %v739
  %v741 = vsel %vm396, %v740, 0.0
  %742 = vadd.xlane.f32.xlu0 %v741
  %v743 = vpop.xlane.xlu0 %742
  %v744 = vrcp.pop %v743
  %v745 = vmul.f32 %v740, %v744
  %746 = vrot.lane.b32.xlu0 %v314, 64
  %v747 = vpop.permute.xlu0 %746
  %v750 = vsel %vm396, %v745, 0
  %752 = vmatprep.subr.mxu0 0.0
  %753 = vmatpush1.msra.mxu0 %v747
  %754 = vmatprep.subr.mxu0 0.0
  %755 = vmatpush1.msra.mxu0 0.0
  %756 = vmatprep.subr.mxu0 0.0
  %757 = vmatpush1.msra.mxu0 0.0
  %758 = vmatprep.subr.mxu0 0.0
  %759 = vmatpush1.msra.mxu0 0.0
  %760 = vmatprep.subr.mxu0 0.0
  %761 = vmatpush1.msra.mxu0 0.0
  %762 = vmatprep.subr.mxu0 0.0
  %763 = vmatpush1.msra.mxu0 0.0
  %764 = vmatprep.subr.mxu0 0.0
  %765 = vmatpush1.msra.mxu0 0.0
  %766 = vmatprep.subr.mxu0 0.0
  %767 = vmatpush1.msra.mxu0 0.0
  %768 = vmatprep.subr.mxu0 0.0
  %769 = vmatpush1.msra.mxu0 0.0
  %770 = vmatprep.subr.mxu0 0.0
  %771 = vmatpush1.msra.mxu0 0.0
  %772 = vmatprep.subr.mxu0 0.0
  %773 = vmatpush1.msra.mxu0 0.0
  %774 = vmatprep.subr.mxu0 0.0
  %775 = vmatpush1.msra.mxu0 0.0
  %776 = vmatprep.subr.mxu0 0.0
  %777 = vmatpush1.msra.mxu0 0.0
  %778 = vmatprep.subr.mxu0 0.0
  %779 = vmatpush1.msra.mxu0 0.0
  %780 = vmatprep.subr.mxu0 0.0
  %781 = vmatpush1.msra.mxu0 0.0
  %782 = vmatprep.subr.mxu0 0.0
  %783 = vmatpush1.msra.mxu0 0.0
  %784 = vmatprep.subr.mxu0 0.0
  %785 = vmatpush1.msra.mxu0 0.0
  %786 = vmatprep.subr.mxu0 0.0
  %787 = vmatpush1.msra.mxu0 0.0
  %788 = vmatprep.subr.mxu0 0.0
  %789 = vmatpush1.msra.mxu0 0.0
  %790 = vmatprep.subr.mxu0 0.0
  %791 = vmatpush1.msra.mxu0 0.0
  %792 = vmatprep.subr.mxu0 0.0
  %793 = vmatpush1.msra.mxu0 0.0
  %794 = vmatprep.subr.mxu0 0.0
  %795 = vmatpush1.msra.mxu0 0.0
  %796 = vmatprep.subr.mxu0 0.0
  %797 = vmatpush1.msra.mxu0 0.0
  %798 = vmatprep.subr.mxu0 0.0
  %799 = vmatpush1.msra.mxu0 0.0
  %800 = vmatprep.subr.mxu0 0.0
  %801 = vmatpush1.msra.mxu0 0.0
  %802 = vmatprep.subr.mxu0 0.0
  %803 = vmatpush1.msra.mxu0 0.0
  %804 = vmatprep.subr.mxu0 0.0
  %805 = vmatpush1.msra.mxu0 0.0
  %806 = vmatprep.subr.mxu0 0.0
  %807 = vmatpush1.msra.mxu0 0.0
  %808 = vmatprep.subr.mxu0 0.0
  %809 = vmatpush1.msra.mxu0 0.0
  %810 = vmatprep.subr.mxu0 0.0
  %811 = vmatpush1.msra.mxu0 0.0
  %812 = vmatprep.subr.mxu0 0.0
  %813 = vmatpush1.msra.mxu0 0.0
  %814 = vmatprep.subr.mxu0 0.0
  %815 = vmatpush1.msra.mxu0 0.0
  %816 = vmatprep.mubr.f32.mxu0 0.0
  %817 = vmatmul.mubr.f32.gmra.mrb[0].mxu0 %v750
  %v818 = vpop.f32.mrb[0].mxu0
  %v819 = vadd.f32 0.0, %v818
  %v820 = vpop.f32.mrb[0].mxu0
  %821 = vdwg.mxu0
  %822 = vst.msk [vmem:[#allocation2 + $0x8] sm:$0xff] %vm320, %v819
  %823 = vrot.lane.b32.xlu0 %v314, 112
  %v824 = vpop.permute.xlu0 %823
  %825 = vrot.lane.b32.xlu0 %v314, 80
  %v826 = vpop.permute.xlu0 %825
  %v827 = vsel %vm320, %v824, 0
  %v829 = vsel %vm320, %v826, 0
  %831 = vmatprep.subr.mxu0 0.0
  %832 = vmatpush1.xpose.msra.mxu0 %v829
  %833 = vmatprep.subr.mxu0 0.0
  %834 = vmatpush1.xpose.msra.mxu0 0.0
  %835 = vmatprep.subr.mxu0 0.0
  %836 = vmatpush1.xpose.msra.mxu0 0.0
  %837 = vmatprep.subr.mxu0 0.0
  %838 = vmatpush1.xpose.msra.mxu0 0.0
  %839 = vmatprep.subr.mxu0 0.0
  %840 = vmatpush1.xpose.msra.mxu0 0.0
  %841 = vmatprep.subr.mxu0 0.0
  %842 = vmatpush1.xpose.msra.mxu0 0.0
  %843 = vmatprep.subr.mxu0 0.0
  %844 = vmatpush1.xpose.msra.mxu0 0.0
  %845 = vmatprep.subr.mxu0 0.0
  %846 = vmatpush1.xpose.msra.mxu0 0.0
  %847 = vmatprep.subr.mxu0 0.0
  %848 = vmatpush1.xpose.msra.mxu0 0.0
  %849 = vmatprep.subr.mxu0 0.0
  %850 = vmatpush1.xpose.msra.mxu0 0.0
  %851 = vmatprep.subr.mxu0 0.0
  %852 = vmatpush1.xpose.msra.mxu0 0.0
  %853 = vmatprep.subr.mxu0 0.0
  %854 = vmatpush1.xpose.msra.mxu0 0.0
  %855 = vmatprep.subr.mxu0 0.0
  %856 = vmatpush1.xpose.msra.mxu0 0.0
  %857 = vmatprep.subr.mxu0 0.0
  %858 = vmatpush1.xpose.msra.mxu0 0.0
  %859 = vmatprep.subr.mxu0 0.0
  %860 = vmatpush1.xpose.msra.mxu0 0.0
  %861 = vmatprep.subr.mxu0 0.0
  %862 = vmatpush1.xpose.msra.mxu0 0.0
  %863 = vmatprep.subr.mxu0 0.0
  %864 = vmatpush1.xpose.msra.mxu0 0.0
  %865 = vmatprep.subr.mxu0 0.0
  %866 = vmatpush1.xpose.msra.mxu0 0.0
  %867 = vmatprep.subr.mxu0 0.0
  %868 = vmatpush1.xpose.msra.mxu0 0.0
  %869 = vmatprep.subr.mxu0 0.0
  %870 = vmatpush1.xpose.msra.mxu0 0.0
  %871 = vmatprep.subr.mxu0 0.0
  %872 = vmatpush1.xpose.msra.mxu0 0.0
  %873 = vmatprep.subr.mxu0 0.0
  %874 = vmatpush1.xpose.msra.mxu0 0.0
  %875 = vmatprep.subr.mxu0 0.0
  %876 = vmatpush1.xpose.msra.mxu0 0.0
  %877 = vmatprep.subr.mxu0 0.0
  %878 = vmatpush1.xpose.msra.mxu0 0.0
  %879 = vmatprep.subr.mxu0 0.0
  %880 = vmatpush1.xpose.msra.mxu0 0.0
  %881 = vmatprep.subr.mxu0 0.0
  %882 = vmatpush1.xpose.msra.mxu0 0.0
  %883 = vmatprep.subr.mxu0 0.0
  %884 = vmatpush1.xpose.msra.mxu0 0.0
  %885 = vmatprep.subr.mxu0 0.0
  %886 = vmatpush1.xpose.msra.mxu0 0.0
  %887 = vmatprep.subr.mxu0 0.0
  %888 = vmatpush1.xpose.msra.mxu0 0.0
  %889 = vmatprep.subr.mxu0 0.0
  %890 = vmatpush1.xpose.msra.mxu0 0.0
  %891 = vmatprep.subr.mxu0 0.0
  %892 = vmatpush1.xpose.msra.mxu0 0.0
  %893 = vmatprep.subr.mxu0 0.0
  %894 = vmatpush1.xpose.msra.mxu0 0.0
  %895 = vmatprep.mubr.f32.mxu0 0.0
  %896 = vmatmul.mubr.f32.gmra.mrb[0].mxu0 %v827
  %v897 = vpop.f32.mrb[0].mxu0
  %v898 = vadd.f32 0.0, %v897
  %v899 = vpop.f32.mrb[0].mxu0
  %900 = vdwg.mxu0
  %v901 = vmul.f32 %v898, 0.25
  %v902 = vsel %vm396, %v901, -inf
  %903 = vmax.xlane.f32.xlu0 %v902
  %v904 = vpop.xlane.xlu0 %903
  %v905 = vsub.f32 %v901, %v904
  %v906 = vmul.f32 %v905, 1.442695
  %v907 = vpow.pop %v906
  %v908 = vsel %vm396, %v907, 0.0
  %909 = vadd.xlane.f32.xlu0 %v908
  %v910 = vpop.xlane.xlu0 %909
  %v911 = vrcp.pop %v910
  %v912 = vmul.f32 %v907, %v911
  %913 = vrot.lane.b32.xlu0 %v314, 48
  %v914 = vpop.permute.xlu0 %913
  %v917 = vsel %vm396, %v912, 0
  %919 = vmatprep.subr.mxu0 0.0
  %920 = vmatpush1.msra.mxu0 %v914
  %921 = vmatprep.subr.mxu0 0.0
  %922 = vmatpush1.msra.mxu0 0.0
  %923 = vmatprep.subr.mxu0 0.0
  %924 = vmatpush1.msra.mxu0 0.0
  %925 = vmatprep.subr.mxu0 0.0
  %926 = vmatpush1.msra.mxu0 0.0
  %927 = vmatprep.subr.mxu0 0.0
  %928 = vmatpush1.msra.mxu0 0.0
  %929 = vmatprep.subr.mxu0 0.0
  %930 = vmatpush1.msra.mxu0 0.0
  %931 = vmatprep.subr.mxu0 0.0
  %932 = vmatpush1.msra.mxu0 0.0
  %933 = vmatprep.subr.mxu0 0.0
  %934 = vmatpush1.msra.mxu0 0.0
  %935 = vmatprep.subr.mxu0 0.0
  %936 = vmatpush1.msra.mxu0 0.0
  %937 = vmatprep.subr.mxu0 0.0
  %938 = vmatpush1.msra.mxu0 0.0
  %939 = vmatprep.subr.mxu0 0.0
  %940 = vmatpush1.msra.mxu0 0.0
  %941 = vmatprep.subr.mxu0 0.0
  %942 = vmatpush1.msra.mxu0 0.0
  %943 = vmatprep.subr.mxu0 0.0
  %944 = vmatpush1.msra.mxu0 0.0
  %945 = vmatprep.subr.mxu0 0.0
  %946 = vmatpush1.msra.mxu0 0.0
  %947 = vmatprep.subr.mxu0 0.0
  %948 = vmatpush1.msra.mxu0 0.0
  %949 = vmatprep.subr.mxu0 0.0
  %950 = vmatpush1.msra.mxu0 0.0
  %951 = vmatprep.subr.mxu0 0.0
  %952 = vmatpush1.msra.mxu0 0.0
  %953 = vmatprep.subr.mxu0 0.0
  %954 = vmatpush1.msra.mxu0 0.0
  %955 = vmatprep.subr.mxu0 0.0
  %956 = vmatpush1.msra.mxu0 0.0
  %957 = vmatprep.subr.mxu0 0.0
  %958 = vmatpush1.msra.mxu0 0.0
  %959 = vmatprep.subr.mxu0 0.0
  %960 = vmatpush1.msra.mxu0 0.0
  %961 = vmatprep.subr.mxu0 0.0
  %962 = vmatpush1.msra.mxu0 0.0
  %963 = vmatprep.subr.mxu0 0.0
  %964 = vmatpush1.msra.mxu0 0.0
  %965 = vmatprep.subr.mxu0 0.0
  %966 = vmatpush1.msra.mxu0 0.0
  %967 = vmatprep.subr.mxu0 0.0
  %968 = vmatpush1.msra.mxu0 0.0
  %969 = vmatprep.subr.mxu0 0.0
  %970 = vmatpush1.msra.mxu0 0.0
  %971 = vmatprep.subr.mxu0 0.0
  %972 = vmatpush1.msra.mxu0 0.0
  %973 = vmatprep.subr.mxu0 0.0
  %974 = vmatpush1.msra.mxu0 0.0
  %975 = vmatprep.subr.mxu0 0.0
  %976 = vmatpush1.msra.mxu0 0.0
  %977 = vmatprep.subr.mxu0 0.0
  %978 = vmatpush1.msra.mxu0 0.0
  %979 = vmatprep.subr.mxu0 0.0
  %980 = vmatpush1.msra.mxu0 0.0
  %981 = vmatprep.subr.mxu0 0.0
  %982 = vmatpush1.msra.mxu0 0.0
  %983 = vmatprep.mubr.f32.mxu0 0.0
  %984 = vmatmul.mubr.f32.gmra.mrb[0].mxu0 %v917
  %v985 = vpop.f32.mrb[0].mxu0
  %v986 = vadd.f32 0.0, %v985
  %v987 = vpop.f32.mrb[0].mxu0
  %988 = vdwg.mxu0
  %990 = vrot.lane.b32.xlu0 %v986, 16
  %v991 = vpop.permute.xlu0 %990
  %993 = vst.msk [vmem:[#allocation2 + $0x8] sm:$0xff] %vm655, %v991
  %v994 = vld [vmem:[#allocation2] sm:$0xff]
  %v995 = vld [vmem:[#allocation2 + $0x8] sm:$0xff]
  %v996 = vld [vmem:[%s7] sm:$0xff]
  %v997 = vld [vmem:[%s7 + $0x8] sm:$0xff]
  %v998 = vld [vmem:[%s7 + $0x10] sm:$0xff]
  %v999 = vld [vmem:[%s7 + $0x18] sm:$0xff]
  %v1000 = vld [vmem:[%s8] sm:$0x1]
  %v1002 = vlaneseq
  %v1003 = vshrl.u32 %v1002, 7
  %v1004 = vsub.s32 0, %v1003
  %v1005 = vrot.slane %v1000, %v1004
  %v1008 = vsel %vm181, %v994, 0
  %v1011 = vsel %vm181, %v995, 0
  %1013 = vmatprep.subr.mxu0 0.0
  %1014 = vmatpush1.msra.mxu0 %v996
  %1015 = vmatprep.subr.mxu0 0.0
  %1016 = vmatpush1.msra.mxu0 %v997
  %1017 = vmatprep.subr.mxu0 0.0
  %1018 = vmatpush1.msra.mxu0 %v998
  %1019 = vmatprep.subr.mxu0 0.0
  %1020 = vmatpush1.msra.mxu0 %v999
  %1021 = vmatprep.subr.mxu0 0.0
  %1022 = vmatpush1.msra.mxu0 0.0
  %1023 = vmatprep.subr.mxu0 0.0
  %1024 = vmatpush1.msra.mxu0 0.0
  %1025 = vmatprep.subr.mxu0 0.0
  %1026 = vmatpush1.msra.mxu0 0.0
  %1027 = vmatprep.subr.mxu0 0.0
  %1028 = vmatpush1.msra.mxu0 0.0
  %1029 = vmatprep.subr.mxu0 0.0
  %1030 = vmatpush1.msra.mxu0 0.0
  %1031 = vmatprep.subr.mxu0 0.0
  %1032 = vmatpush1.msra.mxu0 0.0
  %1033 = vmatprep.subr.mxu0 0.0
  %1034 = vmatpush1.msra.mxu0 0.0
  %1035 = vmatprep.subr.mxu0 0.0
  %1036 = vmatpush1.msra.mxu0 0.0
  %1037 = vmatprep.subr.mxu0 0.0
  %1038 = vmatpush1.msra.mxu0 0.0
  %1039 = vmatprep.subr.mxu0 0.0
  %1040 = vmatpush1.msra.mxu0 0.0
  %1041 = vmatprep.subr.mxu0 0.0
  %1042 = vmatpush1.msra.mxu0 0.0
  %1043 = vmatprep.subr.mxu0 0.0
  %1044 = vmatpush1.msra.mxu0 0.0
  %1045 = vmatprep.subr.mxu0 0.0
  %1046 = vmatpush1.msra.mxu0 0.0
  %1047 = vmatprep.subr.mxu0 0.0
  %1048 = vmatpush1.msra.mxu0 0.0
  %1049 = vmatprep.subr.mxu0 0.0
  %1050 = vmatpush1.msra.mxu0 0.0
  %1051 = vmatprep.subr.mxu0 0.0
  %1052 = vmatpush1.msra.mxu0 0.0
  %1053 = vmatprep.subr.mxu0 0.0
  %1054 = vmatpush1.msra.mxu0 0.0
  %1055 = vmatprep.subr.mxu0 0.0
  %1056 = vmatpush1.msra.mxu0 0.0
  %1057 = vmatprep.subr.mxu0 0.0
  %1058 = vmatpush1.msra.mxu0 0.0
  %1059 = vmatprep.subr.mxu0 0.0
  %1060 = vmatpush1.msra.mxu0 0.0
  %1061 = vmatprep.subr.mxu0 0.0
  %1062 = vmatpush1.msra.mxu0 0.0
  %1063 = vmatprep.subr.mxu0 0.0
  %1064 = vmatpush1.msra.mxu0 0.0
  %1065 = vmatprep.subr.mxu0 0.0
  %1066 = vmatpush1.msra.mxu0 0.0
  %1067 = vmatprep.subr.mxu0 0.0
  %1068 = vmatpush1.msra.mxu0 0.0
  %1069 = vmatprep.subr.mxu0 0.0
  %1070 = vmatpush1.msra.mxu0 0.0
  %1071 = vmatprep.subr.mxu0 0.0
  %1072 = vmatpush1.msra.mxu0 0.0
  %1073 = vmatprep.subr.mxu0 0.0
  %1074 = vmatpush1.msra.mxu0 0.0
  %1075 = vmatprep.subr.mxu0 0.0
  %1076 = vmatpush1.msra.mxu0 0.0
  %1077 = vmatprep.mubr.f32.mxu0 0.0
  %1078 = vmatmul.mubr.f32.gmra.mrb[0].mxu0 %v1008
  %v1079 = vpop.f32.mrb[0].mxu0
  %v1080 = vadd.f32 %v1005, %v1079
  %v1081 = vpop.f32.mrb[0].mxu0
  %1082 = vmatprep.mubr.f32.mxu0 0.0
  %1083 = vmatmul.mubr.f32.gmra.mrb[0].mxu0 %v1011
  %v1084 = vpop.f32.mrb[0].mxu0
  %v1085 = vadd.f32 %v1005, %v1084
  %v1086 = vpop.f32.mrb[0].mxu0
  %1087 = vdwg.mxu0
  %v1088 = vadd.f32 %v1080, %v223
  %v1089 = vadd.f32 %v1085, %v224
  %v1090 = vld [vmem:[%s9] sm:$0x1]
  %v1091 = vld [vmem:[%s10] sm:$0x1]
  %v1092 = vsel %vm181, %v1088, 0.0
  %1093 = vadd.xlane.f32.xlu0 %v1092
  %v1094 = vpop.xlane.xlu0 %1093
  %v1095 = vsel %vm181, %v1089, 0.0
  %1096 = vadd.xlane.f32.xlu0 %v1095
  %v1097 = vpop.xlane.xlu0 %1096
  %v1098 = vmul.f32 %v1094, %v188
  %v1099 = vmul.f32 %v1097, %v188
  %v1100 = vsub.f32 %v1088, %v1098
  %v1101 = vsub.f32 %v1089, %v1099
  %v1102 = vmul.f32 %v1100, %v1100
  %v1103 = vmul.f32 %v1101, %v1101
  %v1104 = vsel %vm181, %v1102, 0.0
  %1105 = vadd.xlane.f32.xlu0 %v1104
  %v1106 = vpop.xlane.xlu0 %1105
  %v1107 = vsel %vm181, %v1103, 0.0
  %1108 = vadd.xlane.f32.xlu0 %v1107
  %v1109 = vpop.xlane.xlu0 %1108
  %v1110 = vmul.f32 %v1106, %v188
  %v1111 = vmul.f32 %v1109, %v188
  %v1112 = vadd.f32 %v1110, 1e-12
  %v1113 = vadd.f32 %v1111, 1e-12
  %v1114 = vrsqrt.pop %v1112
  %v1115 = vrsqrt.pop %v1113
  %v1116 = vmul.f32 %v1100, %v1114
  %v1117 = vmul.f32 %v1101, %v1115
  %v1119 = vlaneseq
  %v1120 = vshrl.u32 %v1119, 7
  %v1121 = vsub.s32 0, %v1120
  %v1122 = vrot.slane %v1090, %v1121
  %v1124 = vmul.f32 %v1116, %v1122
  %v1125 = vmul.f32 %v1117, %v1122
  %v1127 = vlaneseq
  %v1128 = vshrl.u32 %v1127, 7
  %v1129 = vsub.s32 0, %v1128
  %v1130 = vrot.slane %v1091, %v1129
  %v1132 = vadd.f32 %v1124, %v1130
  %v1133 = vadd.f32 %v1125, %v1130
  %v1134 = vld [vmem:[%s11] sm:$0xff]
  %v1135 = vld [vmem:[%s11 + $0x8] sm:$0xff]
  %v1136 = vld [vmem:[%s11 + $0x10] sm:$0xff]
  %v1137 = vld [vmem:[%s11 + $0x18] sm:$0xff]
  %v1138 = vld [vmem:[%s12] sm:$0x1]
  %v1140 = vlaneseq
  %v1141 = vshrl.u32 %v1140, 7
  %v1142 = vsub.s32 0, %v1141
  %v1143 = vrot.slane %v1138, %v1142
  %v1146 = vsel %vm181, %v1132, 0
  %v1149 = vsel %vm181, %v1133, 0
  %1151 = vmatprep.subr.mxu0 0.0
  %1152 = vmatpush1.msra.mxu0 %v1134
  %1153 = vmatprep.subr.mxu0 0.0
  %1154 = vmatpush1.msra.mxu0 %v1135
  %1155 = vmatprep.subr.mxu0 0.0
  %1156 = vmatpush1.msra.mxu0 %v1136
  %1157 = vmatprep.subr.mxu0 0.0
  %1158 = vmatpush1.msra.mxu0 %v1137
  %1159 = vmatprep.subr.mxu0 0.0
  %1160 = vmatpush1.msra.mxu0 0.0
  %1161 = vmatprep.subr.mxu0 0.0
  %1162 = vmatpush1.msra.mxu0 0.0
  %1163 = vmatprep.subr.mxu0 0.0
  %1164 = vmatpush1.msra.mxu0 0.0
  %1165 = vmatprep.subr.mxu0 0.0
  %1166 = vmatpush1.msra.mxu0 0.0
  %1167 = vmatprep.subr.mxu0 0.0
  %1168 = vmatpush1.msra.mxu0 0.0
  %1169 = vmatprep.subr.mxu0 0.0
  %1170 = vmatpush1.msra.mxu0 0.0
  %1171 = vmatprep.subr.mxu0 0.0
  %1172 = vmatpush1.msra.mxu0 0.0
  %1173 = vmatprep.subr.mxu0 0.0
  %1174 = vmatpush1.msra.mxu0 0.0
  %1175 = vmatprep.subr.mxu0 0.0
  %1176 = vmatpush1.msra.mxu0 0.0
  %1177 = vmatprep.subr.mxu0 0.0
  %1178 = vmatpush1.msra.mxu0 0.0
  %1179 = vmatprep.subr.mxu0 0.0
  %1180 = vmatpush1.msra.mxu0 0.0
  %1181 = vmatprep.subr.mxu0 0.0
  %1182 = vmatpush1.msra.mxu0 0.0
  %1183 = vmatprep.subr.mxu0 0.0
  %1184 = vmatpush1.msra.mxu0 0.0
  %1185 = vmatprep.subr.mxu0 0.0
  %1186 = vmatpush1.msra.mxu0 0.0
  %1187 = vmatprep.subr.mxu0 0.0
  %1188 = vmatpush1.msra.mxu0 0.0
  %1189 = vmatprep.subr.mxu0 0.0
  %1190 = vmatpush1.msra.mxu0 0.0
  %1191 = vmatprep.subr.mxu0 0.0
  %1192 = vmatpush1.msra.mxu0 0.0
  %1193 = vmatprep.subr.mxu0 0.0
  %1194 = vmatpush1.msra.mxu0 0.0
  %1195 = vmatprep.subr.mxu0 0.0
  %1196 = vmatpush1.msra.mxu0 0.0
  %1197 = vmatprep.subr.mxu0 0.0
  %1198 = vmatpush1.msra.mxu0 0.0
  %1199 = vmatprep.subr.mxu0 0.0
  %1200 = vmatpush1.msra.mxu0 0.0
  %1201 = vmatprep.subr.mxu0 0.0
  %1202 = vmatpush1.msra.mxu0 0.0
  %1203 = vmatprep.subr.mxu0 0.0
  %1204 = vmatpush1.msra.mxu0 0.0
  %1205 = vmatprep.subr.mxu0 0.0
  %1206 = vmatpush1.msra.mxu0 0.0
  %1207 = vmatprep.subr.mxu0 0.0
  %1208 = vmatpush1.msra.mxu0 0.0
  %1209 = vmatprep.subr.mxu0 0.0
  %1210 = vmatpush1.msra.mxu0 0.0
  %1211 = vmatprep.subr.mxu0 0.0
  %1212 = vmatpush1.msra.mxu0 0.0
  %1213 = vmatprep.subr.mxu0 0.0
  %1214 = vmatpush1.msra.mxu0 0.0
  %1215 = vmatprep.mubr.f32.mxu0 0.0
  %1216 = vmatmul.mubr.f32.gmra.mrb[0].mxu0 %v1146
  %v1217 = vpop.f32.mrb[0].mxu0
  %v1218 = vadd.f32 %v1143, %v1217
  %v1219 = vpop.f32.mrb[0].mxu0
  %1220 = vmatprep.mubr.f32.mxu0 0.0
  %1221 = vmatmul.mubr.f32.gmra.mrb[0].mxu0 %v1149
  %v1222 = vpop.f32.mrb[0].mxu0
  %v1223 = vadd.f32 %v1143, %v1222
  %v1224 = vpop.f32.mrb[0].mxu0
  %1225 = vdwg.mxu0
  %v1226 = vmul.f32 %v1218, %v1218
  %v1227 = vmul.f32 %v1223, %v1223
  %v1228 = vmul.f32 %v1218, %v1226
  %v1229 = vmul.f32 %v1223, %v1227
  %v1230 = vmul.f32 %v1228, 0.044715
  %v1231 = vmul.f32 %v1229, 0.044715
  %v1232 = vadd.f32 %v1218, %v1230
  %v1233 = vadd.f32 %v1223, %v1231
  %v1234 = vmul.f32 %v1232, 0.7978846
  %v1235 = vmul.f32 %v1233, 0.7978846
  %v1236 = vtanh.pop %v1234
  %v1237 = vtanh.pop %v1235
  %v1238 = vadd.f32 %v1236, 1.0
  %v1239 = vadd.f32 %v1237, 1.0
  %v1240 = vmul.f32 %v1238, 0.5
  %v1241 = vmul.f32 %v1239, 0.5
  %v1242 = vmul.f32 %v1218, %v1240
  %v1243 = vmul.f32 %v1223, %v1241
  %v1244 = vld [vmem:[%s13] sm:$0xff]
  %v1245 = vld [vmem:[%s13 + $0x8] sm:$0xff]
  %v1246 = vld [vmem:[%s13 + $0x10] sm:$0xff]
  %v1247 = vld [vmem:[%s13 + $0x18] sm:$0xff]
  %v1248 = vld [vmem:[%s13 + $0x20] sm:$0xff]
  %v1249 = vld [vmem:[%s13 + $0x28] sm:$0xff]
  %v1250 = vld [vmem:[%s13 + $0x30] sm:$0xff]
  %v1251 = vld [vmem:[%s13 + $0x38] sm:$0xff]
  %v1252 = vld [vmem:[%s14] sm:$0x1]
  %v1254 = vlaneseq
  %v1255 = vshrl.u32 %v1254, 7
  %v1256 = vsub.s32 0, %v1255
  %v1257 = vrot.slane %v1252, %v1256
  %vm1259 = vcmask 523264
  %v1261 = vsel %vm1259, %v1242, 0
  %v1264 = vsel %vm1259, %v1243, 0
  %1266 = vmatprep.subr.mxu0 0.0
  %1267 = vmatpush1.msra.mxu0 %v1244
  %1268 = vmatprep.subr.mxu0 0.0
  %1269 = vmatpush1.msra.mxu0 %v1245
  %1270 = vmatprep.subr.mxu0 0.0
  %1271 = vmatpush1.msra.mxu0 %v1246
  %1272 = vmatprep.subr.mxu0 0.0
  %1273 = vmatpush1.msra.mxu0 %v1247
  %1274 = vmatprep.subr.mxu0 0.0
  %1275 = vmatpush1.msra.mxu0 %v1248
  %1276 = vmatprep.subr.mxu0 0.0
  %1277 = vmatpush1.msra.mxu0 %v1249
  %1278 = vmatprep.subr.mxu0 0.0
  %1279 = vmatpush1.msra.mxu0 %v1250
  %1280 = vmatprep.subr.mxu0 0.0
  %1281 = vmatpush1.msra.mxu0 %v1251
  %1282 = vmatprep.subr.mxu0 0.0
  %1283 = vmatpush1.msra.mxu0 0.0
  %1284 = vmatprep.subr.mxu0 0.0
  %1285 = vmatpush1.msra.mxu0 0.0
  %1286 = vmatprep.subr.mxu0 0.0
  %1287 = vmatpush1.msra.mxu0 0.0
  %1288 = vmatprep.subr.mxu0 0.0
  %1289 = vmatpush1.msra.mxu0 0.0
  %1290 = vmatprep.subr.mxu0 0.0
  %1291 = vmatpush1.msra.mxu0 0.0
  %1292 = vmatprep.subr.mxu0 0.0
  %1293 = vmatpush1.msra.mxu0 0.0
  %1294 = vmatprep.subr.mxu0 0.0
  %1295 = vmatpush1.msra.mxu0 0.0
  %1296 = vmatprep.subr.mxu0 0.0
  %1297 = vmatpush1.msra.mxu0 0.0
  %1298 = vmatprep.subr.mxu0 0.0
  %1299 = vmatpush1.msra.mxu0 0.0
  %1300 = vmatprep.subr.mxu0 0.0
  %1301 = vmatpush1.msra.mxu0 0.0
  %1302 = vmatprep.subr.mxu0 0.0
  %1303 = vmatpush1.msra.mxu0 0.0
  %1304 = vmatprep.subr.mxu0 0.0
  %1305 = vmatpush1.msra.mxu0 0.0
  %1306 = vmatprep.subr.mxu0 0.0
  %1307 = vmatpush1.msra.mxu0 0.0
  %1308 = vmatprep.subr.mxu0 0.0
  %1309 = vmatpush1.msra.mxu0 0.0
  %1310 = vmatprep.subr.mxu0 0.0
  %1311 = vmatpush1.msra.mxu0 0.0
  %1312 = vmatprep.subr.mxu0 0.0
  %1313 = vmatpush1.msra.mxu0 0.0
  %1314 = vmatprep.subr.mxu0 0.0
  %1315 = vmatpush1.msra.mxu0 0.0
  %1316 = vmatprep.subr.mxu0 0.0
  %1317 = vmatpush1.msra.mxu0 0.0
  %1318 = vmatprep.subr.mxu0 0.0
  %1319 = vmatpush1.msra.mxu0 0.0
  %1320 = vmatprep.subr.mxu0 0.0
  %1321 = vmatpush1.msra.mxu0 0.0
  %1322 = vmatprep.subr.mxu0 0.0
  %1323 = vmatpush1.msra.mxu0 0.0
  %1324 = vmatprep.subr.mxu0 0.0
  %1325 = vmatpush1.msra.mxu0 0.0
  %1326 = vmatprep.subr.mxu0 0.0
  %1327 = vmatpush1.msra.mxu0 0.0
  %1328 = vmatprep.subr.mxu0 0.0
  %1329 = vmatpush1.msra.mxu0 0.0
  %1330 = vmatprep.mubr.f32.mxu0 0.0
  %1331 = vmatmul.mubr.f32.gmra.mrb[0].mxu0 %v1261
  %v1332 = vpop.f32.mrb[0].mxu0
  %v1333 = vadd.f32 %v1257, %v1332
  %v1334 = vpop.f32.mrb[0].mxu0
  %1335 = vmatprep.mubr.f32.mxu0 0.0
  %1336 = vmatmul.mubr.f32.gmra.mrb[0].mxu0 %v1264
  %v1337 = vpop.f32.mrb[0].mxu0
  %v1338 = vadd.f32 %v1257, %v1337
  %v1339 = vpop.f32.mrb[0].mxu0
  %1340 = vdwg.mxu0
  %v1341 = vadd.f32 %v1333, %v1132
  %v1342 = vadd.f32 %v1338, %v1133
  %v1343 = vld [vmem:[%s15] sm:$0x1]
  %v1344 = vld [vmem:[%s16] sm:$0x1]
  %v1345 = vsel %vm181, %v1341, 0.0
  %1346 = vadd.xlane.f32.xlu0 %v1345
  %v1347 = vpop.xlane.xlu0 %1346
  %v1348 = vsel %vm181, %v1342, 0.0
  %1349 = vadd.xlane.f32.xlu0 %v1348
  %v1350 = vpop.xlane.xlu0 %1349
  %v1351 = vmul.f32 %v1347, %v188
  %v1352 = vmul.f32 %v1350, %v188
  %v1353 = vsub.f32 %v1341, %v1351
  %v1354 = vsub.f32 %v1342, %v1352
  %v1355 = vmul.f32 %v1353, %v1353
  %v1356 = vmul.f32 %v1354, %v1354
  %v1357 = vsel %vm181, %v1355, 0.0
  %1358 = vadd.xlane.f32.xlu0 %v1357
  %v1359 = vpop.xlane.xlu0 %1358
  %v1360 = vsel %vm181, %v1356, 0.0
  %1361 = vadd.xlane.f32.xlu0 %v1360
  %v1362 = vpop.xlane.xlu0 %1361
  %v1363 = vmul.f32 %v1359, %v188
  %v1364 = vmul.f32 %v1362, %v188
  %v1365 = vadd.f32 %v1363, 1e-12
  %v1366 = vadd.f32 %v1364, 1e-12
  %v1367 = vrsqrt.pop %v1365
  %v1368 = vrsqrt.pop %v1366
  %v1369 = vmul.f32 %v1353, %v1367
  %v1370 = vmul.f32 %v1354, %v1368
  %v1372 = vlaneseq
  %v1373 = vshrl.u32 %v1372, 7
  %v1374 = vsub.s32 0, %v1373
  %v1375 = vrot.slane %v1343, %v1374
  %v1377 = vmul.f32 %v1369, %v1375
  %v1378 = vmul.f32 %v1370, %v1375
  %v1380 = vlaneseq
  %v1381 = vshrl.u32 %v1380, 7
  %v1382 = vsub.s32 0, %v1381
  %v1383 = vrot.slane %v1344, %v1382
  %v1385 = vadd.f32 %v1377, %v1383
  %v1386 = vadd.f32 %v1378, %v1383
  %s1387 = scalar_lea.vmem %s5, 32
  %v1388 = vld [vmem:[%s1387] sm:$0xff]
  %v1389 = vld [vmem:[%s1387 + $0x8] sm:$0xff]
  %v1390 = vld [vmem:[%s1387 + $0x10] sm:$0xff]
  %v1391 = vld [vmem:[%s1387 + $0x18] sm:$0xff]
  %s1392 = scalar_lea.vmem %s6, 1
  %v1393 = vld [vmem:[%s1392] sm:$0x1]
  %v1395 = vlaneseq
  %v1396 = vshrl.u32 %v1395, 7
  %v1397 = vsub.s32 0, %v1396
  %v1398 = vrot.slane %v1393, %v1397
  %v1401 = vsel %vm181, %v1385, 0
  %v1404 = vsel %vm181, %v1386, 0
  %1406 = vmatprep.subr.mxu0 0.0
  %1407 = vmatpush1.msra.mxu0 %v1388
  %1408 = vmatprep.subr.mxu0 0.0
  %1409 = vmatpush1.msra.mxu0 %v1389
  %1410 = vmatprep.subr.mxu0 0.0
  %1411 = vmatpush1.msra.mxu0 %v1390
  %1412 = vmatprep.subr.mxu0 0.0
  %1413 = vmatpush1.msra.mxu0 %v1391
  %1414 = vmatprep.subr.mxu0 0.0
  %1415 = vmatpush1.msra.mxu0 0.0
  %1416 = vmatprep.subr.mxu0 0.0
  %1417 = vmatpush1.msra.mxu0 0.0
  %1418 = vmatprep.subr.mxu0 0.0
  %1419 = vmatpush1.msra.mxu0 0.0
  %1420 = vmatprep.subr.mxu0 0.0
  %1421 = vmatpush1.msra.mxu0 0.0
  %1422 = vmatprep.subr.mxu0 0.0
  %1423 = vmatpush1.msra.mxu0 0.0
  %1424 = vmatprep.subr.mxu0 0.0
  %1425 = vmatpush1.msra.mxu0 0.0
  %1426 = vmatprep.subr.mxu0 0.0
  %1427 = vmatpush1.msra.mxu0 0.0
  %1428 = vmatprep.subr.mxu0 0.0
  %1429 = vmatpush1.msra.mxu0 0.0
  %1430 = vmatprep.subr.mxu0 0.0
  %1431 = vmatpush1.msra.mxu0 0.0
  %1432 = vmatprep.subr.mxu0 0.0
  %1433 = vmatpush1.msra.mxu0 0.0
  %1434 = vmatprep.subr.mxu0 0.0
  %1435 = vmatpush1.msra.mxu0 0.0
  %1436 = vmatprep.subr.mxu0 0.0
  %1437 = vmatpush1.msra.mxu0 0.0
  %1438 = vmatprep.subr.mxu0 0.0
  %1439 = vmatpush1.msra.mxu0 0.0
  %1440 = vmatprep.subr.mxu0 0.0
  %1441 = vmatpush1.msra.mxu0 0.0
  %1442 = vmatprep.subr.mxu0 0.0
  %1443 = vmatpush1.msra.mxu0 0.0
  %1444 = vmatprep.subr.mxu0 0.0
  %1445 = vmatpush1.msra.mxu0 0.0
  %1446 = vmatprep.subr.mxu0 0.0
  %1447 = vmatpush1.msra.mxu0 0.0
  %1448 = vmatprep.subr.mxu0 0.0
  %1449 = vmatpush1.msra.mxu0 0.0
  %1450 = vmatprep.subr.mxu0 0.0
  %1451 = vmatpush1.msra.mxu0 0.0
  %1452 = vmatprep.subr.mxu0 0.0
  %1453 = vmatpush1.msra.mxu0 0.0
  %1454 = vmatprep.subr.mxu0 0.0
  %1455 = vmatpush1.msra.mxu0 0.0
  %1456 = vmatprep.subr.mxu0 0.0
  %1457 = vmatpush1.msra.mxu0 0.0
  %1458 = vmatprep.subr.mxu0 0.0
  %1459 = vmatpush1.msra.mxu0 0.0
  %1460 = vmatprep.subr.mxu0 0.0
  %1461 = vmatpush1.msra.mxu0 0.0
  %1462 = vmatprep.subr.mxu0 0.0
  %1463 = vmatpush1.msra.mxu0 0.0
  %1464 = vmatprep.subr.mxu0 0.0
  %1465 = vmatpush1.msra.mxu0 0.0
  %1466 = vmatprep.subr.mxu0 0.0
  %1467 = vmatpush1.msra.mxu0 0.0
  %1468 = vmatprep.subr.mxu0 0.0
  %1469 = vmatpush1.msra.mxu0 0.0
  %1470 = vmatprep.mubr.f32.mxu0 0.0
  %1471 = vmatmul.mubr.f32.gmra.mrb[0].mxu0 %v1401
  %v1472 = vpop.f32.mrb[0].mxu0
  %v1473 = vadd.f32 %v1398, %v1472
  %v1474 = vpop.f32.mrb[0].mxu0
  %1475 = vmatprep.mubr.f32.mxu0 0.0
  %1476 = vmatmul.mubr.f32.gmra.mrb[0].mxu0 %v1404
  %v1477 = vpop.f32.mrb[0].mxu0
  %v1478 = vadd.f32 %v1398, %v1477
  %v1479 = vpop.f32.mrb[0].mxu0
  %1480 = vdwg.mxu0
  %1482 = vrot.lane.b32.xlu0 %v1473, 96
  %v1483 = vpop.permute.xlu0 %1482
  %v1484 = vsel %vm320, %v1473, 0
  %v1486 = vsel %vm320, %v1483, 0
  %1488 = vmatprep.subr.mxu0 0.0
  %1489 = vmatpush1.xpose.msra.mxu0 %v1486
  %1490 = vmatprep.subr.mxu0 0.0
  %1491 = vmatpush1.xpose.msra.mxu0 0.0
  %1492 = vmatprep.subr.mxu0 0.0
  %1493 = vmatpush1.xpose.msra.mxu0 0.0
  %1494 = vmatprep.subr.mxu0 0.0
  %1495 = vmatpush1.xpose.msra.mxu0 0.0
  %1496 = vmatprep.subr.mxu0 0.0
  %1497 = vmatpush1.xpose.msra.mxu0 0.0
  %1498 = vmatprep.subr.mxu0 0.0
  %1499 = vmatpush1.xpose.msra.mxu0 0.0
  %1500 = vmatprep.subr.mxu0 0.0
  %1501 = vmatpush1.xpose.msra.mxu0 0.0
  %1502 = vmatprep.subr.mxu0 0.0
  %1503 = vmatpush1.xpose.msra.mxu0 0.0
  %1504 = vmatprep.subr.mxu0 0.0
  %1505 = vmatpush1.xpose.msra.mxu0 0.0
  %1506 = vmatprep.subr.mxu0 0.0
  %1507 = vmatpush1.xpose.msra.mxu0 0.0
  %1508 = vmatprep.subr.mxu0 0.0
  %1509 = vmatpush1.xpose.msra.mxu0 0.0
  %1510 = vmatprep.subr.mxu0 0.0
  %1511 = vmatpush1.xpose.msra.mxu0 0.0
  %1512 = vmatprep.subr.mxu0 0.0
  %1513 = vmatpush1.xpose.msra.mxu0 0.0
  %1514 = vmatprep.subr.mxu0 0.0
  %1515 = vmatpush1.xpose.msra.mxu0 0.0
  %1516 = vmatprep.subr.mxu0 0.0
  %1517 = vmatpush1.xpose.msra.mxu0 0.0
  %1518 = vmatprep.subr.mxu0 0.0
  %1519 = vmatpush1.xpose.msra.mxu0 0.0
  %1520 = vmatprep.subr.mxu0 0.0
  %1521 = vmatpush1.xpose.msra.mxu0 0.0
  %1522 = vmatprep.subr.mxu0 0.0
  %1523 = vmatpush1.xpose.msra.mxu0 0.0
  %1524 = vmatprep.subr.mxu0 0.0
  %1525 = vmatpush1.xpose.msra.mxu0 0.0
  %1526 = vmatprep.subr.mxu0 0.0
  %1527 = vmatpush1.xpose.msra.mxu0 0.0
  %1528 = vmatprep.subr.mxu0 0.0
  %1529 = vmatpush1.xpose.msra.mxu0 0.0
  %1530 = vmatprep.subr.mxu0 0.0
  %1531 = vmatpush1.xpose.msra.mxu0 0.0
  %1532 = vmatprep.subr.mxu0 0.0
  %1533 = vmatpush1.xpose.msra.mxu0 0.0
  %1534 = vmatprep.subr.mxu0 0.0
  %1535 = vmatpush1.xpose.msra.mxu0 0.0
  %1536 = vmatprep.subr.mxu0 0.0
  %1537 = vmatpush1.xpose.msra.mxu0 0.0
  %1538 = vmatprep.subr.mxu0 0.0
  %1539 = vmatpush1.xpose.msra.mxu0 0.0
  %1540 = vmatprep.subr.mxu0 0.0
  %1541 = vmatpush1.xpose.msra.mxu0 0.0
  %1542 = vmatprep.subr.mxu0 0.0
  %1543 = vmatpush1.xpose.msra.mxu0 0.0
  %1544 = vmatprep.subr.mxu0 0.0
  %1545 = vmatpush1.xpose.msra.mxu0 0.0
  %1546 = vmatprep.subr.mxu0 0.0
  %1547 = vmatpush1.xpose.msra.mxu0 0.0
  %1548 = vmatprep.subr.mxu0 0.0
  %1549 = vmatpush1.xpose.msra.mxu0 0.0
  %1550 = vmatprep.subr.mxu0 0.0
  %1551 = vmatpush1.xpose.msra.mxu0 0.0
  %1552 = vmatprep.mubr.f32.mxu0 0.0
  %1553 = vmatmul.mubr.f32.gmra.mrb[0].mxu0 %v1484
  %v1554 = vpop.f32.mrb[0].mxu0
  %v1555 = vadd.f32 0.0, %v1554
  %v1556 = vpop.f32.mrb[0].mxu0
  %1557 = vdwg.mxu0
  %v1558 = vmul.f32 %v1555, 0.25
  %v1559 = vsel %vm396, %v1558, -inf
  %1560 = vmax.xlane.f32.xlu0 %v1559
  %v1561 = vpop.xlane.xlu0 %1560
  %v1562 = vsub.f32 %v1558, %v1561
  %v1563 = vmul.f32 %v1562, 1.442695
  %v1564 = vpow.pop %v1563
  %v1565 = vsel %vm396, %v1564, 0.0
  %1566 = vadd.xlane.f32.xlu0 %v1565
  %v1567 = vpop.xlane.xlu0 %1566
  %v1568 = vrcp.pop %v1567
  %v1569 = vmul.f32 %v1564, %v1568
  %1570 = vrot.lane.b32.xlu0 %v1473, 64
  %v1571 = vpop.permute.xlu0 %1570
  %v1574 = vsel %vm396, %v1569, 0
  %1576 = vmatprep.subr.mxu0 0.0
  %1577 = vmatpush1.msra.mxu0 %v1571
  %1578 = vmatprep.subr.mxu0 0.0
  %1579 = vmatpush1.msra.mxu0 0.0
  %1580 = vmatprep.subr.mxu0 0.0
  %1581 = vmatpush1.msra.mxu0 0.0
  %1582 = vmatprep.subr.mxu0 0.0
  %1583 = vmatpush1.msra.mxu0 0.0
  %1584 = vmatprep.subr.mxu0 0.0
  %1585 = vmatpush1.msra.mxu0 0.0
  %1586 = vmatprep.subr.mxu0 0.0
  %1587 = vmatpush1.msra.mxu0 0.0
  %1588 = vmatprep.subr.mxu0 0.0
  %1589 = vmatpush1.msra.mxu0 0.0
  %1590 = vmatprep.subr.mxu0 0.0
  %1591 = vmatpush1.msra.mxu0 0.0
  %1592 = vmatprep.subr.mxu0 0.0
  %1593 = vmatpush1.msra.mxu0 0.0
  %1594 = vmatprep.subr.mxu0 0.0
  %1595 = vmatpush1.msra.mxu0 0.0
  %1596 = vmatprep.subr.mxu0 0.0
  %1597 = vmatpush1.msra.mxu0 0.0
  %1598 = vmatprep.subr.mxu0 0.0
  %1599 = vmatpush1.msra.mxu0 0.0
  %1600 = vmatprep.subr.mxu0 0.0
  %1601 = vmatpush1.msra.mxu0 0.0
  %1602 = vmatprep.subr.mxu0 0.0
  %1603 = vmatpush1.msra.mxu0 0.0
  %1604 = vmatprep.subr.mxu0 0.0
  %1605 = vmatpush1.msra.mxu0 0.0
  %1606 = vmatprep.subr.mxu0 0.0
  %1607 = vmatpush1.msra.mxu0 0.0
  %1608 = vmatprep.subr.mxu0 0.0
  %1609 = vmatpush1.msra.mxu0 0.0
  %1610 = vmatprep.subr.mxu0 0.0
  %1611 = vmatpush1.msra.mxu0 0.0
  %1612 = vmatprep.subr.mxu0 0.0
  %1613 = vmatpush1.msra.mxu0 0.0
  %1614 = vmatprep.subr.mxu0 0.0
  %1615 = vmatpush1.msra.mxu0 0.0
  %1616 = vmatprep.subr.mxu0 0.0
  %1617 = vmatpush1.msra.mxu0 0.0
  %1618 = vmatprep.subr.mxu0 0.0
  %1619 = vmatpush1.msra.mxu0 0.0
  %1620 = vmatprep.subr.mxu0 0.0
  %1621 = vmatpush1.msra.mxu0 0.0
  %1622 = vmatprep.subr.mxu0 0.0
  %1623 = vmatpush1.msra.mxu0 0.0
  %1624 = vmatprep.subr.mxu0 0.0
  %1625 = vmatpush1.msra.mxu0 0.0
  %1626 = vmatprep.subr.mxu0 0.0
  %1627 = vmatpush1.msra.mxu0 0.0
  %1628 = vmatprep.subr.mxu0 0.0
  %1629 = vmatpush1.msra.mxu0 0.0
  %1630 = vmatprep.subr.mxu0 0.0
  %1631 = vmatpush1.msra.mxu0 0.0
  %1632 = vmatprep.subr.mxu0 0.0
  %1633 = vmatpush1.msra.mxu0 0.0
  %1634 = vmatprep.subr.mxu0 0.0
  %1635 = vmatpush1.msra.mxu0 0.0
  %1636 = vmatprep.subr.mxu0 0.0
  %1637 = vmatpush1.msra.mxu0 0.0
  %1638 = vmatprep.subr.mxu0 0.0
  %1639 = vmatpush1.msra.mxu0 0.0
  %1640 = vmatprep.mubr.f32.mxu0 0.0
  %1641 = vmatmul.mubr.f32.gmra.mrb[0].mxu0 %v1574
  %v1642 = vpop.f32.mrb[0].mxu0
  %v1643 = vadd.f32 0.0, %v1642
  %v1644 = vpop.f32.mrb[0].mxu0
  %1645 = vdwg.mxu0
  %1646 = vst.msk [vmem:[#allocation2] sm:$0xff] %vm320, %v1643
  %1647 = vrot.lane.b32.xlu0 %v1473, 112
  %v1648 = vpop.permute.xlu0 %1647
  %1649 = vrot.lane.b32.xlu0 %v1473, 80
  %v1650 = vpop.permute.xlu0 %1649
  %v1651 = vsel %vm320, %v1648, 0
  %v1653 = vsel %vm320, %v1650, 0
  %1655 = vmatprep.subr.mxu0 0.0
  %1656 = vmatpush1.xpose.msra.mxu0 %v1653
  %1657 = vmatprep.subr.mxu0 0.0
  %1658 = vmatpush1.xpose.msra.mxu0 0.0
  %1659 = vmatprep.subr.mxu0 0.0
  %1660 = vmatpush1.xpose.msra.mxu0 0.0
  %1661 = vmatprep.subr.mxu0 0.0
  %1662 = vmatpush1.xpose.msra.mxu0 0.0
  %1663 = vmatprep.subr.mxu0 0.0
  %1664 = vmatpush1.xpose.msra.mxu0 0.0
  %1665 = vmatprep.subr.mxu0 0.0
  %1666 = vmatpush1.xpose.msra.mxu0 0.0
  %1667 = vmatprep.subr.mxu0 0.0
  %1668 = vmatpush1.xpose.msra.mxu0 0.0
  %1669 = vmatprep.subr.mxu0 0.0
  %1670 = vmatpush1.xpose.msra.mxu0 0.0
  %1671 = vmatprep.subr.mxu0 0.0
  %1672 = vmatpush1.xpose.msra.mxu0 0.0
  %1673 = vmatprep.subr.mxu0 0.0
  %1674 = vmatpush1.xpose.msra.mxu0 0.0
  %1675 = vmatprep.subr.mxu0 0.0
  %1676 = vmatpush1.xpose.msra.mxu0 0.0
  %1677 = vmatprep.subr.mxu0 0.0
  %1678 = vmatpush1.xpose.msra.mxu0 0.0
  %1679 = vmatprep.subr.mxu0 0.0
  %1680 = vmatpush1.xpose.msra.mxu0 0.0
  %1681 = vmatprep.subr.mxu0 0.0
  %1682 = vmatpush1.xpose.msra.mxu0 0.0
  %1683 = vmatprep.subr.mxu0 0.0
  %1684 = vmatpush1.xpose.msra.mxu0 0.0
  %1685 = vmatprep.subr.mxu0 0.0
  %1686 = vmatpush1.xpose.msra.mxu0 0.0
  %1687 = vmatprep.subr.mxu0 0.0
  %1688 = vmatpush1.xpose.msra.mxu0 0.0
  %1689 = vmatprep.subr.mxu0 0.0
  %1690 = vmatpush1.xpose.msra.mxu0 0.0
  %1691 = vmatprep.subr.mxu0 0.0
  %1692 = vmatpush1.xpose.msra.mxu0 0.0
  %1693 = vmatprep.subr.mxu0 0.0
  %1694 = vmatpush1.xpose.msra.mxu0 0.0
  %1695 = vmatprep.subr.mxu0 0.0
  %1696 = vmatpush1.xpose.msra.mxu0 0.0
  %1697 = vmatprep.subr.mxu0 0.0
  %1698 = vmatpush1.xpose.msra.mxu0 0.0
  %1699 = vmatprep.subr.mxu0 0.0
  %1700 = vmatpush1.xpose.msra.mxu0 0.0
  %1701 = vmatprep.subr.mxu0 0.0
  %1702 = vmatpush1.xpose.msra.mxu0 0.0
  %1703 = vmatprep.subr.mxu0 0.0
  %1704 = vmatpush1.xpose.msra.mxu0 0.0
  %1705 = vmatprep.subr.mxu0 0.0
  %1706 = vmatpush1.xpose.msra.mxu0 0.0
  %1707 = vmatprep.subr.mxu0 0.0
  %1708 = vmatpush1.xpose.msra.mxu0 0.0
  %1709 = vmatprep.subr.mxu0 0.0
  %1710 = vmatpush1.xpose.msra.mxu0 0.0
  %1711 = vmatprep.subr.mxu0 0.0
  %1712 = vmatpush1.xpose.msra.mxu0 0.0
  %1713 = vmatprep.subr.mxu0 0.0
  %1714 = vmatpush1.xpose.msra.mxu0 0.0
  %1715 = vmatprep.subr.mxu0 0.0
  %1716 = vmatpush1.xpose.msra.mxu0 0.0
  %1717 = vmatprep.subr.mxu0 0.0
  %1718 = vmatpush1.xpose.msra.mxu0 0.0
  %1719 = vmatprep.mubr.f32.mxu0 0.0
  %1720 = vmatmul.mubr.f32.gmra.mrb[0].mxu0 %v1651
  %v1721 = vpop.f32.mrb[0].mxu0
  %v1722 = vadd.f32 0.0, %v1721
  %v1723 = vpop.f32.mrb[0].mxu0
  %1724 = vdwg.mxu0
  %v1725 = vmul.f32 %v1722, 0.25
  %v1726 = vsel %vm396, %v1725, -inf
  %1727 = vmax.xlane.f32.xlu0 %v1726
  %v1728 = vpop.xlane.xlu0 %1727
  %v1729 = vsub.f32 %v1725, %v1728
  %v1730 = vmul.f32 %v1729, 1.442695
  %v1731 = vpow.pop %v1730
  %v1732 = vsel %vm396, %v1731, 0.0
  %1733 = vadd.xlane.f32.xlu0 %v1732
  %v1734 = vpop.xlane.xlu0 %1733
  %v1735 = vrcp.pop %v1734
  %v1736 = vmul.f32 %v1731, %v1735
  %1737 = vrot.lane.b32.xlu0 %v1473, 48
  %v1738 = vpop.permute.xlu0 %1737
  %v1741 = vsel %vm396, %v1736, 0
  %1743 = vmatprep.subr.mxu0 0.0
  %1744 = vmatpush1.msra.mxu0 %v1738
  %1745 = vmatprep.subr.mxu0 0.0
  %1746 = vmatpush1.msra.mxu0 0.0
  %1747 = vmatprep.subr.mxu0 0.0
  %1748 = vmatpush1.msra.mxu0 0.0
  %1749 = vmatprep.subr.mxu0 0.0
  %1750 = vmatpush1.msra.mxu0 0.0
  %1751 = vmatprep.subr.mxu0 0.0
  %1752 = vmatpush1.msra.mxu0 0.0
  %1753 = vmatprep.subr.mxu0 0.0
  %1754 = vmatpush1.msra.mxu0 0.0
  %1755 = vmatprep.subr.mxu0 0.0
  %1756 = vmatpush1.msra.mxu0 0.0
  %1757 = vmatprep.subr.mxu0 0.0
  %1758 = vmatpush1.msra.mxu0 0.0
  %1759 = vmatprep.subr.mxu0 0.0
  %1760 = vmatpush1.msra.mxu0 0.0
  %1761 = vmatprep.subr.mxu0 0.0
  %1762 = vmatpush1.msra.mxu0 0.0
  %1763 = vmatprep.subr.mxu0 0.0
  %1764 = vmatpush1.msra.mxu0 0.0
  %1765 = vmatprep.subr.mxu0 0.0
  %1766 = vmatpush1.msra.mxu0 0.0
  %1767 = vmatprep.subr.mxu0 0.0
  %1768 = vmatpush1.msra.mxu0 0.0
  %1769 = vmatprep.subr.mxu0 0.0
  %1770 = vmatpush1.msra.mxu0 0.0
  %1771 = vmatprep.subr.mxu0 0.0
  %1772 = vmatpush1.msra.mxu0 0.0
  %1773 = vmatprep.subr.mxu0 0.0
  %1774 = vmatpush1.msra.mxu0 0.0
  %1775 = vmatprep.subr.mxu0 0.0
  %1776 = vmatpush1.msra.mxu0 0.0
  %1777 = vmatprep.subr.mxu0 0.0
  %1778 = vmatpush1.msra.mxu0 0.0
  %1779 = vmatprep.subr.mxu0 0.0
  %1780 = vmatpush1.msra.mxu0 0.0
  %1781 = vmatprep.subr.mxu0 0.0
  %1782 = vmatpush1.msra.mxu0 0.0
  %1783 = vmatprep.subr.mxu0 0.0
  %1784 = vmatpush1.msra.mxu0 0.0
  %1785 = vmatprep.subr.mxu0 0.0
  %1786 = vmatpush1.msra.mxu0 0.0
  %1787 = vmatprep.subr.mxu0 0.0
  %1788 = vmatpush1.msra.mxu0 0.0
  %1789 = vmatprep.subr.mxu0 0.0
  %1790 = vmatpush1.msra.mxu0 0.0
  %1791 = vmatprep.subr.mxu0 0.0
  %1792 = vmatpush1.msra.mxu0 0.0
  %1793 = vmatprep.subr.mxu0 0.0
  %1794 = vmatpush1.msra.mxu0 0.0
  %1795 = vmatprep.subr.mxu0 0.0
  %1796 = vmatpush1.msra.mxu0 0.0
  %1797 = vmatprep.subr.mxu0 0.0
  %1798 = vmatpush1.msra.mxu0 0.0
  %1799 = vmatprep.subr.mxu0 0.0
  %1800 = vmatpush1.msra.mxu0 0.0
  %1801 = vmatprep.subr.mxu0 0.0
  %1802 = vmatpush1.msra.mxu0 0.0
  %1803 = vmatprep.subr.mxu0 0.0
  %1804 = vmatpush1.msra.mxu0 0.0
  %1805 = vmatprep.subr.mxu0 0.0
  %1806 = vmatpush1.msra.mxu0 0.0
  %1807 = vmatprep.mubr.f32.mxu0 0.0
  %1808 = vmatmul.mubr.f32.gmra.mrb[0].mxu0 %v1741
  %v1809 = vpop.f32.mrb[0].mxu0
  %v1810 = vadd.f32 0.0, %v1809
  %v1811 = vpop.f32.mrb[0].mxu0
  %1812 = vdwg.mxu0
  %1814 = vrot.lane.b32.xlu0 %v1810, 16
  %v1815 = vpop.permute.xlu0 %1814
  %1817 = vst.msk [vmem:[#allocation2] sm:$0xff] %vm655, %v1815
  %1819 = vrot.lane.b32.xlu0 %v1478, 96
  %v1820 = vpop.permute.xlu0 %1819
  %v1821 = vsel %vm320, %v1478, 0
  %v1823 = vsel %vm320, %v1820, 0
  %1825 = vmatprep.subr.mxu0 0.0
  %1826 = vmatpush1.xpose.msra.mxu0 %v1823
  %1827 = vmatprep.subr.mxu0 0.0
  %1828 = vmatpush1.xpose.msra.mxu0 0.0
  %1829 = vmatprep.subr.mxu0 0.0
  %1830 = vmatpush1.xpose.msra.mxu0 0.0
  %1831 = vmatprep.subr.mxu0 0.0
  %1832 = vmatpush1.xpose.msra.mxu0 0.0
  %1833 = vmatprep.subr.mxu0 0.0
  %1834 = vmatpush1.xpose.msra.mxu0 0.0
  %1835 = vmatprep.subr.mxu0 0.0
  %1836 = vmatpush1.xpose.msra.mxu0 0.0
  %1837 = vmatprep.subr.mxu0 0.0
  %1838 = vmatpush1.xpose.msra.mxu0 0.0
  %1839 = vmatprep.subr.mxu0 0.0
  %1840 = vmatpush1.xpose.msra.mxu0 0.0
  %1841 = vmatprep.subr.mxu0 0.0
  %1842 = vmatpush1.xpose.msra.mxu0 0.0
  %1843 = vmatprep.subr.mxu0 0.0
  %1844 = vmatpush1.xpose.msra.mxu0 0.0
  %1845 = vmatprep.subr.mxu0 0.0
  %1846 = vmatpush1.xpose.msra.mxu0 0.0
  %1847 = vmatprep.subr.mxu0 0.0
  %1848 = vmatpush1.xpose.msra.mxu0 0.0
  %1849 = vmatprep.subr.mxu0 0.0
  %1850 = vmatpush1.xpose.msra.mxu0 0.0
  %1851 = vmatprep.subr.mxu0 0.0
  %1852 = vmatpush1.xpose.msra.mxu0 0.0
  %1853 = vmatprep.subr.mxu0 0.0
  %1854 = vmatpush1.xpose.msra.mxu0 0.0
  %1855 = vmatprep.subr.mxu0 0.0
  %1856 = vmatpush1.xpose.msra.mxu0 0.0
  %1857 = vmatprep.subr.mxu0 0.0
  %1858 = vmatpush1.xpose.msra.mxu0 0.0
  %1859 = vmatprep.subr.mxu0 0.0
  %1860 = vmatpush1.xpose.msra.mxu0 0.0
  %1861 = vmatprep.subr.mxu0 0.0
  %1862 = vmatpush1.xpose.msra.mxu0 0.0
  %1863 = vmatprep.subr.mxu0 0.0
  %1864 = vmatpush1.xpose.msra.mxu0 0.0
  %1865 = vmatprep.subr.mxu0 0.0
  %1866 = vmatpush1.xpose.msra.mxu0 0.0
  %1867 = vmatprep.subr.mxu0 0.0
  %1868 = vmatpush1.xpose.msra.mxu0 0.0
  %1869 = vmatprep.subr.mxu0 0.0
  %1870 = vmatpush1.xpose.msra.mxu0 0.0
  %1871 = vmatprep.subr.mxu0 0.0
  %1872 = vmatpush1.xpose.msra.mxu0 0.0
  %1873 = vmatprep.subr.mxu0 0.0
  %1874 = vmatpush1.xpose.msra.mxu0 0.0
  %1875 = vmatprep.subr.mxu0 0.0
  %1876 = vmatpush1.xpose.msra.mxu0 0.0
  %1877 = vmatprep.subr.mxu0 0.0
  %1878 = vmatpush1.xpose.msra.mxu0 0.0
  %1879 = vmatprep.subr.mxu0 0.0
  %1880 = vmatpush1.xpose.msra.mxu0 0.0
  %1881 = vmatprep.subr.mxu0 0.0
  %1882 = vmatpush1.xpose.msra.mxu0 0.0
  %1883 = vmatprep.subr.mxu0 0.0
  %1884 = vmatpush1.xpose.msra.mxu0 0.0
  %1885 = vmatprep.subr.mxu0 0.0
  %1886 = vmatpush1.xpose.msra.mxu0 0.0
  %1887 = vmatprep.subr.mxu0 0.0
  %1888 = vmatpush1.xpose.msra.mxu0 0.0
  %1889 = vmatprep.mubr.f32.mxu0 0.0
  %1890 = vmatmul.mubr.f32.gmra.mrb[0].mxu0 %v1821
  %v1891 = vpop.f32.mrb[0].mxu0
  %v1892 = vadd.f32 0.0, %v1891
  %v1893 = vpop.f32.mrb[0].mxu0
  %1894 = vdwg.mxu0
  %v1895 = vmul.f32 %v1892, 0.25
  %v1896 = vsel %vm396, %v1895, -inf
  %1897 = vmax.xlane.f32.xlu0 %v1896
  %v1898 = vpop.xlane.xlu0 %1897
  %v1899 = vsub.f32 %v1895, %v1898
  %v1900 = vmul.f32 %v1899, 1.442695
  %v1901 = vpow.pop %v1900
  %v1902 = vsel %vm396, %v1901, 0.0
  %1903 = vadd.xlane.f32.xlu0 %v1902
  %v1904 = vpop.xlane.xlu0 %1903
  %v1905 = vrcp.pop %v1904
  %v1906 = vmul.f32 %v1901, %v1905
  %1907 = vrot.lane.b32.xlu0 %v1478, 64
  %v1908 = vpop.permute.xlu0 %1907
  %v1911 = vsel %vm396, %v1906, 0
  %1913 = vmatprep.subr.mxu0 0.0
  %1914 = vmatpush1.msra.mxu0 %v1908
  %1915 = vmatprep.subr.mxu0 0.0
  %1916 = vmatpush1.msra.mxu0 0.0
  %1917 = vmatprep.subr.mxu0 0.0
  %1918 = vmatpush1.msra.mxu0 0.0
  %1919 = vmatprep.subr.mxu0 0.0
  %1920 = vmatpush1.msra.mxu0 0.0
  %1921 = vmatprep.subr.mxu0 0.0
  %1922 = vmatpush1.msra.mxu0 0.0
  %1923 = vmatprep.subr.mxu0 0.0
  %1924 = vmatpush1.msra.mxu0 0.0
  %1925 = vmatprep.subr.mxu0 0.0
  %1926 = vmatpush1.msra.mxu0 0.0
  %1927 = vmatprep.subr.mxu0 0.0
  %1928 = vmatpush1.msra.mxu0 0.0
  %1929 = vmatprep.subr.mxu0 0.0
  %1930 = vmatpush1.msra.mxu0 0.0
  %1931 = vmatprep.subr.mxu0 0.0
  %1932 = vmatpush1.msra.mxu0 0.0
  %1933 = vmatprep.subr.mxu0 0.0
  %1934 = vmatpush1.msra.mxu0 0.0
  %1935 = vmatprep.subr.mxu0 0.0
  %1936 = vmatpush1.msra.mxu0 0.0
  %1937 = vmatprep.subr.mxu0 0.0
  %1938 = vmatpush1.msra.mxu0 0.0
  %1939 = vmatprep.subr.mxu0 0.0
  %1940 = vmatpush1.msra.mxu0 0.0
  %1941 = vmatprep.subr.mxu0 0.0
  %1942 = vmatpush1.msra.mxu0 0.0
  %1943 = vmatprep.subr.mxu0 0.0
  %1944 = vmatpush1.msra.mxu0 0.0
  %1945 = vmatprep.subr.mxu0 0.0
  %1946 = vmatpush1.msra.mxu0 0.0
  %1947 = vmatprep.subr.mxu0 0.0
  %1948 = vmatpush1.msra.mxu0 0.0
  %1949 = vmatprep.subr.mxu0 0.0
  %1950 = vmatpush1.msra.mxu0 0.0
  %1951 = vmatprep.subr.mxu0 0.0
  %1952 = vmatpush1.msra.mxu0 0.0
  %1953 = vmatprep.subr.mxu0 0.0
  %1954 = vmatpush1.msra.mxu0 0.0
  %1955 = vmatprep.subr.mxu0 0.0
  %1956 = vmatpush1.msra.mxu0 0.0
  %1957 = vmatprep.subr.mxu0 0.0
  %1958 = vmatpush1.msra.mxu0 0.0
  %1959 = vmatprep.subr.mxu0 0.0
  %1960 = vmatpush1.msra.mxu0 0.0
  %1961 = vmatprep.subr.mxu0 0.0
  %1962 = vmatpush1.msra.mxu0 0.0
  %1963 = vmatprep.subr.mxu0 0.0
  %1964 = vmatpush1.msra.mxu0 0.0
  %1965 = vmatprep.subr.mxu0 0.0
  %1966 = vmatpush1.msra.mxu0 0.0
  %1967 = vmatprep.subr.mxu0 0.0
  %1968 = vmatpush1.msra.mxu0 0.0
  %1969 = vmatprep.subr.mxu0 0.0
  %1970 = vmatpush1.msra.mxu0 0.0
  %1971 = vmatprep.subr.mxu0 0.0
  %1972 = vmatpush1.msra.mxu0 0.0
  %1973 = vmatprep.subr.mxu0 0.0
  %1974 = vmatpush1.msra.mxu0 0.0
  %1975 = vmatprep.subr.mxu0 0.0
  %1976 = vmatpush1.msra.mxu0 0.0
  %1977 = vmatprep.mubr.f32.mxu0 0.0
  %1978 = vmatmul.mubr.f32.gmra.mrb[0].mxu0 %v1911
  %v1979 = vpop.f32.mrb[0].mxu0
  %v1980 = vadd.f32 0.0, %v1979
  %v1981 = vpop.f32.mrb[0].mxu0
  %1982 = vdwg.mxu0
  %1983 = vst.msk [vmem:[#allocation2 + $0x8] sm:$0xff] %vm320, %v1980
  %1984 = vrot.lane.b32.xlu0 %v1478, 112
  %v1985 = vpop.permute.xlu0 %1984
  %1986 = vrot.lane.b32.xlu0 %v1478, 80
  %v1987 = vpop.permute.xlu0 %1986
  %v1988 = vsel %vm320, %v1985, 0
  %v1990 = vsel %vm320, %v1987, 0
  %1992 = vmatprep.subr.mxu0 0.0
  %1993 = vmatpush1.xpose.msra.mxu0 %v1990
  %1994 = vmatprep.subr.mxu0 0.0
  %1995 = vmatpush1.xpose.msra.mxu0 0.0
  %1996 = vmatprep.subr.mxu0 0.0
  %1997 = vmatpush1.xpose.msra.mxu0 0.0
  %1998 = vmatprep.subr.mxu0 0.0
  %1999 = vmatpush1.xpose.msra.mxu0 0.0
  %2000 = vmatprep.subr.mxu0 0.0
  %2001 = vmatpush1.xpose.msra.mxu0 0.0
  %2002 = vmatprep.subr.mxu0 0.0
  %2003 = vmatpush1.xpose.msra.mxu0 0.0
  %2004 = vmatprep.subr.mxu0 0.0
  %2005 = vmatpush1.xpose.msra.mxu0 0.0
  %2006 = vmatprep.subr.mxu0 0.0
  %2007 = vmatpush1.xpose.msra.mxu0 0.0
  %2008 = vmatprep.subr.mxu0 0.0
  %2009 = vmatpush1.xpose.msra.mxu0 0.0
  %2010 = vmatprep.subr.mxu0 0.0
  %2011 = vmatpush1.xpose.msra.mxu0 0.0
  %2012 = vmatprep.subr.mxu0 0.0
  %2013 = vmatpush1.xpose.msra.mxu0 0.0
  %2014 = vmatprep.subr.mxu0 0.0
  %2015 = vmatpush1.xpose.msra.mxu0 0.0
  %2016 = vmatprep.subr.mxu0 0.0
  %2017 = vmatpush1.xpose.msra.mxu0 0.0
  %2018 = vmatprep.subr.mxu0 0.0
  %2019 = vmatpush1.xpose.msra.mxu0 0.0
  %2020 = vmatprep.subr.mxu0 0.0
  %2021 = vmatpush1.xpose.msra.mxu0 0.0
  %2022 = vmatprep.subr.mxu0 0.0
  %2023 = vmatpush1.xpose.msra.mxu0 0.0
  %2024 = vmatprep.subr.mxu0 0.0
  %2025 = vmatpush1.xpose.msra.mxu0 0.0
  %2026 = vmatprep.subr.mxu0 0.0
  %2027 = vmatpush1.xpose.msra.mxu0 0.0
  %2028 = vmatprep.subr.mxu0 0.0
  %2029 = vmatpush1.xpose.msra.mxu0 0.0
  %2030 = vmatprep.subr.mxu0 0.0
  %2031 = vmatpush1.xpose.msra.mxu0 0.0
  %2032 = vmatprep.subr.mxu0 0.0
  %2033 = vmatpush1.xpose.msra.mxu0 0.0
  %2034 = vmatprep.subr.mxu0 0.0
  %2035 = vmatpush1.xpose.msra.mxu0 0.0
  %2036 = vmatprep.subr.mxu0 0.0
  %2037 = vmatpush1.xpose.msra.mxu0 0.0
  %2038 = vmatprep.subr.mxu0 0.0
  %2039 = vmatpush1.xpose.msra.mxu0 0.0
  %2040 = vmatprep.subr.mxu0 0.0
  %2041 = vmatpush1.xpose.msra.mxu0 0.0
  %2042 = vmatprep.subr.mxu0 0.0
  %2043 = vmatpush1.xpose.msra.mxu0 0.0
  %2044 = vmatprep.subr.mxu0 0.0
  %2045 = vmatpush1.xpose.msra.mxu0 0.0
  %2046 = vmatprep.subr.mxu0 0.0
  %2047 = vmatpush1.xpose.msra.mxu0 0.0
  %2048 = vmatprep.subr.mxu0 0.0
  %2049 = vmatpush1.xpose.msra.mxu0 0.0
  %2050 = vmatprep.subr.mxu0 0.0
  %2051 = vmatpush1.xpose.msra.mxu0 0.0
  %2052 = vmatprep.subr.mxu0 0.0
  %2053 = vmatpush1.xpose.msra.mxu0 0.0
  %2054 = vmatprep.subr.mxu0 0.0
  %2055 = vmatpush1.xpose.msra.mxu0 0.0
  %2056 = vmatprep.mubr.f32.mxu0 0.0
  %2057 = vmatmul.mubr.f32.gmra.mrb[0].mxu0 %v1988
  %v2058 = vpop.f32.mrb[0].mxu0
  %v2059 = vadd.f32 0.0, %v2058
  %v2060 = vpop.f32.mrb[0].mxu0
  %2061 = vdwg.mxu0
  %v2062 = vmul.f32 %v2059, 0.25
  %v2063 = vsel %vm396, %v2062, -inf
  %2064 = vmax.xlane.f32.xlu0 %v2063
  %v2065 = vpop.xlane.xlu0 %2064
  %v2066 = vsub.f32 %v2062, %v2065
  %v2067 = vmul.f32 %v2066, 1.442695
  %v2068 = vpow.pop %v2067
  %v2069 = vsel %vm396, %v2068, 0.0
  %2070 = vadd.xlane.f32.xlu0 %v2069
  %v2071 = vpop.xlane.xlu0 %2070
  %v2072 = vrcp.pop %v2071
  %v2073 = vmul.f32 %v2068, %v2072
  %2074 = vrot.lane.b32.xlu0 %v1478, 48
  %v2075 = vpop.permute.xlu0 %2074
  %v2078 = vsel %vm396, %v2073, 0
  %2080 = vmatprep.subr.mxu0 0.0
  %2081 = vmatpush1.msra.mxu0 %v2075
  %2082 = vmatprep.subr.mxu0 0.0
  %2083 = vmatpush1.msra.mxu0 0.0
  %2084 = vmatprep.subr.mxu0 0.0
  %2085 = vmatpush1.msra.mxu0 0.0
  %2086 = vmatprep.subr.mxu0 0.0
  %2087 = vmatpush1.msra.mxu0 0.0
  %2088 = vmatprep.subr.mxu0 0.0
  %2089 = vmatpush1.msra.mxu0 0.0
  %2090 = vmatprep.subr.mxu0 0.0
  %2091 = vmatpush1.msra.mxu0 0.0
  %2092 = vmatprep.subr.mxu0 0.0
  %2093 = vmatpush1.msra.mxu0 0.0
  %2094 = vmatprep.subr.mxu0 0.0
  %2095 = vmatpush1.msra.mxu0 0.0
  %2096 = vmatprep.subr.mxu0 0.0
  %2097 = vmatpush1.msra.mxu0 0.0
  %2098 = vmatprep.subr.mxu0 0.0
  %2099 = vmatpush1.msra.mxu0 0.0
  %2100 = vmatprep.subr.mxu0 0.0
  %2101 = vmatpush1.msra.mxu0 0.0
  %2102 = vmatprep.subr.mxu0 0.0
  %2103 = vmatpush1.msra.mxu0 0.0
  %2104 = vmatprep.subr.mxu0 0.0
  %2105 = vmatpush1.msra.mxu0 0.0
  %2106 = vmatprep.subr.mxu0 0.0
  %2107 = vmatpush1.msra.mxu0 0.0
  %2108 = vmatprep.subr.mxu0 0.0
  %2109 = vmatpush1.msra.mxu0 0.0
  %2110 = vmatprep.subr.mxu0 0.0
  %2111 = vmatpush1.msra.mxu0 0.0
  %2112 = vmatprep.subr.mxu0 0.0
  %2113 = vmatpush1.msra.mxu0 0.0
  %2114 = vmatprep.subr.mxu0 0.0
  %2115 = vmatpush1.msra.mxu0 0.0
  %2116 = vmatprep.subr.mxu0 0.0
  %2117 = vmatpush1.msra.mxu0 0.0
  %2118 = vmatprep.subr.mxu0 0.0
  %2119 = vmatpush1.msra.mxu0 0.0
  %2120 = vmatprep.subr.mxu0 0.0
  %2121 = vmatpush1.msra.mxu0 0.0
  %2122 = vmatprep.subr.mxu0 0.0
  %2123 = vmatpush1.msra.mxu0 0.0
  %2124 = vmatprep.subr.mxu0 0.0
  %2125 = vmatpush1.msra.mxu0 0.0
  %2126 = vmatprep.subr.mxu0 0.0
  %2127 = vmatpush1.msra.mxu0 0.0
  %2128 = vmatprep.subr.mxu0 0.0
  %2129 = vmatpush1.msra.mxu0 0.0
  %2130 = vmatprep.subr.mxu0 0.0
  %2131 = vmatpush1.msra.mxu0 0.0
  %2132 = vmatprep.subr.mxu0 0.0
  %2133 = vmatpush1.msra.mxu0 0.0
  %2134 = vmatprep.subr.mxu0 0.0
  %2135 = vmatpush1.msra.mxu0 0.0
  %2136 = vmatprep.subr.mxu0 0.0
  %2137 = vmatpush1.msra.mxu0 0.0
  %2138 = vmatprep.subr.mxu0 0.0
  %2139 = vmatpush1.msra.mxu0 0.0
  %2140 = vmatprep.subr.mxu0 0.0
  %2141 = vmatpush1.msra.mxu0 0.0
  %2142 = vmatprep.subr.mxu0 0.0
  %2143 = vmatpush1.msra.mxu0 0.0
  %2144 = vmatprep.mubr.f32.mxu0 0.0
  %2145 = vmatmul.mubr.f32.gmra.mrb[0].mxu0 %v2078
  %v2146 = vpop.f32.mrb[0].mxu0
  %v2147 = vadd.f32 0.0, %v2146
  %v2148 = vpop.f32.mrb[0].mxu0
  %2149 = vdwg.mxu0
  %2151 = vrot.lane.b32.xlu0 %v2147, 16
  %v2152 = vpop.permute.xlu0 %2151
  %2154 = vst.msk [vmem:[#allocation2 + $0x8] sm:$0xff] %vm655, %v2152
  %v2155 = vld [vmem:[#allocation2] sm:$0xff]
  %v2156 = vld [vmem:[#allocation2 + $0x8] sm:$0xff]
  %s2157 = scalar_lea.vmem %s7, 32
  %v2158 = vld [vmem:[%s2157] sm:$0xff]
  %v2159 = vld [vmem:[%s2157 + $0x8] sm:$0xff]
  %v2160 = vld [vmem:[%s2157 + $0x10] sm:$0xff]
  %v2161 = vld [vmem:[%s2157 + $0x18] sm:$0xff]
  %s2162 = scalar_lea.vmem %s8, 1
  %v2163 = vld [vmem:[%s2162] sm:$0x1]
  %v2165 = vlaneseq
  %v2166 = vshrl.u32 %v2165, 7
  %v2167 = vsub.s32 0, %v2166
  %v2168 = vrot.slane %v2163, %v2167
  %v2171 = vsel %vm181, %v2155, 0
  %v2174 = vsel %vm181, %v2156, 0
  %2176 = vmatprep.subr.mxu0 0.0
  %2177 = vmatpush1.msra.mxu0 %v2158
  %2178 = vmatprep.subr.mxu0 0.0
  %2179 = vmatpush1.msra.mxu0 %v2159
  %2180 = vmatprep.subr.mxu0 0.0
  %2181 = vmatpush1.msra.mxu0 %v2160
  %2182 = vmatprep.subr.mxu0 0.0
  %2183 = vmatpush1.msra.mxu0 %v2161
  %2184 = vmatprep.subr.mxu0 0.0
  %2185 = vmatpush1.msra.mxu0 0.0
  %2186 = vmatprep.subr.mxu0 0.0
  %2187 = vmatpush1.msra.mxu0 0.0
  %2188 = vmatprep.subr.mxu0 0.0
  %2189 = vmatpush1.msra.mxu0 0.0
  %2190 = vmatprep.subr.mxu0 0.0
  %2191 = vmatpush1.msra.mxu0 0.0
  %2192 = vmatprep.subr.mxu0 0.0
  %2193 = vmatpush1.msra.mxu0 0.0
  %2194 = vmatprep.subr.mxu0 0.0
  %2195 = vmatpush1.msra.mxu0 0.0
  %2196 = vmatprep.subr.mxu0 0.0
  %2197 = vmatpush1.msra.mxu0 0.0
  %2198 = vmatprep.subr.mxu0 0.0
  %2199 = vmatpush1.msra.mxu0 0.0
  %2200 = vmatprep.subr.mxu0 0.0
  %2201 = vmatpush1.msra.mxu0 0.0
  %2202 = vmatprep.subr.mxu0 0.0
  %2203 = vmatpush1.msra.mxu0 0.0
  %2204 = vmatprep.subr.mxu0 0.0
  %2205 = vmatpush1.msra.mxu0 0.0
  %2206 = vmatprep.subr.mxu0 0.0
  %2207 = vmatpush1.msra.mxu0 0.0
  %2208 = vmatprep.subr.mxu0 0.0
  %2209 = vmatpush1.msra.mxu0 0.0
  %2210 = vmatprep.subr.mxu0 0.0
  %2211 = vmatpush1.msra.mxu0 0.0
  %2212 = vmatprep.subr.mxu0 0.0
  %2213 = vmatpush1.msra.mxu0 0.0
  %2214 = vmatprep.subr.mxu0 0.0
  %2215 = vmatpush1.msra.mxu0 0.0
  %2216 = vmatprep.subr.mxu0 0.0
  %2217 = vmatpush1.msra.mxu0 0.0
  %2218 = vmatprep.subr.mxu0 0.0
  %2219 = vmatpush1.msra.mxu0 0.0
  %2220 = vmatprep.subr.mxu0 0.0
  %2221 = vmatpush1.msra.mxu0 0.0
  %2222 = vmatprep.subr.mxu0 0.0
  %2223 = vmatpush1.msra.mxu0 0.0
  %2224 = vmatprep.subr.mxu0 0.0
  %2225 = vmatpush1.msra.mxu0 0.0
  %2226 = vmatprep.subr.mxu0 0.0
  %2227 = vmatpush1.msra.mxu0 0.0
  %2228 = vmatprep.subr.mxu0 0.0
  %2229 = vmatpush1.msra.mxu0 0.0
  %2230 = vmatprep.subr.mxu0 0.0
  %2231 = vmatpush1.msra.mxu0 0.0
  %2232 = vmatprep.subr.mxu0 0.0
  %2233 = vmatpush1.msra.mxu0 0.0
  %2234 = vmatprep.subr.mxu0 0.0
  %2235 = vmatpush1.msra.mxu0 0.0
  %2236 = vmatprep.subr.mxu0 0.0
  %2237 = vmatpush1.msra.mxu0 0.0
  %2238 = vmatprep.subr.mxu0 0.0
  %2239 = vmatpush1.msra.mxu0 0.0
  %2240 = vmatprep.mubr.f32.mxu0 0.0
  %2241 = vmatmul.mubr.f32.gmra.mrb[0].mxu0 %v2171
  %v2242 = vpop.f32.mrb[0].mxu0
  %v2243 = vadd.f32 %v2168, %v2242
  %v2244 = vpop.f32.mrb[0].mxu0
  %2245 = vmatprep.mubr.f32.mxu0 0.0
  %2246 = vmatmul.mubr.f32.gmra.mrb[0].mxu0 %v2174
  %v2247 = vpop.f32.mrb[0].mxu0
  %v2248 = vadd.f32 %v2168, %v2247
  %v2249 = vpop.f32.mrb[0].mxu0
  %2250 = vdwg.mxu0
  %v2251 = vadd.f32 %v2243, %v1385
  %v2252 = vadd.f32 %v2248, %v1386
  %s2253 = scalar_lea.vmem %s9, 1
  %v2254 = vld [vmem:[%s2253] sm:$0x1]
  %s2255 = scalar_lea.vmem %s10, 1
  %v2256 = vld [vmem:[%s2255] sm:$0x1]
  %v2257 = vsel %vm181, %v2251, 0.0
  %2258 = vadd.xlane.f32.xlu0 %v2257
  %v2259 = vpop.xlane.xlu0 %2258
  %v2260 = vsel %vm181, %v2252, 0.0
  %2261 = vadd.xlane.f32.xlu0 %v2260
  %v2262 = vpop.xlane.xlu0 %2261
  %v2263 = vmul.f32 %v2259, %v188
  %v2264 = vmul.f32 %v2262, %v188
  %v2265 = vsub.f32 %v2251, %v2263
  %v2266 = vsub.f32 %v2252, %v2264
  %v2267 = vmul.f32 %v2265, %v2265
  %v2268 = vmul.f32 %v2266, %v2266
  %v2269 = vsel %vm181, %v2267, 0.0
  %2270 = vadd.xlane.f32.xlu0 %v2269
  %v2271 = vpop.xlane.xlu0 %2270
  %v2272 = vsel %vm181, %v2268, 0.0
  %2273 = vadd.xlane.f32.xlu0 %v2272
  %v2274 = vpop.xlane.xlu0 %2273
  %v2275 = vmul.f32 %v2271, %v188
  %v2276 = vmul.f32 %v2274, %v188
  %v2277 = vadd.f32 %v2275, 1e-12
  %v2278 = vadd.f32 %v2276, 1e-12
  %v2279 = vrsqrt.pop %v2277
  %v2280 = vrsqrt.pop %v2278
  %v2281 = vmul.f32 %v2265, %v2279
  %v2282 = vmul.f32 %v2266, %v2280
  %v2284 = vlaneseq
  %v2285 = vshrl.u32 %v2284, 7
  %v2286 = vsub.s32 0, %v2285
  %v2287 = vrot.slane %v2254, %v2286
  %v2289 = vmul.f32 %v2281, %v2287
  %v2290 = vmul.f32 %v2282, %v2287
  %v2292 = vlaneseq
  %v2293 = vshrl.u32 %v2292, 7
  %v2294 = vsub.s32 0, %v2293
  %v2295 = vrot.slane %v2256, %v2294
  %v2297 = vadd.f32 %v2289, %v2295
  %v2298 = vadd.f32 %v2290, %v2295
  %s2299 = scalar_lea.vmem %s11, 32
  %v2300 = vld [vmem:[%s2299] sm:$0xff]
  %v2301 = vld [vmem:[%s2299 + $0x8] sm:$0xff]
  %v2302 = vld [vmem:[%s2299 + $0x10] sm:$0xff]
  %v2303 = vld [vmem:[%s2299 + $0x18] sm:$0xff]
  %s2304 = scalar_lea.vmem %s12, 1
  %v2305 = vld [vmem:[%s2304] sm:$0x1]
  %v2307 = vlaneseq
  %v2308 = vshrl.u32 %v2307, 7
  %v2309 = vsub.s32 0, %v2308
  %v2310 = vrot.slane %v2305, %v2309
  %v2313 = vsel %vm181, %v2297, 0
  %v2316 = vsel %vm181, %v2298, 0
  %2318 = vmatprep.subr.mxu0 0.0
  %2319 = vmatpush1.msra.mxu0 %v2300
  %2320 = vmatprep.subr.mxu0 0.0
  %2321 = vmatpush1.msra.mxu0 %v2301
  %2322 = vmatprep.subr.mxu0 0.0
  %2323 = vmatpush1.msra.mxu0 %v2302
  %2324 = vmatprep.subr.mxu0 0.0
  %2325 = vmatpush1.msra.mxu0 %v2303
  %2326 = vmatprep.subr.mxu0 0.0
  %2327 = vmatpush1.msra.mxu0 0.0
  %2328 = vmatprep.subr.mxu0 0.0
  %2329 = vmatpush1.msra.mxu0 0.0
  %2330 = vmatprep.subr.mxu0 0.0
  %2331 = vmatpush1.msra.mxu0 0.0
  %2332 = vmatprep.subr.mxu0 0.0
  %2333 = vmatpush1.msra.mxu0 0.0
  %2334 = vmatprep.subr.mxu0 0.0
  %2335 = vmatpush1.msra.mxu0 0.0
  %2336 = vmatprep.subr.mxu0 0.0
  %2337 = vmatpush1.msra.mxu0 0.0
  %2338 = vmatprep.subr.mxu0 0.0
  %2339 = vmatpush1.msra.mxu0 0.0
  %2340 = vmatprep.subr.mxu0 0.0
  %2341 = vmatpush1.msra.mxu0 0.0
  %2342 = vmatprep.subr.mxu0 0.0
  %2343 = vmatpush1.msra.mxu0 0.0
  %2344 = vmatprep.subr.mxu0 0.0
  %2345 = vmatpush1.msra.mxu0 0.0
  %2346 = vmatprep.subr.mxu0 0.0
  %2347 = vmatpush1.msra.mxu0 0.0
  %2348 = vmatprep.subr.mxu0 0.0
  %2349 = vmatpush1.msra.mxu0 0.0
  %2350 = vmatprep.subr.mxu0 0.0
  %2351 = vmatpush1.msra.mxu0 0.0
  %2352 = vmatprep.subr.mxu0 0.0
  %2353 = vmatpush1.msra.mxu0 0.0
  %2354 = vmatprep.subr.mxu0 0.0
  %2355 = vmatpush1.msra.mxu0 0.0
  %2356 = vmatprep.subr.mxu0 0.0
  %2357 = vmatpush1.msra.mxu0 0.0
  %2358 = vmatprep.subr.mxu0 0.0
  %2359 = vmatpush1.msra.mxu0 0.0
  %2360 = vmatprep.subr.mxu0 0.0
  %2361 = vmatpush1.msra.mxu0 0.0
  %2362 = vmatprep.subr.mxu0 0.0
  %2363 = vmatpush1.msra.mxu0 0.0
  %2364 = vmatprep.subr.mxu0 0.0
  %2365 = vmatpush1.msra.mxu0 0.0
  %2366 = vmatprep.subr.mxu0 0.0
  %2367 = vmatpush1.msra.mxu0 0.0
  %2368 = vmatprep.subr.mxu0 0.0
  %2369 = vmatpush1.msra.mxu0 0.0
  %2370 = vmatprep.subr.mxu0 0.0
  %2371 = vmatpush1.msra.mxu0 0.0
  %2372 = vmatprep.subr.mxu0 0.0
  %2373 = vmatpush1.msra.mxu0 0.0
  %2374 = vmatprep.subr.mxu0 0.0
  %2375 = vmatpush1.msra.mxu0 0.0
  %2376 = vmatprep.subr.mxu0 0.0
  %2377 = vmatpush1.msra.mxu0 0.0
  %2378 = vmatprep.subr.mxu0 0.0
  %2379 = vmatpush1.msra.mxu0 0.0
  %2380 = vmatprep.subr.mxu0 0.0
  %2381 = vmatpush1.msra.mxu0 0.0
  %2382 = vmatprep.mubr.f32.mxu0 0.0
  %2383 = vmatmul.mubr.f32.gmra.mrb[0].mxu0 %v2313
  %v2384 = vpop.f32.mrb[0].mxu0
  %v2385 = vadd.f32 %v2310, %v2384
  %v2386 = vpop.f32.mrb[0].mxu0
  %2387 = vmatprep.mubr.f32.mxu0 0.0
  %2388 = vmatmul.mubr.f32.gmra.mrb[0].mxu0 %v2316
  %v2389 = vpop.f32.mrb[0].mxu0
  %v2390 = vadd.f32 %v2310, %v2389
  %v2391 = vpop.f32.mrb[0].mxu0
  %2392 = vdwg.mxu0
  %v2393 = vmul.f32 %v2385, %v2385
  %v2394 = vmul.f32 %v2390, %v2390
  %v2395 = vmul.f32 %v2385, %v2393
  %v2396 = vmul.f32 %v2390, %v2394
  %v2397 = vmul.f32 %v2395, 0.044715
  %v2398 = vmul.f32 %v2396, 0.044715
  %v2399 = vadd.f32 %v2385, %v2397
  %v2400 = vadd.f32 %v2390, %v2398
  %v2401 = vmul.f32 %v2399, 0.7978846
  %v2402 = vmul.f32 %v2400, 0.7978846
  %v2403 = vtanh.pop %v2401
  %v2404 = vtanh.pop %v2402
  %v2405 = vadd.f32 %v2403, 1.0
  %v2406 = vadd.f32 %v2404, 1.0
  %v2407 = vmul.f32 %v2405, 0.5
  %v2408 = vmul.f32 %v2406, 0.5
  %v2409 = vmul.f32 %v2385, %v2407
  %v2410 = vmul.f32 %v2390, %v2408
  %s2411 = scalar_lea.vmem %s13, 64
  %v2412 = vld [vmem:[%s2411] sm:$0xff]
  %v2413 = vld [vmem:[%s2411 + $0x8] sm:$0xff]
  %v2414 = vld [vmem:[%s2411 + $0x10] sm:$0xff]
  %v2415 = vld [vmem:[%s2411 + $0x18] sm:$0xff]
  %v2416 = vld [vmem:[%s2411 + $0x20] sm:$0xff]
  %v2417 = vld [vmem:[%s2411 + $0x28] sm:$0xff]
  %v2418 = vld [vmem:[%s2411 + $0x30] sm:$0xff]
  %v2419 = vld [vmem:[%s2411 + $0x38] sm:$0xff]
  %s2420 = scalar_lea.vmem %s14, 1
  %v2421 = vld [vmem:[%s2420] sm:$0x1]
  %v2423 = vlaneseq
  %v2424 = vshrl.u32 %v2423, 7
  %v2425 = vsub.s32 0, %v2424
  %v2426 = vrot.slane %v2421, %v2425
  %v2429 = vsel %vm1259, %v2409, 0
  %v2432 = vsel %vm1259, %v2410, 0
  %2434 = vmatprep.subr.mxu0 0.0
  %2435 = vmatpush1.msra.mxu0 %v2412
  %2436 = vmatprep.subr.mxu0 0.0
  %2437 = vmatpush1.msra.mxu0 %v2413
  %2438 = vmatprep.subr.mxu0 0.0
  %2439 = vmatpush1.msra.mxu0 %v2414
  %2440 = vmatprep.subr.mxu0 0.0
  %2441 = vmatpush1.msra.mxu0 %v2415
  %2442 = vmatprep.subr.mxu0 0.0
  %2443 = vmatpush1.msra.mxu0 %v2416
  %2444 = vmatprep.subr.mxu0 0.0
  %2445 = vmatpush1.msra.mxu0 %v2417
  %2446 = vmatprep.subr.mxu0 0.0
  %2447 = vmatpush1.msra.mxu0 %v2418
  %2448 = vmatprep.subr.mxu0 0.0
  %2449 = vmatpush1.msra.mxu0 %v2419
  %2450 = vmatprep.subr.mxu0 0.0
  %2451 = vmatpush1.msra.mxu0 0.0
  %2452 = vmatprep.subr.mxu0 0.0
  %2453 = vmatpush1.msra.mxu0 0.0
  %2454 = vmatprep.subr.mxu0 0.0
  %2455 = vmatpush1.msra.mxu0 0.0
  %2456 = vmatprep.subr.mxu0 0.0
  %2457 = vmatpush1.msra.mxu0 0.0
  %2458 = vmatprep.subr.mxu0 0.0
  %2459 = vmatpush1.msra.mxu0 0.0
  %2460 = vmatprep.subr.mxu0 0.0
  %2461 = vmatpush1.msra.mxu0 0.0
  %2462 = vmatprep.subr.mxu0 0.0
  %2463 = vmatpush1.msra.mxu0 0.0
  %2464 = vmatprep.subr.mxu0 0.0
  %2465 = vmatpush1.msra.mxu0 0.0
  %2466 = vmatprep.subr.mxu0 0.0
  %2467 = vmatpush1.msra.mxu0 0.0
  %2468 = vmatprep.subr.mxu0 0.0
  %2469 = vmatpush1.msra.mxu0 0.0
  %2470 = vmatprep.subr.mxu0 0.0
  %2471 = vmatpush1.msra.mxu0 0.0
  %2472 = vmatprep.subr.mxu0 0.0
  %2473 = vmatpush1.msra.mxu0 0.0
  %2474 = vmatprep.subr.mxu0 0.0
  %2475 = vmatpush1.msra.mxu0 0.0
  %2476 = vmatprep.subr.mxu0 0.0
  %2477 = vmatpush1.msra.mxu0 0.0
  %2478 = vmatprep.subr.mxu0 0.0
  %2479 = vmatpush1.msra.mxu0 0.0
  %2480 = vmatprep.subr.mxu0 0.0
  %2481 = vmatpush1.msra.mxu0 0.0
  %2482 = vmatprep.subr.mxu0 0.0
  %2483 = vmatpush1.msra.mxu0 0.0
  %2484 = vmatprep.subr.mxu0 0.0
  %2485 = vmatpush1.msra.mxu0 0.0
  %2486 = vmatprep.subr.mxu0 0.0
  %2487 = vmatpush1.msra.mxu0 0.0
  %2488 = vmatprep.subr.mxu0 0.0
  %2489 = vmatpush1.msra.mxu0 0.0
  %2490 = vmatprep.subr.mxu0 0.0
  %2491 = vmatpush1.msra.mxu0 0.0
  %2492 = vmatprep.subr.mxu0 0.0
  %2493 = vmatpush1.msra.mxu0 0.0
  %2494 = vmatprep.subr.mxu0 0.0
  %2495 = vmatpush1.msra.mxu0 0.0
  %2496 = vmatprep.subr.mxu0 0.0
  %2497 = vmatpush1.msra.mxu0 0.0
  %2498 = vmatprep.mubr.f32.mxu0 0.0
  %2499 = vmatmul.mubr.f32.gmra.mrb[0].mxu0 %v2429
  %v2500 = vpop.f32.mrb[0].mxu0
  %v2501 = vadd.f32 %v2426, %v2500
  %v2502 = vpop.f32.mrb[0].mxu0
  %2503 = vmatprep.mubr.f32.mxu0 0.0
  %2504 = vmatmul.mubr.f32.gmra.mrb[0].mxu0 %v2432
  %v2505 = vpop.f32.mrb[0].mxu0
  %v2506 = vadd.f32 %v2426, %v2505
  %v2507 = vpop.f32.mrb[0].mxu0
  %2508 = vdwg.mxu0
  %v2509 = vadd.f32 %v2501, %v2297
  %v2510 = vadd.f32 %v2506, %v2298
  %s2511 = scalar_lea.vmem %s15, 1
  %v2512 = vld [vmem:[%s2511] sm:$0x1]
  %s2513 = scalar_lea.vmem %s16, 1
  %v2514 = vld [vmem:[%s2513] sm:$0x1]
  %v2515 = vsel %vm181, %v2509, 0.0
  %2516 = vadd.xlane.f32.xlu0 %v2515
  %v2517 = vpop.xlane.xlu0 %2516
  %v2518 = vsel %vm181, %v2510, 0.0
  %2519 = vadd.xlane.f32.xlu0 %v2518
  %v2520 = vpop.xlane.xlu0 %2519
  %v2521 = vmul.f32 %v2517, %v188
  %v2522 = vmul.f32 %v2520, %v188
  %v2523 = vsub.f32 %v2509, %v2521
  %v2524 = vsub.f32 %v2510, %v2522
  %v2525 = vmul.f32 %v2523, %v2523
  %v2526 = vmul.f32 %v2524, %v2524
  %v2527 = vsel %vm181, %v2525, 0.0
  %2528 = vadd.xlane.f32.xlu0 %v2527
  %v2529 = vpop.xlane.xlu0 %2528
  %v2530 = vsel %vm181, %v2526, 0.0
  %2531 = vadd.xlane.f32.xlu0 %v2530
  %v2532 = vpop.xlane.xlu0 %2531
  %v2533 = vmul.f32 %v2529, %v188
  %v2534 = vmul.f32 %v2532, %v188
  %v2535 = vadd.f32 %v2533, 1e-12
  %v2536 = vadd.f32 %v2534, 1e-12
  %v2537 = vrsqrt.pop %v2535
  %v2538 = vrsqrt.pop %v2536
  %v2539 = vmul.f32 %v2523, %v2537
  %v2540 = vmul.f32 %v2524, %v2538
  %v2542 = vlaneseq
  %v2543 = vshrl.u32 %v2542, 7
  %v2544 = vsub.s32 0, %v2543
  %v2545 = vrot.slane %v2512, %v2544
  %v2547 = vmul.f32 %v2539, %v2545
  %v2548 = vmul.f32 %v2540, %v2545
  %v2550 = vlaneseq
  %v2551 = vshrl.u32 %v2550, 7
  %v2552 = vsub.s32 0, %v2551
  %v2553 = vrot.slane %v2514, %v2552
  %v2555 = vadd.f32 %v2547, %v2553
  %v2556 = vadd.f32 %v2548, %v2553
  %v2557 = vlaneseq
  %v2558 = vshrl.u32 %v2557, 7
  %v2559 = vmul.u32 %v2558, 8
  %vm2560 = vcmp.eq.s32.totalorder %v73, %v2559
  %v2561 = vsel %vm2560, 1, 0
  %v2562 = vcvt.s32.f32 %v2561
  %v2564 = vsel %vm320, %v2562, 0
  %2566 = vmatprep.subr.mxu0 0.0
  %2567 = vmatpush1.msra.mxu0 %v2555
  %2568 = vmatprep.subr.mxu0 0.0
  %2569 = vmatpush1.msra.mxu0 %v2556
  %2570 = vmatprep.subr.mxu0 0.0
  %2571 = vmatpush1.msra.mxu0 0.0
  %2572 = vmatprep.subr.mxu0 0.0
  %2573 = vmatpush1.msra.mxu0 0.0
  %2574 = vmatprep.subr.mxu0 0.0
  %2575 = vmatpush1.msra.mxu0 0.0
  %2576 = vmatprep.subr.mxu0 0.0
  %2577 = vmatpush1.msra.mxu0 0.0
  %2578 = vmatprep.subr.mxu0 0.0
  %2579 = vmatpush1.msra.mxu0 0.0
  %2580 = vmatprep.subr.mxu0 0.0
  %2581 = vmatpush1.msra.mxu0 0.0
  %2582 = vmatprep.subr.mxu0 0.0
  %2583 = vmatpush1.msra.mxu0 0.0
  %2584 = vmatprep.subr.mxu0 0.0
  %2585 = vmatpush1.msra.mxu0 0.0
  %2586 = vmatprep.subr.mxu0 0.0
  %2587 = vmatpush1.msra.mxu0 0.0
  %2588 = vmatprep.subr.mxu0 0.0
  %2589 = vmatpush1.msra.mxu0 0.0
  %2590 = vmatprep.subr.mxu0 0.0
  %2591 = vmatpush1.msra.mxu0 0.0
  %2592 = vmatprep.subr.mxu0 0.0
  %2593 = vmatpush1.msra.mxu0 0.0
  %2594 = vmatprep.subr.mxu0 0.0
  %2595 = vmatpush1.msra.mxu0 0.0
  %2596 = vmatprep.subr.mxu0 0.0
  %2597 = vmatpush1.msra.mxu0 0.0
  %2598 = vmatprep.subr.mxu0 0.0
  %2599 = vmatpush1.msra.mxu0 0.0
  %2600 = vmatprep.subr.mxu0 0.0
  %2601 = vmatpush1.msra.mxu0 0.0
  %2602 = vmatprep.subr.mxu0 0.0
  %2603 = vmatpush1.msra.mxu0 0.0
  %2604 = vmatprep.subr.mxu0 0.0
  %2605 = vmatpush1.msra.mxu0 0.0
  %2606 = vmatprep.subr.mxu0 0.0
  %2607 = vmatpush1.msra.mxu0 0.0
  %2608 = vmatprep.subr.mxu0 0.0
  %2609 = vmatpush1.msra.mxu0 0.0
  %2610 = vmatprep.subr.mxu0 0.0
  %2611 = vmatpush1.msra.mxu0 0.0
  %2612 = vmatprep.subr.mxu0 0.0
  %2613 = vmatpush1.msra.mxu0 0.0
  %2614 = vmatprep.subr.mxu0 0.0
  %2615 = vmatpush1.msra.mxu0 0.0
  %2616 = vmatprep.subr.mxu0 0.0
  %2617 = vmatpush1.msra.mxu0 0.0
  %2618 = vmatprep.subr.mxu0 0.0
  %2619 = vmatpush1.msra.mxu0 0.0
  %2620 = vmatprep.subr.mxu0 0.0
  %2621 = vmatpush1.msra.mxu0 0.0
  %2622 = vmatprep.subr.mxu0 0.0
  %2623 = vmatpush1.msra.mxu0 0.0
  %2624 = vmatprep.subr.mxu0 0.0
  %2625 = vmatpush1.msra.mxu0 0.0
  %2626 = vmatprep.subr.mxu0 0.0
  %2627 = vmatpush1.msra.mxu0 0.0
  %2628 = vmatprep.subr.mxu0 0.0
  %2629 = vmatpush1.msra.mxu0 0.0
  %2630 = vmatprep.mubr.f32.mxu0 0.0
  %2631 = vmatmul.mubr.f32.gmra.mrb[0].mxu0 %v2564
  %v2632 = vpop.f32.mrb[0].mxu0
  %v2633 = vadd.f32 0.0, %v2632
  %v2634 = vpop.f32.mrb[0].mxu0
  %2635 = vdwg.mxu0
  %v2636 = vld [vmem:[%s17] sm:$0xff]
  %v2637 = vld [vmem:[%s17 + $0x8] sm:$0xff]
  %v2638 = vld [vmem:[%s17 + $0x10] sm:$0xff]
  %v2639 = vld [vmem:[%s17 + $0x18] sm:$0xff]
  %v2640 = vld [vmem:[%s18] sm:$0x1]
  %v2642 = vlaneseq
  %v2643 = vshrl.u32 %v2642, 7
  %v2644 = vsub.s32 0, %v2643
  %v2645 = vrot.slane %v2640, %v2644
  %v2648 = vsel %vm181, %v2633, 0
  %2650 = vmatprep.subr.mxu0 0.0
  %2651 = vmatpush1.msra.mxu0 %v2636
  %2652 = vmatprep.subr.mxu0 0.0
  %2653 = vmatpush1.msra.mxu0 %v2637
  %2654 = vmatprep.subr.mxu0 0.0
  %2655 = vmatpush1.msra.mxu0 %v2638
  %2656 = vmatprep.subr.mxu0 0.0
  %2657 = vmatpush1.msra.mxu0 %v2639
  %2658 = vmatprep.subr.mxu0 0.0
  %2659 = vmatpush1.msra.mxu0 0.0
  %2660 = vmatprep.subr.mxu0 0.0
  %2661 = vmatpush1.msra.mxu0 0.0
  %2662 = vmatprep.subr.mxu0 0.0
  %2663 = vmatpush1.msra.mxu0 0.0
  %2664 = vmatprep.subr.mxu0 0.0
  %2665 = vmatpush1.msra.mxu0 0.0
  %2666 = vmatprep.subr.mxu0 0.0
  %2667 = vmatpush1.msra.mxu0 0.0
  %2668 = vmatprep.subr.mxu0 0.0
  %2669 = vmatpush1.msra.mxu0 0.0
  %2670 = vmatprep.subr.mxu0 0.0
  %2671 = vmatpush1.msra.mxu0 0.0
  %2672 = vmatprep.subr.mxu0 0.0
  %2673 = vmatpush1.msra.mxu0 0.0
  %2674 = vmatprep.subr.mxu0 0.0
  %2675 = vmatpush1.msra.mxu0 0.0
  %2676 = vmatprep.subr.mxu0 0.0
  %2677 = vmatpush1.msra.mxu0 0.0
  %2678 = vmatprep.subr.mxu0 0.0
  %2679 = vmatpush1.msra.mxu0 0.0
  %2680 = vmatprep.subr.mxu0 0.0
  %2681 = vmatpush1.msra.mxu0 0.0
  %2682 = vmatprep.subr.mxu0 0.0
  %2683 = vmatpush1.msra.mxu0 0.0
  %2684 = vmatprep.subr.mxu0 0.0
  %2685 = vmatpush1.msra.mxu0 0.0
  %2686 = vmatprep.subr.mxu0 0.0
  %2687 = vmatpush1.msra.mxu0 0.0
  %2688 = vmatprep.subr.mxu0 0.0
  %2689 = vmatpush1.msra.mxu0 0.0
  %2690 = vmatprep.subr.mxu0 0.0
  %2691 = vmatpush1.msra.mxu0 0.0
  %2692 = vmatprep.subr.mxu0 0.0
  %2693 = vmatpush1.msra.mxu0 0.0
  %2694 = vmatprep.subr.mxu0 0.0
  %2695 = vmatpush1.msra.mxu0 0.0
  %2696 = vmatprep.subr.mxu0 0.0
  %2697 = vmatpush1.msra.mxu0 0.0
  %2698 = vmatprep.subr.mxu0 0.0
  %2699 = vmatpush1.msra.mxu0 0.0
  %2700 = vmatprep.subr.mxu0 0.0
  %2701 = vmatpush1.msra.mxu0 0.0
  %2702 = vmatprep.subr.mxu0 0.0
  %2703 = vmatpush1.msra.mxu0 0.0
  %2704 = vmatprep.subr.mxu0 0.0
  %2705 = vmatpush1.msra.mxu0 0.0
  %2706 = vmatprep.subr.mxu0 0.0
  %2707 = vmatpush1.msra.mxu0 0.0
  %2708 = vmatprep.subr.mxu0 0.0
  %2709 = vmatpush1.msra.mxu0 0.0
  %2710 = vmatprep.subr.mxu0 0.0
  %2711 = vmatpush1.msra.mxu0 0.0
  %2712 = vmatprep.subr.mxu0 0.0
  %2713 = vmatpush1.msra.mxu0 0.0
  %2714 = vmatprep.mubr.f32.mxu0 0.0
  %2715 = vmatmul.mubr.f32.gmra.mrb[0].mxu0 %v2648
  %v2716 = vpop.f32.mrb[0].mxu0
  %v2717 = vadd.f32 %v2645, %v2716
  %v2718 = vpop.f32.mrb[0].mxu0
  %2719 = vdwg.mxu0
  %v2720 = vtanh.pop %v2717
  %v2721 = vld [vmem:[%s19] sm:$0xff]
  %v2722 = vld [vmem:[%s19 + $0x8] sm:$0xff]
  %v2723 = vld [vmem:[%s19 + $0x10] sm:$0xff]
  %v2724 = vld [vmem:[%s19 + $0x18] sm:$0xff]
  %v2725 = vld [vmem:[#allocation3] sm:$0x1]
  %v2727 = vlaneseq
  %v2728 = vshrl.u32 %v2727, 7
  %v2729 = vsub.s32 0, %v2728
  %v2730 = vrot.slane %v2725, %v2729
  %v2733 = vsel %vm181, %v2720, 0
  %2735 = vmatprep.subr.mxu0 0.0
  %2736 = vmatpush1.msra.mxu0 %v2721
  %2737 = vmatprep.subr.mxu0 0.0
  %2738 = vmatpush1.msra.mxu0 %v2722
  %2739 = vmatprep.subr.mxu0 0.0
  %2740 = vmatpush1.msra.mxu0 %v2723
  %2741 = vmatprep.subr.mxu0 0.0
  %2742 = vmatpush1.msra.mxu0 %v2724
  %2743 = vmatprep.subr.mxu0 0.0
  %2744 = vmatpush1.msra.mxu0 0.0
  %2745 = vmatprep.subr.mxu0 0.0
  %2746 = vmatpush1.msra.mxu0 0.0
  %2747 = vmatprep.subr.mxu0 0.0
  %2748 = vmatpush1.msra.mxu0 0.0
  %2749 = vmatprep.subr.mxu0 0.0
  %2750 = vmatpush1.msra.mxu0 0.0
  %2751 = vmatprep.subr.mxu0 0.0
  %2752 = vmatpush1.msra.mxu0 0.0
  %2753 = vmatprep.subr.mxu0 0.0
  %2754 = vmatpush1.msra.mxu0 0.0
  %2755 = vmatprep.subr.mxu0 0.0
  %2756 = vmatpush1.msra.mxu0 0.0
  %2757 = vmatprep.subr.mxu0 0.0
  %2758 = vmatpush1.msra.mxu0 0.0
  %2759 = vmatprep.subr.mxu0 0.0
  %2760 = vmatpush1.msra.mxu0 0.0
  %2761 = vmatprep.subr.mxu0 0.0
  %2762 = vmatpush1.msra.mxu0 0.0
  %2763 = vmatprep.subr.mxu0 0.0
  %2764 = vmatpush1.msra.mxu0 0.0
  %2765 = vmatprep.subr.mxu0 0.0
  %2766 = vmatpush1.msra.mxu0 0.0
  %2767 = vmatprep.subr.mxu0 0.0
  %2768 = vmatpush1.msra.mxu0 0.0
  %2769 = vmatprep.subr.mxu0 0.0
  %2770 = vmatpush1.msra.mxu0 0.0
  %2771 = vmatprep.subr.mxu0 0.0
  %2772 = vmatpush1.msra.mxu0 0.0
  %2773 = vmatprep.subr.mxu0 0.0
  %2774 = vmatpush1.msra.mxu0 0.0
  %2775 = vmatprep.subr.mxu0 0.0
  %2776 = vmatpush1.msra.mxu0 0.0
  %2777 = vmatprep.subr.mxu0 0.0
  %2778 = vmatpush1.msra.mxu0 0.0
  %2779 = vmatprep.subr.mxu0 0.0
  %2780 = vmatpush1.msra.mxu0 0.0
  %2781 = vmatprep.subr.mxu0 0.0
  %2782 = vmatpush1.msra.mxu0 0.0
  %2783 = vmatprep.subr.mxu0 0.0
  %2784 = vmatpush1.msra.mxu0 0.0
  %2785 = vmatprep.subr.mxu0 0.0
  %2786 = vmatpush1.msra.mxu0 0.0
  %2787 = vmatprep.subr.mxu0 0.0
  %2788 = vmatpush1.msra.mxu0 0.0
  %2789 = vmatprep.subr.mxu0 0.0
  %2790 = vmatpush1.msra.mxu0 0.0
  %2791 = vmatprep.subr.mxu0 0.0
  %2792 = vmatpush1.msra.mxu0 0.0
  %2793 = vmatprep.subr.mxu0 0.0
  %2794 = vmatpush1.msra.mxu0 0.0
  %2795 = vmatprep.subr.mxu0 0.0
  %2796 = vmatpush1.msra.mxu0 0.0
  %2797 = vmatprep.subr.mxu0 0.0
  %2798 = vmatpush1.msra.mxu0 0.0
  %2799 = vmatprep.mubr.f32.mxu0 0.0
  %2800 = vmatmul.mubr.f32.gmra.mrb[0].mxu0 %v2733
  %v2801 = vpop.f32.mrb[0].mxu0
  %v2802 = vadd.f32 %v2730, %v2801
  %v2803 = vpop.f32.mrb[0].mxu0
  %2804 = vdwg.mxu0
  %v2805 = vxor.u32 %v2802, 2147483648
  %v2806 = vmul.f32 %v2805, 1.442695
  %v2807 = vpow.pop %v2806
  %v2808 = vadd.f32 %v2807, 1.0
  %v2809 = vrcp.pop %v2808
  %v2810 = vmul.f32 1.0, %v2809
  %vm2811 = vcmask 1024
  %2812 = vst.msk [vmem:[%s21] sm:$0x3] %vm2811, %v2810
  // Predicated region
  $region86: #{model_forward.1} parent=0 // pred_check
    _
  $region87: #{model_forward.1} parent=0 // pred_check_branch
    %2814 = sbr.rel (0) target = $region89
  $region88: #{model_forward.1} parent=0 // pred_region
    _
  $region89: #{model_forward.1} parent=0 // pred_fallthru
    _
  // Predicated region
  $region90: #{model_forward.1} parent=0 // pred_check
    _
  $region91: #{model_forward.1} parent=0 // pred_check_branch
    %2816 = sbr.rel (0) target = $region93
  $region92: #{model_forward.1} parent=0 // pred_region
    _
  $region93: #{model_forward.1} parent=0 // pred_fallthru
    _

</llo_original>
